<compile_context>
chip_gen: v7x
topology: tpu7x:2x2x1
jax: 0.10.0
libtpu: 0.0.40
codegen_flags: <defaults>
</compile_context>

<pallas_src>
import jax
import jax.numpy as jnp
from jax import lax
from jax.experimental import pallas as pl
from jax.experimental.pallas import tpu as pltpu


def _round_up(x, m):
    return ((x + m - 1) // m) * m


# ---------------------------------------------------------------------------
# Fused kernel: fc_aspect + (gated conv + max-pool per K) + concat + fc1
# ---------------------------------------------------------------------------
def _make_fused_kernel(Ks, L, tb, co_p):
    nK = len(Ks)
    co2 = 2 * co_p

    def kernel(feat_ref, aspv_ref, faw_ref, fab_ref, *rest):
        conv_refs = rest[:2 * nK]
        fc1w_ref = rest[2 * nK]
        fc1b_ref = rest[2 * nK + 1]
        out_ref = rest[2 * nK + 2]

        # Feature tile for this batch block, laid out (tb*L, D) (lane dim = D).
        f2 = feat_ref[...].astype(jnp.float32)

        # fc_aspect prologue: (tb, D) @ (D, co_p) + b   (MXU, default precision).
        asp = (jnp.dot(aspv_ref[...].astype(jnp.float32), faw_ref[...],
                       preferred_element_type=jnp.float32)
               + fab_ref[...])                                    # (tb, co_p)

        pooled = []
        for i, kw in enumerate(Ks):
            w_ref = conv_refs[2 * i]       # (kw, D, 2*co_p)  conv1|conv2 fused
            b_ref = conv_refs[2 * i + 1]   # (1, 2*co_p)
            l_out = L - kw + 1

            # Conv1d(VALID) as kw full-length matmuls; tap alignment on the XLU
            # via pltpu.roll so the MXU always sees a dense (tb*L, D) LHS.
            acc = jnp.zeros((tb * L, co2), jnp.float32)
            for k in range(kw):            # static unroll over conv taps
                full_k = jnp.dot(f2, w_ref[k],
                                 preferred_element_type=jnp.float32)
                if k:
                    full_k = pltpu.roll(full_k, shift=tb * L - k, axis=0)
                acc = acc + full_k
            acc = acc + b_ref[...]

            acc3 = acc.reshape(tb, L, co2)
            a = jnp.tanh(acc3[:, :, :co_p])                       # conv1 branch
            g = jnp.maximum(acc3[:, :, co_p:] + asp[:, None, :], 0.0)  # conv2
            gated = a * g
            # Mask positions outside the VALID conv range (and the roll
            # wrap-around rows) before the global max-pool over time.
            t_idx = lax.broadcasted_iota(jnp.int32, (tb, L, co_p), 1)
            gated = jnp.where(t_idx < l_out, gated, -1e30)
            pooled.append(jnp.max(gated, axis=1))                 # (tb, co_p)

        x0 = jnp.concatenate(pooled, axis=1)                      # (tb, nK*co_p)
        logits = (jnp.dot(x0, fc1w_ref[...],
                          preferred_element_type=jnp.float32)
                  + fc1b_ref[...])                                # (tb, c_p)
        out_ref[...] = logits.astype(out_ref.dtype)

    return kernel


def fused_gated_cnn_forward(feat, aspect_v, kp, *, tb=8):
    """feat: [Bp, L, D], aspect_v: [Bp, D]  ->  padded logits [Bp, C_p]."""
    Bp, L, D = feat.shape
    conv_pairs = kp["convs"]
    Ks = tuple(int(w.shape[0]) for (w, _) in conv_pairs)
    nK = len(Ks)
    co2 = int(conv_pairs[0][0].shape[2])
    co_p = co2 // 2
    c_p = int(kp["fc1_w_t"].shape[1])
    assert Bp % tb == 0

    # Lane dim (D) unchanged -> free XLA reshape; kernel sees a 2-D LHS.
    feat2 = feat.reshape(Bp * L, D)

    in_specs = [
        pl.BlockSpec((tb * L, D), lambda b: (b, 0)),    # feature tile
        pl.BlockSpec((tb, D), lambda b: (b, 0)),        # aspect tile
        pl.BlockSpec((D, co_p), lambda b: (0, 0)),      # fc_aspect W^T (resident)
        pl.BlockSpec((1, co_p), lambda b: (0, 0)),      # fc_aspect b
    ]
    args = [feat2, aspect_v, kp["fc_aspect_w_t"], kp["fc_aspect_b"]]
    for (w, bias) in conv_pairs:
        in_specs.append(pl.BlockSpec(tuple(w.shape), lambda b: (0, 0, 0)))
        in_specs.append(pl.BlockSpec(tuple(bias.shape), lambda b: (0, 0)))
        args += [w, bias]
    in_specs.append(pl.BlockSpec(tuple(kp["fc1_w_t"].shape), lambda b: (0, 0)))
    in_specs.append(pl.BlockSpec(tuple(kp["fc1_b"].shape), lambda b: (0, 0)))
    args += [kp["fc1_w_t"], kp["fc1_b"]]

    # Advisory cost estimate for XLA's scheduler around the custom call.
    flops = (2 * Bp * D * co_p
             + sum(2 * Bp * L * D * co2 * kw for kw in Ks)
             + 2 * Bp * nK * co_p * c_p)
    transcendentals = Bp * L * co_p * nK                         # tanh
    bytes_accessed = (sum(a.size * a.dtype.itemsize for a in args)
                      + Bp * c_p * 4)

    out = pl.pallas_call(
        _make_fused_kernel(Ks, L, tb, co_p),
        out_shape=jax.ShapeDtypeStruct((Bp, c_p), jnp.float32),
        grid=(Bp // tb,),
        in_specs=in_specs,
        out_specs=pl.BlockSpec((tb, c_p), lambda b: (b, 0)),
        compiler_params=pltpu.CompilerParams(
            dimension_semantics=("parallel",)),
        cost_estimate=pl.CostEstimate(flops=flops,
                                      transcendentals=transcendentals,
                                      bytes_accessed=bytes_accessed),
    )(*args)
    return out


# ---------------------------------------------------------------------------
# Parameters (logical = PyTorch layout; kernel params = transposed/padded once)
# ---------------------------------------------------------------------------
def init_logical_params(key, V, D, A, Co=100, C=3, Ks=(3, 4, 5), dtype=jnp.float32):
    ks = iter(jax.random.split(key, 2 + 4 * len(Ks) + 4))
    p = {"Ks": Ks}
    p["embed"] = jax.random.normal(next(ks), (V, D), dtype)          # pretrained E
    p["aspect_embed"] = jax.random.normal(next(ks), (A, D), dtype)   # pretrained T
    p["conv1_w"], p["conv1_b"], p["conv2_w"], p["conv2_b"] = [], [], [], []
    for K in Ks:
        s = 1.0 / (D * K) ** 0.5
        p["conv1_w"].append(jax.random.uniform(next(ks), (Co, D, K), dtype, -s, s))
        p["conv1_b"].append(jax.random.uniform(next(ks), (Co,), dtype, -s, s))
        p["conv2_w"].append(jax.random.uniform(next(ks), (Co, D, K), dtype, -s, s))
        p["conv2_b"].append(jax.random.uniform(next(ks), (Co,), dtype, -s, s))
    s = 1.0 / (len(Ks) * Co) ** 0.5
    p["fc1_w"] = jax.random.uniform(next(ks), (C, len(Ks) * Co), dtype, -s, s)
    p["fc1_b"] = jax.random.uniform(next(ks), (C,), dtype, -s, s)
    s = 1.0 / D ** 0.5
    p["fc_aspect_w"] = jax.random.uniform(next(ks), (Co, D), dtype, -s, s)
    p["fc_aspect_b"] = jax.random.uniform(next(ks), (Co,), dtype, -s, s)
    return p


def prepare_kernel_params(p, lane=128):
    """One-time (eager) layout prep: transpose all weights so the kernel does
    plain x @ w, pad Co=100 -> 128 and C=3 -> 128 for lane-dense tiles, and fuse
    conv1/conv2 weights along the output-channel axis. Nothing here re-runs per
    forward call."""
    Co = p["conv1_w"][0].shape[0]
    Co_p = _round_up(Co, lane)
    pad_c = Co_p - Co
    C = p["fc1_w"].shape[0]
    C_p = _round_up(C, lane)

    kp = {"embed": p["embed"], "aspect_embed": p["aspect_embed"]}
    # fc_aspect: [Co, D] -> [D, Co_p]
    kp["fc_aspect_w_t"] = jnp.pad(p["fc_aspect_w"].T, ((0, 0), (0, pad_c)))
    kp["fc_aspect_b"] = jnp.pad(p["fc_aspect_b"], (0, pad_c)).reshape(1, Co_p)

    # conv pairs: [Co, D, K] -> [K, D, Co_p], fused conv1|conv2 -> [K, D, 2*Co_p]
    kp["convs"] = []
    for w1, b1, w2, b2 in zip(p["conv1_w"], p["conv1_b"], p["conv2_w"], p["conv2_b"]):
        w1t = jnp.pad(jnp.transpose(w1, (2, 1, 0)), ((0, 0), (0, 0), (0, pad_c)))
        w2t = jnp.pad(jnp.transpose(w2, (2, 1, 0)), ((0, 0), (0, 0), (0, pad_c)))
        w12 = jnp.concatenate([w1t, w2t], axis=2)                   # [K, D, 2Co_p]
        b12 = jnp.concatenate([jnp.pad(b1, (0, pad_c)),
                               jnp.pad(b2, (0, pad_c))]).reshape(1, 2 * Co_p)
        kp["convs"].append((w12, b12))

    # fc1: [C, nK*Co] -> [nK*Co_p, C_p] with zero rows/cols at padded slots.
    nK = len(p["conv1_w"])
    fc1_w_t = p["fc1_w"].T                                          # [nK*Co, C]
    fc1_full = jnp.zeros((nK * Co_p, C_p), fc1_w_t.dtype)
    for i in range(nK):
        fc1_full = fc1_full.at[i * Co_p:i * Co_p + Co, :C].set(
            fc1_w_t[i * Co:(i + 1) * Co])
    kp["fc1_w_t"] = fc1_full
    kp["fc1_b"] = jnp.pad(p["fc1_b"], (0, C_p - C)).reshape(1, C_p)
    return kp


# ---------------------------------------------------------------------------
# Forward pass (Pallas) and plain-JAX reference
# ---------------------------------------------------------------------------
def make_forward(num_classes, tb=8):
    @jax.jit
    def forward(kp, feature_ids, order_ids):
        B = feature_ids.shape[0]
        Bp = _round_up(max(B, tb), tb)
        fids = jnp.pad(feature_ids, ((0, Bp - B), (0, 0)))
        oids = jnp.pad(order_ids, (0, Bp - B))
        # TODO(synk): embedding row-gather is left to XLA here; it could become a
        # scalar-prefetch (PrefetchScalarGridSpec) DMA-gather feeding the fused
        # kernel directly, avoiding the [B, L, D] HBM round trip.
        feat = jnp.take(kp["embed"], fids, axis=0)              # [Bp, L, D]
        aspect_v = jnp.take(kp["aspect_embed"], oids, axis=0)   # [Bp, D]
        out = fused_gated_cnn_forward(feat, aspect_v, kp, tb=tb)
        return out[:B, :num_classes]
    return forward


def reference_forward(p, feature_ids, order_ids):
    feat = p["embed"][feature_ids]                    # [B, L, D]
    aspect_v = p["aspect_embed"][order_ids]           # [B, D]
    asp = jnp.dot(aspect_v, p["fc_aspect_w"].T) + p["fc_aspect_b"]
    x_in = jnp.transpose(feat, (0, 2, 1))             # [B, D, L]
    feats = []
    for w1, b1, w2, b2 in zip(p["conv1_w"], p["conv1_b"], p["conv2_w"], p["conv2_b"]):
        c1 = lax.conv_general_dilated(x_in, w1, (1,), "VALID",
                                      dimension_numbers=("NCH", "OIH", "NCH"))
        c1 = c1 + b1[None, :, None]
        c2 = lax.conv_general_dilated(x_in, w2, (1,), "VALID",
                                      dimension_numbers=("NCH", "OIH", "NCH"))
        c2 = c2 + b2[None, :, None] + asp[:, :, None]
        g = jnp.tanh(c1) * jax.nn.relu(c2)
        feats.append(jnp.max(g, axis=2))              # [B, Co]
    x0 = jnp.concatenate(feats, axis=1)
    return jnp.dot(x0, p["fc1_w"].T) + p["fc1_b"]


if __name__ == "__main__":
    # Small shapes consistent with the module (Co=100, C=3, Ks=(3,4,5) fixed by
    # the spec; V/D/A/B/L chosen small).
    V, D, A = 50, 32, 6
    B, L = 4, 16
    Co, C, Ks = 100, 3, (3, 4, 5)

    root = jax.random.PRNGKey(0)
    k_param, k_feat, k_ord = jax.random.split(root, 3)

    params = init_logical_params(k_param, V, D, A, Co=Co, C=C, Ks=Ks)
    kparams = prepare_kernel_params(params)

    feature_ids = jax.random.randint(k_feat, (B, L), 0, V)
    order_ids = jax.random.randint(k_ord, (B,), 0, A)

    forward = make_forward(num_classes=C, tb=8)
    logits = forward(kparams, feature_ids, order_ids)
    jax.block_until_ready(logits)

    ref = reference_forward(params, feature_ids, order_ids)
    assert logits.shape == (B, C)
    max_diff = float(jnp.max(jnp.abs(logits - ref)))
    # Kernel matmuls use default (single-pass bf16 MXU, f32 accumulate)
    # precision; tolerance is sized for bf16-input rounding vs. the XLA ref.
    assert jnp.allclose(logits, ref, atol=3e-2, rtol=3e-2), f"max abs diff {max_diff}"

    print("KERNEL_OK")
</pallas_src>

<mosaic_0001>
module attributes {stable_mosaic.version = 11 : i64} {
  func.func @kernel(%arg0: i32, %arg1: memref<128x32xf32, #tpu.memory_space<vmem>>, %arg2: memref<8x32xf32, #tpu.memory_space<vmem>>, %arg3: memref<32x128xf32, #tpu.memory_space<vmem>>, %arg4: memref<1x128xf32, #tpu.memory_space<vmem>>, %arg5: memref<3x32x256xf32, #tpu.memory_space<vmem>>, %arg6: memref<1x256xf32, #tpu.memory_space<vmem>>, %arg7: memref<4x32x256xf32, #tpu.memory_space<vmem>>, %arg8: memref<1x256xf32, #tpu.memory_space<vmem>>, %arg9: memref<5x32x256xf32, #tpu.memory_space<vmem>>, %arg10: memref<1x256xf32, #tpu.memory_space<vmem>>, %arg11: memref<384x128xf32, #tpu.memory_space<vmem>>, %arg12: memref<1x128xf32, #tpu.memory_space<vmem>>, %arg13: memref<8x128xf32, #tpu.memory_space<vmem>>) attributes {dimension_semantics = [#tpu.dimension_semantics<parallel>], iteration_bounds = array<i64: 1>, scalar_prefetch = 0 : i64, scratch_operands = 0 : i64, tpu.core_type = #tpu.core_type<tc>, window_params = [{transform_indices = @transform_0, window_bounds = array<i64: 128, 32>}, {transform_indices = @transform_1, window_bounds = array<i64: 8, 32>}, {pipeline_mode = #tpu.pipeline_mode<synchronous>, transform_indices = @transform_2, window_bounds = array<i64: 32, 128>}, {pipeline_mode = #tpu.pipeline_mode<synchronous>, transform_indices = @transform_3, window_bounds = array<i64: 1, 128>}, {pipeline_mode = #tpu.pipeline_mode<synchronous>, transform_indices = @transform_4, window_bounds = array<i64: 3, 32, 256>}, {pipeline_mode = #tpu.pipeline_mode<synchronous>, transform_indices = @transform_5, window_bounds = array<i64: 1, 256>}, {pipeline_mode = #tpu.pipeline_mode<synchronous>, transform_indices = @transform_6, window_bounds = array<i64: 4, 32, 256>}, {pipeline_mode = #tpu.pipeline_mode<synchronous>, transform_indices = @transform_7, window_bounds = array<i64: 1, 256>}, {pipeline_mode = #tpu.pipeline_mode<synchronous>, transform_indices = @transform_8, window_bounds = array<i64: 5, 32, 256>}, {pipeline_mode = #tpu.pipeline_mode<synchronous>, transform_indices = @transform_9, window_bounds = array<i64: 1, 256>}, {pipeline_mode = #tpu.pipeline_mode<synchronous>, transform_indices = @transform_10, window_bounds = array<i64: 384, 128>}, {pipeline_mode = #tpu.pipeline_mode<synchronous>, transform_indices = @transform_11, window_bounds = array<i64: 1, 128>}, {transform_indices = @transform_12, window_bounds = array<i64: 8, 128>}]} {
    %c0 = arith.constant 0 : index
    %c0_0 = arith.constant 0 : index
    %0 = vector.load %arg1[%c0, %c0_0] : memref<128x32xf32, #tpu.memory_space<vmem>>, vector<128x32xf32>
    %c0_1 = arith.constant 0 : index
    %c0_2 = arith.constant 0 : index
    %1 = vector.load %arg2[%c0_1, %c0_2] : memref<8x32xf32, #tpu.memory_space<vmem>>, vector<8x32xf32>
    %c0_3 = arith.constant 0 : index
    %c0_4 = arith.constant 0 : index
    %2 = vector.load %arg3[%c0_3, %c0_4] : memref<32x128xf32, #tpu.memory_space<vmem>>, vector<32x128xf32>
    %cst = arith.constant dense<0.000000e+00> : vector<8x128xf32>
    %3 = tpu.matmul %1, %2, %cst {dimension_numbers = #tpu.dot_dimension_numbers<[1], [0], [0], [1], [0, 0, 1, 1], [], []>} : vector<8x32xf32>, vector<32x128xf32>, vector<8x128xf32> -> vector<8x128xf32>
    %c0_5 = arith.constant 0 : index
    %c0_6 = arith.constant 0 : index
    %4 = vector.load %arg4[%c0_5, %c0_6] : memref<1x128xf32, #tpu.memory_space<vmem>>, vector<1x128xf32>
    %5 = vector.broadcast %4 : vector<1x128xf32> to vector<8x128xf32>
    %6 = arith.addf %3, %5 : vector<8x128xf32>
    %cst_7 = arith.constant 0.000000e+00 : f32
    %7 = vector.broadcast %cst_7 : f32 to vector<128x256xf32>
    %c0_8 = arith.constant 0 : index
    %c0_9 = arith.constant 0 : index
    %c0_10 = arith.constant 0 : index
    %8 = vector.load %arg5[%c0_8, %c0_9, %c0_10] : memref<3x32x256xf32, #tpu.memory_space<vmem>>, vector<1x32x256xf32>
    %9 = vector.shape_cast %8 : vector<1x32x256xf32> to vector<32x256xf32>
    %cst_11 = arith.constant dense<0.000000e+00> : vector<128x256xf32>
    %10 = tpu.matmul %0, %9, %cst_11 {dimension_numbers = #tpu.dot_dimension_numbers<[1], [0], [0], [1], [0, 0, 1, 1], [], []>} : vector<128x32xf32>, vector<32x256xf32>, vector<128x256xf32> -> vector<128x256xf32>
    %11 = arith.addf %7, %10 : vector<128x256xf32>
    %c1 = arith.constant 1 : index
    %c0_12 = arith.constant 0 : index
    %c0_13 = arith.constant 0 : index
    %12 = vector.load %arg5[%c1, %c0_12, %c0_13] : memref<3x32x256xf32, #tpu.memory_space<vmem>>, vector<1x32x256xf32>
    %13 = vector.shape_cast %12 : vector<1x32x256xf32> to vector<32x256xf32>
    %cst_14 = arith.constant dense<0.000000e+00> : vector<128x256xf32>
    %14 = tpu.matmul %0, %13, %cst_14 {dimension_numbers = #tpu.dot_dimension_numbers<[1], [0], [0], [1], [0, 0, 1, 1], [], []>} : vector<128x32xf32>, vector<32x256xf32>, vector<128x256xf32> -> vector<128x256xf32>
    %c127_i32 = arith.constant 127 : i32
    %15 = tpu.dynamic_rotate %14 by %c127_i32 dim 0 : vector<128x256xf32>, i32 -> vector<128x256xf32>
    %16 = arith.addf %11, %15 : vector<128x256xf32>
    %c2 = arith.constant 2 : index
    %c0_15 = arith.constant 0 : index
    %c0_16 = arith.constant 0 : index
    %17 = vector.load %arg5[%c2, %c0_15, %c0_16] : memref<3x32x256xf32, #tpu.memory_space<vmem>>, vector<1x32x256xf32>
    %18 = vector.shape_cast %17 : vector<1x32x256xf32> to vector<32x256xf32>
    %cst_17 = arith.constant dense<0.000000e+00> : vector<128x256xf32>
    %19 = tpu.matmul %0, %18, %cst_17 {dimension_numbers = #tpu.dot_dimension_numbers<[1], [0], [0], [1], [0, 0, 1, 1], [], []>} : vector<128x32xf32>, vector<32x256xf32>, vector<128x256xf32> -> vector<128x256xf32>
    %c126_i32 = arith.constant 126 : i32
    %20 = tpu.dynamic_rotate %19 by %c126_i32 dim 0 : vector<128x256xf32>, i32 -> vector<128x256xf32>
    %21 = arith.addf %16, %20 : vector<128x256xf32>
    %c0_18 = arith.constant 0 : index
    %c0_19 = arith.constant 0 : index
    %22 = vector.load %arg6[%c0_18, %c0_19] : memref<1x256xf32, #tpu.memory_space<vmem>>, vector<1x256xf32>
    %23 = vector.broadcast %22 : vector<1x256xf32> to vector<128x256xf32>
    %24 = arith.addf %21, %23 : vector<128x256xf32>
    %25 = vector.shape_cast %24 : vector<128x256xf32> to vector<8x16x256xf32>
    %26 = vector.extract_strided_slice %25 {offsets = [0, 0, 0], sizes = [8, 16, 128], strides = [1, 1, 1]} : vector<8x16x256xf32> to vector<8x16x128xf32>
    %27 = math.tanh %26 : vector<8x16x128xf32>
    %28 = vector.extract_strided_slice %25 {offsets = [0, 0, 128], sizes = [8, 16, 128], strides = [1, 1, 1]} : vector<8x16x256xf32> to vector<8x16x128xf32>
    %29 = vector.shape_cast %6 : vector<8x128xf32> to vector<8x1x128xf32>
    %30 = vector.broadcast %29 : vector<8x1x128xf32> to vector<8x16x128xf32>
    %31 = arith.addf %28, %30 : vector<8x16x128xf32>
    %cst_20 = arith.constant 0.000000e+00 : f32
    %32 = vector.broadcast %cst_20 : f32 to vector<8x16x128xf32>
    %33 = arith.maximumf %31, %32 : vector<8x16x128xf32>
    %34 = arith.mulf %27, %33 : vector<8x16x128xf32>
    %35 = tpu.iota {dimensions = array<i32: 1>} : vector<8x16x128xi32>
    %c14_i32 = arith.constant 14 : i32
    %36 = vector.broadcast %c14_i32 : i32 to vector<8x16x128xi32>
    %37 = arith.cmpi slt, %35, %36 : vector<8x16x128xi32>
    %cst_21 = arith.constant -1.000000e+30 : f32
    %38 = vector.broadcast %cst_21 : f32 to vector<8x16x128xf32>
    %39 = arith.select %37, %34, %38 : vector<8x16x128xi1>, vector<8x16x128xf32>
    %cst_22 = arith.constant dense<0xFF800000> : vector<8x128xf32>
    %40 = vector.multi_reduction <maximumf>, %39, %cst_22 [1] : vector<8x16x128xf32> to vector<8x128xf32>
    %cst_23 = arith.constant 0.000000e+00 : f32
    %41 = vector.broadcast %cst_23 : f32 to vector<128x256xf32>
    %c0_24 = arith.constant 0 : index
    %c0_25 = arith.constant 0 : index
    %c0_26 = arith.constant 0 : index
    %42 = vector.load %arg7[%c0_24, %c0_25, %c0_26] : memref<4x32x256xf32, #tpu.memory_space<vmem>>, vector<1x32x256xf32>
    %43 = vector.shape_cast %42 : vector<1x32x256xf32> to vector<32x256xf32>
    %cst_27 = arith.constant dense<0.000000e+00> : vector<128x256xf32>
    %44 = tpu.matmul %0, %43, %cst_27 {dimension_numbers = #tpu.dot_dimension_numbers<[1], [0], [0], [1], [0, 0, 1, 1], [], []>} : vector<128x32xf32>, vector<32x256xf32>, vector<128x256xf32> -> vector<128x256xf32>
    %45 = arith.addf %41, %44 : vector<128x256xf32>
    %c1_28 = arith.constant 1 : index
    %c0_29 = arith.constant 0 : index
    %c0_30 = arith.constant 0 : index
    %46 = vector.load %arg7[%c1_28, %c0_29, %c0_30] : memref<4x32x256xf32, #tpu.memory_space<vmem>>, vector<1x32x256xf32>
    %47 = vector.shape_cast %46 : vector<1x32x256xf32> to vector<32x256xf32>
    %cst_31 = arith.constant dense<0.000000e+00> : vector<128x256xf32>
    %48 = tpu.matmul %0, %47, %cst_31 {dimension_numbers = #tpu.dot_dimension_numbers<[1], [0], [0], [1], [0, 0, 1, 1], [], []>} : vector<128x32xf32>, vector<32x256xf32>, vector<128x256xf32> -> vector<128x256xf32>
    %c127_i32_32 = arith.constant 127 : i32
    %49 = tpu.dynamic_rotate %48 by %c127_i32_32 dim 0 : vector<128x256xf32>, i32 -> vector<128x256xf32>
    %50 = arith.addf %45, %49 : vector<128x256xf32>
    %c2_33 = arith.constant 2 : index
    %c0_34 = arith.constant 0 : index
    %c0_35 = arith.constant 0 : index
    %51 = vector.load %arg7[%c2_33, %c0_34, %c0_35] : memref<4x32x256xf32, #tpu.memory_space<vmem>>, vector<1x32x256xf32>
    %52 = vector.shape_cast %51 : vector<1x32x256xf32> to vector<32x256xf32>
    %cst_36 = arith.constant dense<0.000000e+00> : vector<128x256xf32>
    %53 = tpu.matmul %0, %52, %cst_36 {dimension_numbers = #tpu.dot_dimension_numbers<[1], [0], [0], [1], [0, 0, 1, 1], [], []>} : vector<128x32xf32>, vector<32x256xf32>, vector<128x256xf32> -> vector<128x256xf32>
    %c126_i32_37 = arith.constant 126 : i32
    %54 = tpu.dynamic_rotate %53 by %c126_i32_37 dim 0 : vector<128x256xf32>, i32 -> vector<128x256xf32>
    %55 = arith.addf %50, %54 : vector<128x256xf32>
    %c3 = arith.constant 3 : index
    %c0_38 = arith.constant 0 : index
    %c0_39 = arith.constant 0 : index
    %56 = vector.load %arg7[%c3, %c0_38, %c0_39] : memref<4x32x256xf32, #tpu.memory_space<vmem>>, vector<1x32x256xf32>
    %57 = vector.shape_cast %56 : vector<1x32x256xf32> to vector<32x256xf32>
    %cst_40 = arith.constant dense<0.000000e+00> : vector<128x256xf32>
    %58 = tpu.matmul %0, %57, %cst_40 {dimension_numbers = #tpu.dot_dimension_numbers<[1], [0], [0], [1], [0, 0, 1, 1], [], []>} : vector<128x32xf32>, vector<32x256xf32>, vector<128x256xf32> -> vector<128x256xf32>
    %c125_i32 = arith.constant 125 : i32
    %59 = tpu.dynamic_rotate %58 by %c125_i32 dim 0 : vector<128x256xf32>, i32 -> vector<128x256xf32>
    %60 = arith.addf %55, %59 : vector<128x256xf32>
    %c0_41 = arith.constant 0 : index
    %c0_42 = arith.constant 0 : index
    %61 = vector.load %arg8[%c0_41, %c0_42] : memref<1x256xf32, #tpu.memory_space<vmem>>, vector<1x256xf32>
    %62 = vector.broadcast %61 : vector<1x256xf32> to vector<128x256xf32>
    %63 = arith.addf %60, %62 : vector<128x256xf32>
    %64 = vector.shape_cast %63 : vector<128x256xf32> to vector<8x16x256xf32>
    %65 = vector.extract_strided_slice %64 {offsets = [0, 0, 0], sizes = [8, 16, 128], strides = [1, 1, 1]} : vector<8x16x256xf32> to vector<8x16x128xf32>
    %66 = math.tanh %65 : vector<8x16x128xf32>
    %67 = vector.extract_strided_slice %64 {offsets = [0, 0, 128], sizes = [8, 16, 128], strides = [1, 1, 1]} : vector<8x16x256xf32> to vector<8x16x128xf32>
    %68 = vector.shape_cast %6 : vector<8x128xf32> to vector<8x1x128xf32>
    %69 = vector.broadcast %68 : vector<8x1x128xf32> to vector<8x16x128xf32>
    %70 = arith.addf %67, %69 : vector<8x16x128xf32>
    %cst_43 = arith.constant 0.000000e+00 : f32
    %71 = vector.broadcast %cst_43 : f32 to vector<8x16x128xf32>
    %72 = arith.maximumf %70, %71 : vector<8x16x128xf32>
    %73 = arith.mulf %66, %72 : vector<8x16x128xf32>
    %74 = tpu.iota {dimensions = array<i32: 1>} : vector<8x16x128xi32>
    %c13_i32 = arith.constant 13 : i32
    %75 = vector.broadcast %c13_i32 : i32 to vector<8x16x128xi32>
    %76 = arith.cmpi slt, %74, %75 : vector<8x16x128xi32>
    %cst_44 = arith.constant -1.000000e+30 : f32
    %77 = vector.broadcast %cst_44 : f32 to vector<8x16x128xf32>
    %78 = arith.select %76, %73, %77 : vector<8x16x128xi1>, vector<8x16x128xf32>
    %cst_45 = arith.constant dense<0xFF800000> : vector<8x128xf32>
    %79 = vector.multi_reduction <maximumf>, %78, %cst_45 [1] : vector<8x16x128xf32> to vector<8x128xf32>
    %cst_46 = arith.constant 0.000000e+00 : f32
    %80 = vector.broadcast %cst_46 : f32 to vector<128x256xf32>
    %c0_47 = arith.constant 0 : index
    %c0_48 = arith.constant 0 : index
    %c0_49 = arith.constant 0 : index
    %81 = vector.load %arg9[%c0_47, %c0_48, %c0_49] : memref<5x32x256xf32, #tpu.memory_space<vmem>>, vector<1x32x256xf32>
    %82 = vector.shape_cast %81 : vector<1x32x256xf32> to vector<32x256xf32>
    %cst_50 = arith.constant dense<0.000000e+00> : vector<128x256xf32>
    %83 = tpu.matmul %0, %82, %cst_50 {dimension_numbers = #tpu.dot_dimension_numbers<[1], [0], [0], [1], [0, 0, 1, 1], [], []>} : vector<128x32xf32>, vector<32x256xf32>, vector<128x256xf32> -> vector<128x256xf32>
    %84 = arith.addf %80, %83 : vector<128x256xf32>
    %c1_51 = arith.constant 1 : index
    %c0_52 = arith.constant 0 : index
    %c0_53 = arith.constant 0 : index
    %85 = vector.load %arg9[%c1_51, %c0_52, %c0_53] : memref<5x32x256xf32, #tpu.memory_space<vmem>>, vector<1x32x256xf32>
    %86 = vector.shape_cast %85 : vector<1x32x256xf32> to vector<32x256xf32>
    %cst_54 = arith.constant dense<0.000000e+00> : vector<128x256xf32>
    %87 = tpu.matmul %0, %86, %cst_54 {dimension_numbers = #tpu.dot_dimension_numbers<[1], [0], [0], [1], [0, 0, 1, 1], [], []>} : vector<128x32xf32>, vector<32x256xf32>, vector<128x256xf32> -> vector<128x256xf32>
    %c127_i32_55 = arith.constant 127 : i32
    %88 = tpu.dynamic_rotate %87 by %c127_i32_55 dim 0 : vector<128x256xf32>, i32 -> vector<128x256xf32>
    %89 = arith.addf %84, %88 : vector<128x256xf32>
    %c2_56 = arith.constant 2 : index
    %c0_57 = arith.constant 0 : index
    %c0_58 = arith.constant 0 : index
    %90 = vector.load %arg9[%c2_56, %c0_57, %c0_58] : memref<5x32x256xf32, #tpu.memory_space<vmem>>, vector<1x32x256xf32>
    %91 = vector.shape_cast %90 : vector<1x32x256xf32> to vector<32x256xf32>
    %cst_59 = arith.constant dense<0.000000e+00> : vector<128x256xf32>
    %92 = tpu.matmul %0, %91, %cst_59 {dimension_numbers = #tpu.dot_dimension_numbers<[1], [0], [0], [1], [0, 0, 1, 1], [], []>} : vector<128x32xf32>, vector<32x256xf32>, vector<128x256xf32> -> vector<128x256xf32>
    %c126_i32_60 = arith.constant 126 : i32
    %93 = tpu.dynamic_rotate %92 by %c126_i32_60 dim 0 : vector<128x256xf32>, i32 -> vector<128x256xf32>
    %94 = arith.addf %89, %93 : vector<128x256xf32>
    %c3_61 = arith.constant 3 : index
    %c0_62 = arith.constant 0 : index
    %c0_63 = arith.constant 0 : index
    %95 = vector.load %arg9[%c3_61, %c0_62, %c0_63] : memref<5x32x256xf32, #tpu.memory_space<vmem>>, vector<1x32x256xf32>
    %96 = vector.shape_cast %95 : vector<1x32x256xf32> to vector<32x256xf32>
    %cst_64 = arith.constant dense<0.000000e+00> : vector<128x256xf32>
    %97 = tpu.matmul %0, %96, %cst_64 {dimension_numbers = #tpu.dot_dimension_numbers<[1], [0], [0], [1], [0, 0, 1, 1], [], []>} : vector<128x32xf32>, vector<32x256xf32>, vector<128x256xf32> -> vector<128x256xf32>
    %c125_i32_65 = arith.constant 125 : i32
    %98 = tpu.dynamic_rotate %97 by %c125_i32_65 dim 0 : vector<128x256xf32>, i32 -> vector<128x256xf32>
    %99 = arith.addf %94, %98 : vector<128x256xf32>
    %c4 = arith.constant 4 : index
    %c0_66 = arith.constant 0 : index
    %c0_67 = arith.constant 0 : index
    %100 = vector.load %arg9[%c4, %c0_66, %c0_67] : memref<5x32x256xf32, #tpu.memory_space<vmem>>, vector<1x32x256xf32>
    %101 = vector.shape_cast %100 : vector<1x32x256xf32> to vector<32x256xf32>
    %cst_68 = arith.constant dense<0.000000e+00> : vector<128x256xf32>
    %102 = tpu.matmul %0, %101, %cst_68 {dimension_numbers = #tpu.dot_dimension_numbers<[1], [0], [0], [1], [0, 0, 1, 1], [], []>} : vector<128x32xf32>, vector<32x256xf32>, vector<128x256xf32> -> vector<128x256xf32>
    %c124_i32 = arith.constant 124 : i32
    %103 = tpu.dynamic_rotate %102 by %c124_i32 dim 0 : vector<128x256xf32>, i32 -> vector<128x256xf32>
    %104 = arith.addf %99, %103 : vector<128x256xf32>
    %c0_69 = arith.constant 0 : index
    %c0_70 = arith.constant 0 : index
    %105 = vector.load %arg10[%c0_69, %c0_70] : memref<1x256xf32, #tpu.memory_space<vmem>>, vector<1x256xf32>
    %106 = vector.broadcast %105 : vector<1x256xf32> to vector<128x256xf32>
    %107 = arith.addf %104, %106 : vector<128x256xf32>
    %108 = vector.shape_cast %107 : vector<128x256xf32> to vector<8x16x256xf32>
    %109 = vector.extract_strided_slice %108 {offsets = [0, 0, 0], sizes = [8, 16, 128], strides = [1, 1, 1]} : vector<8x16x256xf32> to vector<8x16x128xf32>
    %110 = math.tanh %109 : vector<8x16x128xf32>
    %111 = vector.extract_strided_slice %108 {offsets = [0, 0, 128], sizes = [8, 16, 128], strides = [1, 1, 1]} : vector<8x16x256xf32> to vector<8x16x128xf32>
    %112 = vector.shape_cast %6 : vector<8x128xf32> to vector<8x1x128xf32>
    %113 = vector.broadcast %112 : vector<8x1x128xf32> to vector<8x16x128xf32>
    %114 = arith.addf %111, %113 : vector<8x16x128xf32>
    %cst_71 = arith.constant 0.000000e+00 : f32
    %115 = vector.broadcast %cst_71 : f32 to vector<8x16x128xf32>
    %116 = arith.maximumf %114, %115 : vector<8x16x128xf32>
    %117 = arith.mulf %110, %116 : vector<8x16x128xf32>
    %118 = tpu.iota {dimensions = array<i32: 1>} : vector<8x16x128xi32>
    %c12_i32 = arith.constant 12 : i32
    %119 = vector.broadcast %c12_i32 : i32 to vector<8x16x128xi32>
    %120 = arith.cmpi slt, %118, %119 : vector<8x16x128xi32>
    %cst_72 = arith.constant -1.000000e+30 : f32
    %121 = vector.broadcast %cst_72 : f32 to vector<8x16x128xf32>
    %122 = arith.select %120, %117, %121 : vector<8x16x128xi1>, vector<8x16x128xf32>
    %cst_73 = arith.constant dense<0xFF800000> : vector<8x128xf32>
    %123 = vector.multi_reduction <maximumf>, %122, %cst_73 [1] : vector<8x16x128xf32> to vector<8x128xf32>
    %124 = tpu.concatenate %40, %79, %123 in 1 : vector<8x128xf32>, vector<8x128xf32>, vector<8x128xf32> -> vector<8x384xf32>
    %c0_74 = arith.constant 0 : index
    %c0_75 = arith.constant 0 : index
    %125 = vector.load %arg11[%c0_74, %c0_75] : memref<384x128xf32, #tpu.memory_space<vmem>>, vector<384x128xf32>
    %cst_76 = arith.constant dense<0.000000e+00> : vector<8x128xf32>
    %126 = tpu.matmul %124, %125, %cst_76 {dimension_numbers = #tpu.dot_dimension_numbers<[1], [0], [0], [1], [0, 0, 1, 1], [], []>} : vector<8x384xf32>, vector<384x128xf32>, vector<8x128xf32> -> vector<8x128xf32>
    %c0_77 = arith.constant 0 : index
    %c0_78 = arith.constant 0 : index
    %127 = vector.load %arg12[%c0_77, %c0_78] : memref<1x128xf32, #tpu.memory_space<vmem>>, vector<1x128xf32>
    %128 = vector.broadcast %127 : vector<1x128xf32> to vector<8x128xf32>
    %129 = arith.addf %126, %128 : vector<8x128xf32>
    %c0_79 = arith.constant 0 : index
    %c0_80 = arith.constant 0 : index
    %130 = vector.load %arg13[%c0_79, %c0_80] : memref<8x128xf32, #tpu.memory_space<vmem>>, vector<8x128xf32>
    tpu.vector_store %arg13[%c0_79, %c0_80], %129 {strides = array<i32>} : memref<8x128xf32, #tpu.memory_space<vmem>>, vector<8x128xf32>,
    return
  }
  func.func @transform_0(%arg0: i32) -> (i32, i32) {
    %c0_i32 = arith.constant 0 : i32
    %c0_i32_0 = arith.constant 0 : i32
    return %arg0, %c0_i32 : i32, i32
  }
  func.func @transform_1(%arg0: i32) -> (i32, i32) {
    %c0_i32 = arith.constant 0 : i32
    %c0_i32_0 = arith.constant 0 : i32
    return %arg0, %c0_i32 : i32, i32
  }
  func.func @transform_2(%arg0: i32) -> (i32, i32) {
    %c0_i32 = arith.constant 0 : i32
    %c0_i32_0 = arith.constant 0 : i32
    %c0_i32_1 = arith.constant 0 : i32
    return %c0_i32, %c0_i32_0 : i32, i32
  }
  func.func @transform_3(%arg0: i32) -> (i32, i32) {
    %c0_i32 = arith.constant 0 : i32
    %c0_i32_0 = arith.constant 0 : i32
    %c0_i32_1 = arith.constant 0 : i32
    return %c0_i32, %c0_i32_0 : i32, i32
  }
  func.func @transform_4(%arg0: i32) -> (i32, i32, i32) {
    %c0_i32 = arith.constant 0 : i32
    %c0_i32_0 = arith.constant 0 : i32
    %c0_i32_1 = arith.constant 0 : i32
    %c0_i32_2 = arith.constant 0 : i32
    return %c0_i32, %c0_i32_0, %c0_i32_1 : i32, i32, i32
  }
  func.func @transform_5(%arg0: i32) -> (i32, i32) {
    %c0_i32 = arith.constant 0 : i32
    %c0_i32_0 = arith.constant 0 : i32
    %c0_i32_1 = arith.constant 0 : i32
    return %c0_i32, %c0_i32_0 : i32, i32
  }
  func.func @transform_6(%arg0: i32) -> (i32, i32, i32) {
    %c0_i32 = arith.constant 0 : i32
    %c0_i32_0 = arith.constant 0 : i32
    %c0_i32_1 = arith.constant 0 : i32
    %c0_i32_2 = arith.constant 0 : i32
    return %c0_i32, %c0_i32_0, %c0_i32_1 : i32, i32, i32
  }
  func.func @transform_7(%arg0: i32) -> (i32, i32) {
    %c0_i32 = arith.constant 0 : i32
    %c0_i32_0 = arith.constant 0 : i32
    %c0_i32_1 = arith.constant 0 : i32
    return %c0_i32, %c0_i32_0 : i32, i32
  }
  func.func @transform_8(%arg0: i32) -> (i32, i32, i32) {
    %c0_i32 = arith.constant 0 : i32
    %c0_i32_0 = arith.constant 0 : i32
    %c0_i32_1 = arith.constant 0 : i32
    %c0_i32_2 = arith.constant 0 : i32
    return %c0_i32, %c0_i32_0, %c0_i32_1 : i32, i32, i32
  }
  func.func @transform_9(%arg0: i32) -> (i32, i32) {
    %c0_i32 = arith.constant 0 : i32
    %c0_i32_0 = arith.constant 0 : i32
    %c0_i32_1 = arith.constant 0 : i32
    return %c0_i32, %c0_i32_0 : i32, i32
  }
  func.func @transform_10(%arg0: i32) -> (i32, i32) {
    %c0_i32 = arith.constant 0 : i32
    %c0_i32_0 = arith.constant 0 : i32
    %c0_i32_1 = arith.constant 0 : i32
    return %c0_i32, %c0_i32_0 : i32, i32
  }
  func.func @transform_11(%arg0: i32) -> (i32, i32) {
    %c0_i32 = arith.constant 0 : i32
    %c0_i32_0 = arith.constant 0 : i32
    %c0_i32_1 = arith.constant 0 : i32
    return %c0_i32, %c0_i32_0 : i32, i32
  }
  func.func @transform_12(%arg0: i32) -> (i32, i32) {
    %c0_i32 = arith.constant 0 : i32
    %c0_i32_0 = arith.constant 0 : i32
    return %arg0, %c0_i32 : i32, i32
  }
}

</mosaic_0001>

<llo_original>
// kernel: forward.1
$region0: #{forward.1}
  #allocation0 [shape = 'u32[]', space=smem, size = 0x4, offset = 0x4, fixed_abs, tag = 'smem constant byte address 0x4 - core index']
  #allocation1 [shape = 'u32[144,128]{1,0:T(1,128)}', space=vmem, size = 0x12000, scoped, tag = 'internal scratch']
  %s0 = inlined_call_operand.vmem [shape: f32[128,32], index: 0, kind: input, shape index: {}]
  %s1 = inlined_call_operand.vmem [shape: f32[8,32], index: 1, kind: input, shape index: {}]
  %s2 = inlined_call_operand.vmem [shape: f32[32,128], index: 2, kind: input, shape index: {}]
  %s3 = inlined_call_operand.vmem [shape: f32[1,128], index: 3, kind: input, shape index: {}]
  %s4 = inlined_call_operand.vmem [shape: f32[3,32,256], index: 4, kind: input, shape index: {}]
  %s5 = inlined_call_operand.vmem [shape: f32[1,256], index: 5, kind: input, shape index: {}]
  %s6 = inlined_call_operand.vmem [shape: f32[4,32,256], index: 6, kind: input, shape index: {}]
  %s7 = inlined_call_operand.vmem [shape: f32[1,256], index: 7, kind: input, shape index: {}]
  %s8 = inlined_call_operand.vmem [shape: f32[5,32,256], index: 8, kind: input, shape index: {}]
  %s9 = inlined_call_operand.vmem [shape: f32[1,256], index: 9, kind: input, shape index: {}]
  %s10 = inlined_call_operand.vmem [shape: f32[384,128], index: 10, kind: input, shape index: {}]
  %s11 = inlined_call_operand.vmem [shape: f32[1,128], index: 11, kind: input, shape index: {}]
  %s12 = inlined_call_operand.vmem [shape: f32[8,128], index: 12, kind: output, shape index: {}]
  %s13 = sld [smem:[#allocation0]]
  $region58: #{forward.1} parent=0
    _
  %s15 = ssub.s32 1, %s13
  %s16 = scalar_select 0, %s15, %s13
  // Predicated region
  $region2: #{forward.1} parent=0 // pred_check
    _
  $region3: #{forward.1} parent=0 // pred_check_branch
    %18 = sbr.rel (0) target = $region5
  $region4: #{forward.1} parent=0 // pred_region
    _
  $region5: #{forward.1} parent=0 // pred_fallthru
    _
  // Predicated region
  $region6: #{forward.1} parent=0 // pred_check
    _
  $region7: #{forward.1} parent=0 // pred_check_branch
    %20 = sbr.rel (0) target = $region9
  $region8: #{forward.1} parent=0 // pred_region
    _
  $region9: #{forward.1} parent=0 // pred_fallthru
    _
  // Predicated region
  $region10: #{forward.1} parent=0 // pred_check
    _
  $region11: #{forward.1} parent=0 // pred_check_branch
    %22 = sbr.rel (0) target = $region13
  $region12: #{forward.1} parent=0 // pred_region
    _
  $region13: #{forward.1} parent=0 // pred_fallthru
    _
  // Predicated region
  $region14: #{forward.1} parent=0 // pred_check
    _
  $region15: #{forward.1} parent=0 // pred_check_branch
    %24 = sbr.rel (0) target = $region17
  $region16: #{forward.1} parent=0 // pred_region
    _
  $region17: #{forward.1} parent=0 // pred_fallthru
    _
  // Predicated region
  $region18: #{forward.1} parent=0 // pred_check
    _
  $region19: #{forward.1} parent=0 // pred_check_branch
    %26 = sbr.rel (0) target = $region21
  $region20: #{forward.1} parent=0 // pred_region
    _
  $region21: #{forward.1} parent=0 // pred_fallthru
    _
  // Predicated region
  $region22: #{forward.1} parent=0 // pred_check
    _
  $region23: #{forward.1} parent=0 // pred_check_branch
    %28 = sbr.rel (0) target = $region25
  $region24: #{forward.1} parent=0 // pred_region
    _
  $region25: #{forward.1} parent=0 // pred_fallthru
    _
  // Predicated region
  $region26: #{forward.1} parent=0 // pred_check
    _
  $region27: #{forward.1} parent=0 // pred_check_branch
    %30 = sbr.rel (0) target = $region29
  $region28: #{forward.1} parent=0 // pred_region
    _
  $region29: #{forward.1} parent=0 // pred_fallthru
    _
  // Predicated region
  $region30: #{forward.1} parent=0 // pred_check
    _
  $region31: #{forward.1} parent=0 // pred_check_branch
    %32 = sbr.rel (0) target = $region33
  $region32: #{forward.1} parent=0 // pred_region
    _
  $region33: #{forward.1} parent=0 // pred_fallthru
    _
  // Predicated region
  $region34: #{forward.1} parent=0 // pred_check
    _
  $region35: #{forward.1} parent=0 // pred_check_branch
    %34 = sbr.rel (0) target = $region37
  $region36: #{forward.1} parent=0 // pred_region
    _
  $region37: #{forward.1} parent=0 // pred_fallthru
    _
  // Predicated region
  $region38: #{forward.1} parent=0 // pred_check
    _
  $region39: #{forward.1} parent=0 // pred_check_branch
    %36 = sbr.rel (0) target = $region41
  $region40: #{forward.1} parent=0 // pred_region
    _
  $region41: #{forward.1} parent=0 // pred_fallthru
    _
  // Predicated region
  $region42: #{forward.1} parent=0 // pred_check
    _
  $region43: #{forward.1} parent=0 // pred_check_branch
    %38 = sbr.rel (0) target = $region45
  $region44: #{forward.1} parent=0 // pred_region
    _
  $region45: #{forward.1} parent=0 // pred_fallthru
    _
  // Predicated region
  $region46: #{forward.1} parent=0 // pred_check
    _
  $region47: #{forward.1} parent=0 // pred_check_branch
    %40 = sbr.rel (0) target = $region49
  $region48: #{forward.1} parent=0 // pred_region
    _
  $region49: #{forward.1} parent=0 // pred_fallthru
    _
  %v41 = vld [vmem:[%s0] sm:$0xff]
  %v42 = vld [vmem:[%s0 + $0x8] sm:$0xff]
  %v43 = vld [vmem:[%s0 + $0x10] sm:$0xff]
  %v44 = vld [vmem:[%s0 + $0x18] sm:$0xff]
  %v45 = vld [vmem:[%s0 + $0x20] sm:$0xff]
  %v46 = vld [vmem:[%s0 + $0x28] sm:$0xff]
  %v47 = vld [vmem:[%s0 + $0x30] sm:$0xff]
  %v48 = vld [vmem:[%s0 + $0x38] sm:$0xff]
  %v49 = vld [vmem:[%s0 + $0x40] sm:$0xff]
  %v50 = vld [vmem:[%s0 + $0x48] sm:$0xff]
  %v51 = vld [vmem:[%s0 + $0x50] sm:$0xff]
  %v52 = vld [vmem:[%s0 + $0x58] sm:$0xff]
  %v53 = vld [vmem:[%s0 + $0x60] sm:$0xff]
  %v54 = vld [vmem:[%s0 + $0x68] sm:$0xff]
  %v55 = vld [vmem:[%s0 + $0x70] sm:$0xff]
  %v56 = vld [vmem:[%s0 + $0x78] sm:$0xff]
  %v57 = vld [vmem:[%s1] sm:$0xff]
  %v58 = vld [vmem:[%s2] sm:$0xff]
  %v59 = vld [vmem:[%s2 + $0x8] sm:$0xff]
  %v60 = vld [vmem:[%s2 + $0x10] sm:$0xff]
  %v61 = vld [vmem:[%s2 + $0x18] sm:$0xff]
  %v62 = vld [vmem:[%s3] sm:$0x1]
  %v64 = vlaneseq
  %v65 = vshrl.u32 %v64, 7
  %v66 = vsub.s32 0, %v65
  %v67 = vrot.slane %v62, %v66
  %vm69 = vcmask 261120
  %v71 = vsel %vm69, %v57, 0
  %73 = vmatprep.subr.mxu0 0.0
  %74 = vmatpush1.msra.mxu0 %v58
  %75 = vmatprep.subr.mxu0 0.0
  %76 = vmatpush1.msra.mxu0 %v59
  %77 = vmatprep.subr.mxu0 0.0
  %78 = vmatpush1.msra.mxu0 %v60
  %79 = vmatprep.subr.mxu0 0.0
  %80 = vmatpush1.msra.mxu0 %v61
  %81 = vmatprep.subr.mxu0 0.0
  %82 = vmatpush1.msra.mxu0 0.0
  %83 = vmatprep.subr.mxu0 0.0
  %84 = vmatpush1.msra.mxu0 0.0
  %85 = vmatprep.subr.mxu0 0.0
  %86 = vmatpush1.msra.mxu0 0.0
  %87 = vmatprep.subr.mxu0 0.0
  %88 = vmatpush1.msra.mxu0 0.0
  %89 = vmatprep.subr.mxu0 0.0
  %90 = vmatpush1.msra.mxu0 0.0
  %91 = vmatprep.subr.mxu0 0.0
  %92 = vmatpush1.msra.mxu0 0.0
  %93 = vmatprep.subr.mxu0 0.0
  %94 = vmatpush1.msra.mxu0 0.0
  %95 = vmatprep.subr.mxu0 0.0
  %96 = vmatpush1.msra.mxu0 0.0
  %97 = vmatprep.subr.mxu0 0.0
  %98 = vmatpush1.msra.mxu0 0.0
  %99 = vmatprep.subr.mxu0 0.0
  %100 = vmatpush1.msra.mxu0 0.0
  %101 = vmatprep.subr.mxu0 0.0
  %102 = vmatpush1.msra.mxu0 0.0
  %103 = vmatprep.subr.mxu0 0.0
  %104 = vmatpush1.msra.mxu0 0.0
  %105 = vmatprep.subr.mxu0 0.0
  %106 = vmatpush1.msra.mxu0 0.0
  %107 = vmatprep.subr.mxu0 0.0
  %108 = vmatpush1.msra.mxu0 0.0
  %109 = vmatprep.subr.mxu0 0.0
  %110 = vmatpush1.msra.mxu0 0.0
  %111 = vmatprep.subr.mxu0 0.0
  %112 = vmatpush1.msra.mxu0 0.0
  %113 = vmatprep.subr.mxu0 0.0
  %114 = vmatpush1.msra.mxu0 0.0
  %115 = vmatprep.subr.mxu0 0.0
  %116 = vmatpush1.msra.mxu0 0.0
  %117 = vmatprep.subr.mxu0 0.0
  %118 = vmatpush1.msra.mxu0 0.0
  %119 = vmatprep.subr.mxu0 0.0
  %120 = vmatpush1.msra.mxu0 0.0
  %121 = vmatprep.subr.mxu0 0.0
  %122 = vmatpush1.msra.mxu0 0.0
  %123 = vmatprep.subr.mxu0 0.0
  %124 = vmatpush1.msra.mxu0 0.0
  %125 = vmatprep.subr.mxu0 0.0
  %126 = vmatpush1.msra.mxu0 0.0
  %127 = vmatprep.subr.mxu0 0.0
  %128 = vmatpush1.msra.mxu0 0.0
  %129 = vmatprep.subr.mxu0 0.0
  %130 = vmatpush1.msra.mxu0 0.0
  %131 = vmatprep.subr.mxu0 0.0
  %132 = vmatpush1.msra.mxu0 0.0
  %133 = vmatprep.subr.mxu0 0.0
  %134 = vmatpush1.msra.mxu0 0.0
  %135 = vmatprep.subr.mxu0 0.0
  %136 = vmatpush1.msra.mxu0 0.0
  %137 = vmatprep.mubr.f32.mxu0 0.0
  %138 = vmatmul.mubr.f32.gmra.mrb[0].mxu0 %v71
  %v139 = vpop.f32.mrb[0].mxu0
  %v140 = vadd.f32 %v67, %v139
  %v141 = vpop.f32.mrb[0].mxu0
  %142 = vdwg.mxu0
  %v143 = vld [vmem:[%s4] sm:$0xff]
  %v144 = vld [vmem:[%s4 + $0x8] sm:$0xff]
  %v145 = vld [vmem:[%s4 + $0x10] sm:$0xff]
  %v146 = vld [vmem:[%s4 + $0x18] sm:$0xff]
  %v147 = vld [vmem:[%s4 + $0x20] sm:$0xff]
  %v148 = vld [vmem:[%s4 + $0x28] sm:$0xff]
  %v149 = vld [vmem:[%s4 + $0x30] sm:$0xff]
  %v150 = vld [vmem:[%s4 + $0x38] sm:$0xff]
  %s151 = scalar_lea.vmem %s4, 64
  %v152 = vld [vmem:[%s151] sm:$0xff]
  %v153 = vld [vmem:[%s151 + $0x8] sm:$0xff]
  %v154 = vld [vmem:[%s151 + $0x10] sm:$0xff]
  %v155 = vld [vmem:[%s151 + $0x18] sm:$0xff]
  %v156 = vld [vmem:[%s151 + $0x20] sm:$0xff]
  %v157 = vld [vmem:[%s151 + $0x28] sm:$0xff]
  %v158 = vld [vmem:[%s151 + $0x30] sm:$0xff]
  %v159 = vld [vmem:[%s151 + $0x38] sm:$0xff]
  %v161 = vsel %vm69, %v41, 0
  %v164 = vsel %vm69, %v42, 0
  %v167 = vsel %vm69, %v43, 0
  %v170 = vsel %vm69, %v44, 0
  %v173 = vsel %vm69, %v45, 0
  %v176 = vsel %vm69, %v46, 0
  %v179 = vsel %vm69, %v47, 0
  %v182 = vsel %vm69, %v48, 0
  %v185 = vsel %vm69, %v49, 0
  %v188 = vsel %vm69, %v50, 0
  %v191 = vsel %vm69, %v51, 0
  %v194 = vsel %vm69, %v52, 0
  %v197 = vsel %vm69, %v53, 0
  %v200 = vsel %vm69, %v54, 0
  %v203 = vsel %vm69, %v55, 0
  %v206 = vsel %vm69, %v56, 0
  %208 = vmatprep.subr.mxu0 %v153
  %209 = vmatpush1.msra.mxu0 %v152
  %210 = vmatprep.subr.mxu0 %v155
  %211 = vmatpush1.msra.mxu0 %v154
  %212 = vmatprep.subr.mxu0 %v157
  %213 = vmatpush1.msra.mxu0 %v156
  %214 = vmatprep.subr.mxu0 %v159
  %215 = vmatpush1.msra.mxu0 %v158
  %216 = vmatprep.subr.mxu0 0.0
  %217 = vmatpush1.msra.mxu0 0.0
  %218 = vmatprep.subr.mxu0 0.0
  %219 = vmatpush1.msra.mxu0 0.0
  %220 = vmatprep.subr.mxu0 0.0
  %221 = vmatpush1.msra.mxu0 0.0
  %222 = vmatprep.subr.mxu0 0.0
  %223 = vmatpush1.msra.mxu0 0.0
  %224 = vmatprep.subr.mxu0 0.0
  %225 = vmatpush1.msra.mxu0 0.0
  %226 = vmatprep.subr.mxu0 0.0
  %227 = vmatpush1.msra.mxu0 0.0
  %228 = vmatprep.subr.mxu0 0.0
  %229 = vmatpush1.msra.mxu0 0.0
  %230 = vmatprep.subr.mxu0 0.0
  %231 = vmatpush1.msra.mxu0 0.0
  %232 = vmatprep.subr.mxu0 0.0
  %233 = vmatpush1.msra.mxu0 0.0
  %234 = vmatprep.subr.mxu0 0.0
  %235 = vmatpush1.msra.mxu0 0.0
  %236 = vmatprep.subr.mxu0 0.0
  %237 = vmatpush1.msra.mxu0 0.0
  %238 = vmatprep.subr.mxu0 0.0
  %239 = vmatpush1.msra.mxu0 0.0
  %240 = vmatprep.subr.mxu0 0.0
  %241 = vmatpush1.msra.mxu0 0.0
  %242 = vmatprep.subr.mxu0 0.0
  %243 = vmatpush1.msra.mxu0 0.0
  %244 = vmatprep.subr.mxu0 0.0
  %245 = vmatpush1.msra.mxu0 0.0
  %246 = vmatprep.subr.mxu0 0.0
  %247 = vmatpush1.msra.mxu0 0.0
  %248 = vmatprep.subr.mxu0 0.0
  %249 = vmatpush1.msra.mxu0 0.0
  %250 = vmatprep.subr.mxu0 0.0
  %251 = vmatpush1.msra.mxu0 0.0
  %252 = vmatprep.subr.mxu0 0.0
  %253 = vmatpush1.msra.mxu0 0.0
  %254 = vmatprep.subr.mxu0 0.0
  %255 = vmatpush1.msra.mxu0 0.0
  %256 = vmatprep.subr.mxu0 0.0
  %257 = vmatpush1.msra.mxu0 0.0
  %258 = vmatprep.subr.mxu0 0.0
  %259 = vmatpush1.msra.mxu0 0.0
  %260 = vmatprep.subr.mxu0 0.0
  %261 = vmatpush1.msra.mxu0 0.0
  %262 = vmatprep.subr.mxu0 0.0
  %263 = vmatpush1.msra.mxu0 0.0
  %264 = vmatprep.subr.mxu0 0.0
  %265 = vmatpush1.msra.mxu0 0.0
  %266 = vmatprep.subr.mxu0 0.0
  %267 = vmatpush1.msra.mxu0 0.0
  %268 = vmatprep.subr.mxu0 0.0
  %269 = vmatpush1.msra.mxu0 0.0
  %270 = vmatprep.subr.mxu0 0.0
  %271 = vmatpush1.msra.mxu0 0.0
  %272 = vmatprep.mubr.f32.mxu0 0.0
  %273 = vmatmul.mubr.f32.gmra.mrb[0].mxu0 %v161
  %v274 = vpop.f32.mrb[0].mxu0
  %v275 = vadd.f32 0.0, %v274
  %v276 = vpop.f32.mrb[0].mxu0
  %v277 = vadd.f32 0.0, %v276
  %278 = vmatprep.mubr.f32.mxu0 0.0
  %279 = vmatmul.mubr.f32.gmra.mrb[0].mxu0 %v164
  %v280 = vpop.f32.mrb[0].mxu0
  %v281 = vadd.f32 0.0, %v280
  %v282 = vpop.f32.mrb[0].mxu0
  %v283 = vadd.f32 0.0, %v282
  %284 = vmatprep.mubr.f32.mxu0 0.0
  %285 = vmatmul.mubr.f32.gmra.mrb[0].mxu0 %v167
  %v286 = vpop.f32.mrb[0].mxu0
  %v287 = vadd.f32 0.0, %v286
  %v288 = vpop.f32.mrb[0].mxu0
  %v289 = vadd.f32 0.0, %v288
  %290 = vmatprep.mubr.f32.mxu0 0.0
  %291 = vmatmul.mubr.f32.gmra.mrb[0].mxu0 %v170
  %v292 = vpop.f32.mrb[0].mxu0
  %v293 = vadd.f32 0.0, %v292
  %v294 = vpop.f32.mrb[0].mxu0
  %v295 = vadd.f32 0.0, %v294
  %296 = vmatprep.mubr.f32.mxu0 0.0
  %297 = vmatmul.mubr.f32.gmra.mrb[0].mxu0 %v173
  %v298 = vpop.f32.mrb[0].mxu0
  %v299 = vadd.f32 0.0, %v298
  %v300 = vpop.f32.mrb[0].mxu0
  %v301 = vadd.f32 0.0, %v300
  %302 = vmatprep.mubr.f32.mxu0 0.0
  %303 = vmatmul.mubr.f32.gmra.mrb[0].mxu0 %v176
  %v304 = vpop.f32.mrb[0].mxu0
  %v305 = vadd.f32 0.0, %v304
  %v306 = vpop.f32.mrb[0].mxu0
  %v307 = vadd.f32 0.0, %v306
  %308 = vmatprep.mubr.f32.mxu0 0.0
  %309 = vmatmul.mubr.f32.gmra.mrb[0].mxu0 %v179
  %v310 = vpop.f32.mrb[0].mxu0
  %v311 = vadd.f32 0.0, %v310
  %v312 = vpop.f32.mrb[0].mxu0
  %v313 = vadd.f32 0.0, %v312
  %314 = vmatprep.mubr.f32.mxu0 0.0
  %315 = vmatmul.mubr.f32.gmra.mrb[0].mxu0 %v182
  %v316 = vpop.f32.mrb[0].mxu0
  %v317 = vadd.f32 0.0, %v316
  %v318 = vpop.f32.mrb[0].mxu0
  %v319 = vadd.f32 0.0, %v318
  %320 = vmatprep.mubr.f32.mxu0 0.0
  %321 = vmatmul.mubr.f32.gmra.mrb[0].mxu0 %v185
  %v322 = vpop.f32.mrb[0].mxu0
  %v323 = vadd.f32 0.0, %v322
  %v324 = vpop.f32.mrb[0].mxu0
  %v325 = vadd.f32 0.0, %v324
  %326 = vmatprep.mubr.f32.mxu0 0.0
  %327 = vmatmul.mubr.f32.gmra.mrb[0].mxu0 %v188
  %v328 = vpop.f32.mrb[0].mxu0
  %v329 = vadd.f32 0.0, %v328
  %v330 = vpop.f32.mrb[0].mxu0
  %v331 = vadd.f32 0.0, %v330
  %332 = vmatprep.mubr.f32.mxu0 0.0
  %333 = vmatmul.mubr.f32.gmra.mrb[0].mxu0 %v191
  %v334 = vpop.f32.mrb[0].mxu0
  %v335 = vadd.f32 0.0, %v334
  %v336 = vpop.f32.mrb[0].mxu0
  %v337 = vadd.f32 0.0, %v336
  %338 = vmatprep.mubr.f32.mxu0 0.0
  %339 = vmatmul.mubr.f32.gmra.mrb[0].mxu0 %v194
  %v340 = vpop.f32.mrb[0].mxu0
  %v341 = vadd.f32 0.0, %v340
  %v342 = vpop.f32.mrb[0].mxu0
  %v343 = vadd.f32 0.0, %v342
  %344 = vmatprep.mubr.f32.mxu0 0.0
  %345 = vmatmul.mubr.f32.gmra.mrb[0].mxu0 %v197
  %v346 = vpop.f32.mrb[0].mxu0
  %v347 = vadd.f32 0.0, %v346
  %v348 = vpop.f32.mrb[0].mxu0
  %v349 = vadd.f32 0.0, %v348
  %350 = vmatprep.mubr.f32.mxu0 0.0
  %351 = vmatmul.mubr.f32.gmra.mrb[0].mxu0 %v200
  %v352 = vpop.f32.mrb[0].mxu0
  %v353 = vadd.f32 0.0, %v352
  %v354 = vpop.f32.mrb[0].mxu0
  %v355 = vadd.f32 0.0, %v354
  %356 = vmatprep.mubr.f32.mxu0 0.0
  %357 = vmatmul.mubr.f32.gmra.mrb[0].mxu0 %v203
  %v358 = vpop.f32.mrb[0].mxu0
  %v359 = vadd.f32 0.0, %v358
  %v360 = vpop.f32.mrb[0].mxu0
  %v361 = vadd.f32 0.0, %v360
  %362 = vmatprep.mubr.f32.mxu0 0.0
  %363 = vmatmul.mubr.f32.gmra.mrb[0].mxu0 %v206
  %v364 = vpop.f32.mrb[0].mxu0
  %v365 = vadd.f32 0.0, %v364
  %v366 = vpop.f32.mrb[0].mxu0
  %v367 = vadd.f32 0.0, %v366
  %368 = vdwg.mxu0
  %v369 = vrot.slane %v275, 1
  %v370 = vrot.slane %v277, 1
  %v371 = vrot.slane %v281, 1
  %v372 = vrot.slane %v283, 1
  %v373 = vrot.slane %v287, 1
  %v374 = vrot.slane %v289, 1
  %v375 = vrot.slane %v293, 1
  %v376 = vrot.slane %v295, 1
  %v377 = vrot.slane %v299, 1
  %v378 = vrot.slane %v301, 1
  %v379 = vrot.slane %v305, 1
  %v380 = vrot.slane %v307, 1
  %v381 = vrot.slane %v311, 1
  %v382 = vrot.slane %v313, 1
  %v383 = vrot.slane %v317, 1
  %v384 = vrot.slane %v319, 1
  %v385 = vrot.slane %v323, 1
  %v386 = vrot.slane %v325, 1
  %v387 = vrot.slane %v329, 1
  %v388 = vrot.slane %v331, 1
  %v389 = vrot.slane %v335, 1
  %v390 = vrot.slane %v337, 1
  %v391 = vrot.slane %v341, 1
  %v392 = vrot.slane %v343, 1
  %v393 = vrot.slane %v347, 1
  %v394 = vrot.slane %v349, 1
  %v395 = vrot.slane %v353, 1
  %v396 = vrot.slane %v355, 1
  %v397 = vrot.slane %v359, 1
  %v398 = vrot.slane %v361, 1
  %v399 = vrot.slane %v365, 1
  %v400 = vrot.slane %v367, 1
  %v401 = vlaneseq
  %v402 = vshrl.u32 %v401, 7
  %vm403 = vcmp.lt.s32.totalorder %v402, 7
  %v404 = vsel %vm403, %v397, %v399
  %v405 = vsel %vm403, %v398, %v400
  %v406 = vsel %vm403, %v395, %v397
  %v407 = vsel %vm403, %v396, %v398
  %v408 = vsel %vm403, %v393, %v395
  %v409 = vsel %vm403, %v394, %v396
  %v410 = vsel %vm403, %v391, %v393
  %v411 = vsel %vm403, %v392, %v394
  %v412 = vsel %vm403, %v389, %v391
  %v413 = vsel %vm403, %v390, %v392
  %v414 = vsel %vm403, %v387, %v389
  %v415 = vsel %vm403, %v388, %v390
  %v416 = vsel %vm403, %v385, %v387
  %v417 = vsel %vm403, %v386, %v388
  %v418 = vsel %vm403, %v383, %v385
  %v419 = vsel %vm403, %v384, %v386
  %v420 = vsel %vm403, %v381, %v383
  %v421 = vsel %vm403, %v382, %v384
  %v422 = vsel %vm403, %v379, %v381
  %v423 = vsel %vm403, %v380, %v382
  %v424 = vsel %vm403, %v377, %v379
  %v425 = vsel %vm403, %v378, %v380
  %v426 = vsel %vm403, %v375, %v377
  %v427 = vsel %vm403, %v376, %v378
  %v428 = vsel %vm403, %v373, %v375
  %v429 = vsel %vm403, %v374, %v376
  %v430 = vsel %vm403, %v371, %v373
  %v431 = vsel %vm403, %v372, %v374
  %v432 = vsel %vm403, %v369, %v371
  %v433 = vsel %vm403, %v370, %v372
  %v434 = vsel %vm403, %v399, %v369
  %v435 = vsel %vm403, %v400, %v370
  %436 = vmatprep.subr.mxu0 %v144
  %437 = vmatpush1.msra.mxu0 %v143
  %438 = vmatprep.subr.mxu0 %v146
  %439 = vmatpush1.msra.mxu0 %v145
  %440 = vmatprep.subr.mxu0 %v148
  %441 = vmatpush1.msra.mxu0 %v147
  %442 = vmatprep.subr.mxu0 %v150
  %443 = vmatpush1.msra.mxu0 %v149
  %444 = vmatprep.subr.mxu0 0.0
  %445 = vmatpush1.msra.mxu0 0.0
  %446 = vmatprep.subr.mxu0 0.0
  %447 = vmatpush1.msra.mxu0 0.0
  %448 = vmatprep.subr.mxu0 0.0
  %449 = vmatpush1.msra.mxu0 0.0
  %450 = vmatprep.subr.mxu0 0.0
  %451 = vmatpush1.msra.mxu0 0.0
  %452 = vmatprep.subr.mxu0 0.0
  %453 = vmatpush1.msra.mxu0 0.0
  %454 = vmatprep.subr.mxu0 0.0
  %455 = vmatpush1.msra.mxu0 0.0
  %456 = vmatprep.subr.mxu0 0.0
  %457 = vmatpush1.msra.mxu0 0.0
  %458 = vmatprep.subr.mxu0 0.0
  %459 = vmatpush1.msra.mxu0 0.0
  %460 = vmatprep.subr.mxu0 0.0
  %461 = vmatpush1.msra.mxu0 0.0
  %462 = vmatprep.subr.mxu0 0.0
  %463 = vmatpush1.msra.mxu0 0.0
  %464 = vmatprep.subr.mxu0 0.0
  %465 = vmatpush1.msra.mxu0 0.0
  %466 = vmatprep.subr.mxu0 0.0
  %467 = vmatpush1.msra.mxu0 0.0
  %468 = vmatprep.subr.mxu0 0.0
  %469 = vmatpush1.msra.mxu0 0.0
  %470 = vmatprep.subr.mxu0 0.0
  %471 = vmatpush1.msra.mxu0 0.0
  %472 = vmatprep.subr.mxu0 0.0
  %473 = vmatpush1.msra.mxu0 0.0
  %474 = vmatprep.subr.mxu0 0.0
  %475 = vmatpush1.msra.mxu0 0.0
  %476 = vmatprep.subr.mxu0 0.0
  %477 = vmatpush1.msra.mxu0 0.0
  %478 = vmatprep.subr.mxu0 0.0
  %479 = vmatpush1.msra.mxu0 0.0
  %480 = vmatprep.subr.mxu0 0.0
  %481 = vmatpush1.msra.mxu0 0.0
  %482 = vmatprep.subr.mxu0 0.0
  %483 = vmatpush1.msra.mxu0 0.0
  %484 = vmatprep.subr.mxu0 0.0
  %485 = vmatpush1.msra.mxu0 0.0
  %486 = vmatprep.subr.mxu0 0.0
  %487 = vmatpush1.msra.mxu0 0.0
  %488 = vmatprep.subr.mxu0 0.0
  %489 = vmatpush1.msra.mxu0 0.0
  %490 = vmatprep.subr.mxu0 0.0
  %491 = vmatpush1.msra.mxu0 0.0
  %492 = vmatprep.subr.mxu0 0.0
  %493 = vmatpush1.msra.mxu0 0.0
  %494 = vmatprep.subr.mxu0 0.0
  %495 = vmatpush1.msra.mxu0 0.0
  %496 = vmatprep.subr.mxu0 0.0
  %497 = vmatpush1.msra.mxu0 0.0
  %498 = vmatprep.subr.mxu0 0.0
  %499 = vmatpush1.msra.mxu0 0.0
  %500 = vmatprep.mubr.f32.mxu0 0.0
  %501 = vmatmul.mubr.f32.gmra.mrb[0].mxu0 %v161
  %v502 = vpop.f32.mrb[0].mxu0
  %v503 = vadd.f32 %v432, %v502
  %v504 = vpop.f32.mrb[0].mxu0
  %v505 = vadd.f32 %v433, %v504
  %506 = vmatprep.mubr.f32.mxu0 0.0
  %507 = vmatmul.mubr.f32.gmra.mrb[0].mxu0 %v164
  %v508 = vpop.f32.mrb[0].mxu0
  %v509 = vadd.f32 %v430, %v508
  %v510 = vpop.f32.mrb[0].mxu0
  %v511 = vadd.f32 %v431, %v510
  %512 = vmatprep.mubr.f32.mxu0 0.0
  %513 = vmatmul.mubr.f32.gmra.mrb[0].mxu0 %v167
  %v514 = vpop.f32.mrb[0].mxu0
  %v515 = vadd.f32 %v428, %v514
  %v516 = vpop.f32.mrb[0].mxu0
  %v517 = vadd.f32 %v429, %v516
  %518 = vmatprep.mubr.f32.mxu0 0.0
  %519 = vmatmul.mubr.f32.gmra.mrb[0].mxu0 %v170
  %v520 = vpop.f32.mrb[0].mxu0
  %v521 = vadd.f32 %v426, %v520
  %v522 = vpop.f32.mrb[0].mxu0
  %v523 = vadd.f32 %v427, %v522
  %524 = vmatprep.mubr.f32.mxu0 0.0
  %525 = vmatmul.mubr.f32.gmra.mrb[0].mxu0 %v173
  %v526 = vpop.f32.mrb[0].mxu0
  %v527 = vadd.f32 %v424, %v526
  %v528 = vpop.f32.mrb[0].mxu0
  %v529 = vadd.f32 %v425, %v528
  %530 = vmatprep.mubr.f32.mxu0 0.0
  %531 = vmatmul.mubr.f32.gmra.mrb[0].mxu0 %v176
  %v532 = vpop.f32.mrb[0].mxu0
  %v533 = vadd.f32 %v422, %v532
  %v534 = vpop.f32.mrb[0].mxu0
  %v535 = vadd.f32 %v423, %v534
  %536 = vmatprep.mubr.f32.mxu0 0.0
  %537 = vmatmul.mubr.f32.gmra.mrb[0].mxu0 %v179
  %v538 = vpop.f32.mrb[0].mxu0
  %v539 = vadd.f32 %v420, %v538
  %v540 = vpop.f32.mrb[0].mxu0
  %v541 = vadd.f32 %v421, %v540
  %542 = vmatprep.mubr.f32.mxu0 0.0
  %543 = vmatmul.mubr.f32.gmra.mrb[0].mxu0 %v182
  %v544 = vpop.f32.mrb[0].mxu0
  %v545 = vadd.f32 %v418, %v544
  %v546 = vpop.f32.mrb[0].mxu0
  %v547 = vadd.f32 %v419, %v546
  %548 = vmatprep.mubr.f32.mxu0 0.0
  %549 = vmatmul.mubr.f32.gmra.mrb[0].mxu0 %v185
  %v550 = vpop.f32.mrb[0].mxu0
  %v551 = vadd.f32 %v416, %v550
  %v552 = vpop.f32.mrb[0].mxu0
  %v553 = vadd.f32 %v417, %v552
  %554 = vmatprep.mubr.f32.mxu0 0.0
  %555 = vmatmul.mubr.f32.gmra.mrb[0].mxu0 %v188
  %v556 = vpop.f32.mrb[0].mxu0
  %v557 = vadd.f32 %v414, %v556
  %v558 = vpop.f32.mrb[0].mxu0
  %v559 = vadd.f32 %v415, %v558
  %560 = vmatprep.mubr.f32.mxu0 0.0
  %561 = vmatmul.mubr.f32.gmra.mrb[0].mxu0 %v191
  %v562 = vpop.f32.mrb[0].mxu0
  %v563 = vadd.f32 %v412, %v562
  %v564 = vpop.f32.mrb[0].mxu0
  %v565 = vadd.f32 %v413, %v564
  %566 = vmatprep.mubr.f32.mxu0 0.0
  %567 = vmatmul.mubr.f32.gmra.mrb[0].mxu0 %v194
  %v568 = vpop.f32.mrb[0].mxu0
  %v569 = vadd.f32 %v410, %v568
  %v570 = vpop.f32.mrb[0].mxu0
  %v571 = vadd.f32 %v411, %v570
  %572 = vmatprep.mubr.f32.mxu0 0.0
  %573 = vmatmul.mubr.f32.gmra.mrb[0].mxu0 %v197
  %v574 = vpop.f32.mrb[0].mxu0
  %v575 = vadd.f32 %v408, %v574
  %v576 = vpop.f32.mrb[0].mxu0
  %v577 = vadd.f32 %v409, %v576
  %578 = vmatprep.mubr.f32.mxu0 0.0
  %579 = vmatmul.mubr.f32.gmra.mrb[0].mxu0 %v200
  %v580 = vpop.f32.mrb[0].mxu0
  %v581 = vadd.f32 %v406, %v580
  %v582 = vpop.f32.mrb[0].mxu0
  %v583 = vadd.f32 %v407, %v582
  %584 = vmatprep.mubr.f32.mxu0 0.0
  %585 = vmatmul.mubr.f32.gmra.mrb[0].mxu0 %v203
  %v586 = vpop.f32.mrb[0].mxu0
  %v587 = vadd.f32 %v404, %v586
  %v588 = vpop.f32.mrb[0].mxu0
  %v589 = vadd.f32 %v405, %v588
  %590 = vmatprep.mubr.f32.mxu0 0.0
  %591 = vmatmul.mubr.f32.gmra.mrb[0].mxu0 %v206
  %v592 = vpop.f32.mrb[0].mxu0
  %v593 = vadd.f32 %v434, %v592
  %v594 = vpop.f32.mrb[0].mxu0
  %v595 = vadd.f32 %v435, %v594
  %596 = vdwg.mxu0
  %s597 = scalar_lea.vmem %s4, 128
  %v598 = vld [vmem:[%s597] sm:$0xff]
  %v599 = vld [vmem:[%s597 + $0x8] sm:$0xff]
  %v600 = vld [vmem:[%s597 + $0x10] sm:$0xff]
  %v601 = vld [vmem:[%s597 + $0x18] sm:$0xff]
  %v602 = vld [vmem:[%s597 + $0x20] sm:$0xff]
  %v603 = vld [vmem:[%s597 + $0x28] sm:$0xff]
  %v604 = vld [vmem:[%s597 + $0x30] sm:$0xff]
  %v605 = vld [vmem:[%s597 + $0x38] sm:$0xff]
  %606 = vmatprep.subr.mxu0 %v599
  %607 = vmatpush1.msra.mxu0 %v598
  %608 = vmatprep.subr.mxu0 %v601
  %609 = vmatpush1.msra.mxu0 %v600
  %610 = vmatprep.subr.mxu0 %v603
  %611 = vmatpush1.msra.mxu0 %v602
  %612 = vmatprep.subr.mxu0 %v605
  %613 = vmatpush1.msra.mxu0 %v604
  %614 = vmatprep.subr.mxu0 0.0
  %615 = vmatpush1.msra.mxu0 0.0
  %616 = vmatprep.subr.mxu0 0.0
  %617 = vmatpush1.msra.mxu0 0.0
  %618 = vmatprep.subr.mxu0 0.0
  %619 = vmatpush1.msra.mxu0 0.0
  %620 = vmatprep.subr.mxu0 0.0
  %621 = vmatpush1.msra.mxu0 0.0
  %622 = vmatprep.subr.mxu0 0.0
  %623 = vmatpush1.msra.mxu0 0.0
  %624 = vmatprep.subr.mxu0 0.0
  %625 = vmatpush1.msra.mxu0 0.0
  %626 = vmatprep.subr.mxu0 0.0
  %627 = vmatpush1.msra.mxu0 0.0
  %628 = vmatprep.subr.mxu0 0.0
  %629 = vmatpush1.msra.mxu0 0.0
  %630 = vmatprep.subr.mxu0 0.0
  %631 = vmatpush1.msra.mxu0 0.0
  %632 = vmatprep.subr.mxu0 0.0
  %633 = vmatpush1.msra.mxu0 0.0
  %634 = vmatprep.subr.mxu0 0.0
  %635 = vmatpush1.msra.mxu0 0.0
  %636 = vmatprep.subr.mxu0 0.0
  %637 = vmatpush1.msra.mxu0 0.0
  %638 = vmatprep.subr.mxu0 0.0
  %639 = vmatpush1.msra.mxu0 0.0
  %640 = vmatprep.subr.mxu0 0.0
  %641 = vmatpush1.msra.mxu0 0.0
  %642 = vmatprep.subr.mxu0 0.0
  %643 = vmatpush1.msra.mxu0 0.0
  %644 = vmatprep.subr.mxu0 0.0
  %645 = vmatpush1.msra.mxu0 0.0
  %646 = vmatprep.subr.mxu0 0.0
  %647 = vmatpush1.msra.mxu0 0.0
  %648 = vmatprep.subr.mxu0 0.0
  %649 = vmatpush1.msra.mxu0 0.0
  %650 = vmatprep.subr.mxu0 0.0
  %651 = vmatpush1.msra.mxu0 0.0
  %652 = vmatprep.subr.mxu0 0.0
  %653 = vmatpush1.msra.mxu0 0.0
  %654 = vmatprep.subr.mxu0 0.0
  %655 = vmatpush1.msra.mxu0 0.0
  %656 = vmatprep.subr.mxu0 0.0
  %657 = vmatpush1.msra.mxu0 0.0
  %658 = vmatprep.subr.mxu0 0.0
  %659 = vmatpush1.msra.mxu0 0.0
  %660 = vmatprep.subr.mxu0 0.0
  %661 = vmatpush1.msra.mxu0 0.0
  %662 = vmatprep.subr.mxu0 0.0
  %663 = vmatpush1.msra.mxu0 0.0
  %664 = vmatprep.subr.mxu0 0.0
  %665 = vmatpush1.msra.mxu0 0.0
  %666 = vmatprep.subr.mxu0 0.0
  %667 = vmatpush1.msra.mxu0 0.0
  %668 = vmatprep.subr.mxu0 0.0
  %669 = vmatpush1.msra.mxu0 0.0
  %670 = vmatprep.mubr.f32.mxu0 0.0
  %671 = vmatmul.mubr.f32.gmra.mrb[0].mxu0 %v161
  %v672 = vpop.f32.mrb[0].mxu0
  %v673 = vadd.f32 0.0, %v672
  %v674 = vpop.f32.mrb[0].mxu0
  %v675 = vadd.f32 0.0, %v674
  %676 = vmatprep.mubr.f32.mxu0 0.0
  %677 = vmatmul.mubr.f32.gmra.mrb[0].mxu0 %v164
  %v678 = vpop.f32.mrb[0].mxu0
  %v679 = vadd.f32 0.0, %v678
  %v680 = vpop.f32.mrb[0].mxu0
  %v681 = vadd.f32 0.0, %v680
  %682 = vmatprep.mubr.f32.mxu0 0.0
  %683 = vmatmul.mubr.f32.gmra.mrb[0].mxu0 %v167
  %v684 = vpop.f32.mrb[0].mxu0
  %v685 = vadd.f32 0.0, %v684
  %v686 = vpop.f32.mrb[0].mxu0
  %v687 = vadd.f32 0.0, %v686
  %688 = vmatprep.mubr.f32.mxu0 0.0
  %689 = vmatmul.mubr.f32.gmra.mrb[0].mxu0 %v170
  %v690 = vpop.f32.mrb[0].mxu0
  %v691 = vadd.f32 0.0, %v690
  %v692 = vpop.f32.mrb[0].mxu0
  %v693 = vadd.f32 0.0, %v692
  %694 = vmatprep.mubr.f32.mxu0 0.0
  %695 = vmatmul.mubr.f32.gmra.mrb[0].mxu0 %v173
  %v696 = vpop.f32.mrb[0].mxu0
  %v697 = vadd.f32 0.0, %v696
  %v698 = vpop.f32.mrb[0].mxu0
  %v699 = vadd.f32 0.0, %v698
  %700 = vmatprep.mubr.f32.mxu0 0.0
  %701 = vmatmul.mubr.f32.gmra.mrb[0].mxu0 %v176
  %v702 = vpop.f32.mrb[0].mxu0
  %v703 = vadd.f32 0.0, %v702
  %v704 = vpop.f32.mrb[0].mxu0
  %v705 = vadd.f32 0.0, %v704
  %706 = vmatprep.mubr.f32.mxu0 0.0
  %707 = vmatmul.mubr.f32.gmra.mrb[0].mxu0 %v179
  %v708 = vpop.f32.mrb[0].mxu0
  %v709 = vadd.f32 0.0, %v708
  %v710 = vpop.f32.mrb[0].mxu0
  %v711 = vadd.f32 0.0, %v710
  %712 = vmatprep.mubr.f32.mxu0 0.0
  %713 = vmatmul.mubr.f32.gmra.mrb[0].mxu0 %v182
  %v714 = vpop.f32.mrb[0].mxu0
  %v715 = vadd.f32 0.0, %v714
  %v716 = vpop.f32.mrb[0].mxu0
  %v717 = vadd.f32 0.0, %v716
  %718 = vmatprep.mubr.f32.mxu0 0.0
  %719 = vmatmul.mubr.f32.gmra.mrb[0].mxu0 %v185
  %v720 = vpop.f32.mrb[0].mxu0
  %v721 = vadd.f32 0.0, %v720
  %v722 = vpop.f32.mrb[0].mxu0
  %v723 = vadd.f32 0.0, %v722
  %724 = vmatprep.mubr.f32.mxu0 0.0
  %725 = vmatmul.mubr.f32.gmra.mrb[0].mxu0 %v188
  %v726 = vpop.f32.mrb[0].mxu0
  %v727 = vadd.f32 0.0, %v726
  %v728 = vpop.f32.mrb[0].mxu0
  %v729 = vadd.f32 0.0, %v728
  %730 = vmatprep.mubr.f32.mxu0 0.0
  %731 = vmatmul.mubr.f32.gmra.mrb[0].mxu0 %v191
  %v732 = vpop.f32.mrb[0].mxu0
  %v733 = vadd.f32 0.0, %v732
  %v734 = vpop.f32.mrb[0].mxu0
  %v735 = vadd.f32 0.0, %v734
  %736 = vmatprep.mubr.f32.mxu0 0.0
  %737 = vmatmul.mubr.f32.gmra.mrb[0].mxu0 %v194
  %v738 = vpop.f32.mrb[0].mxu0
  %v739 = vadd.f32 0.0, %v738
  %v740 = vpop.f32.mrb[0].mxu0
  %v741 = vadd.f32 0.0, %v740
  %742 = vmatprep.mubr.f32.mxu0 0.0
  %743 = vmatmul.mubr.f32.gmra.mrb[0].mxu0 %v197
  %v744 = vpop.f32.mrb[0].mxu0
  %v745 = vadd.f32 0.0, %v744
  %v746 = vpop.f32.mrb[0].mxu0
  %v747 = vadd.f32 0.0, %v746
  %748 = vmatprep.mubr.f32.mxu0 0.0
  %749 = vmatmul.mubr.f32.gmra.mrb[0].mxu0 %v200
  %v750 = vpop.f32.mrb[0].mxu0
  %v751 = vadd.f32 0.0, %v750
  %v752 = vpop.f32.mrb[0].mxu0
  %v753 = vadd.f32 0.0, %v752
  %754 = vmatprep.mubr.f32.mxu0 0.0
  %755 = vmatmul.mubr.f32.gmra.mrb[0].mxu0 %v203
  %v756 = vpop.f32.mrb[0].mxu0
  %v757 = vadd.f32 0.0, %v756
  %v758 = vpop.f32.mrb[0].mxu0
  %v759 = vadd.f32 0.0, %v758
  %760 = vmatprep.mubr.f32.mxu0 0.0
  %761 = vmatmul.mubr.f32.gmra.mrb[0].mxu0 %v206
  %v762 = vpop.f32.mrb[0].mxu0
  %v763 = vadd.f32 0.0, %v762
  %v764 = vpop.f32.mrb[0].mxu0
  %v765 = vadd.f32 0.0, %v764
  %766 = vdwg.mxu0
  %v767 = vrot.slane %v673, 2
  %v768 = vrot.slane %v675, 2
  %v769 = vrot.slane %v679, 2
  %v770 = vrot.slane %v681, 2
  %v771 = vrot.slane %v685, 2
  %v772 = vrot.slane %v687, 2
  %v773 = vrot.slane %v691, 2
  %v774 = vrot.slane %v693, 2
  %v775 = vrot.slane %v697, 2
  %v776 = vrot.slane %v699, 2
  %v777 = vrot.slane %v703, 2
  %v778 = vrot.slane %v705, 2
  %v779 = vrot.slane %v709, 2
  %v780 = vrot.slane %v711, 2
  %v781 = vrot.slane %v715, 2
  %v782 = vrot.slane %v717, 2
  %v783 = vrot.slane %v721, 2
  %v784 = vrot.slane %v723, 2
  %v785 = vrot.slane %v727, 2
  %v786 = vrot.slane %v729, 2
  %v787 = vrot.slane %v733, 2
  %v788 = vrot.slane %v735, 2
  %v789 = vrot.slane %v739, 2
  %v790 = vrot.slane %v741, 2
  %v791 = vrot.slane %v745, 2
  %v792 = vrot.slane %v747, 2
  %v793 = vrot.slane %v751, 2
  %v794 = vrot.slane %v753, 2
  %v795 = vrot.slane %v757, 2
  %v796 = vrot.slane %v759, 2
  %v797 = vrot.slane %v763, 2
  %v798 = vrot.slane %v765, 2
  %vm799 = vcmp.lt.s32.totalorder %v402, 6
  %v800 = vsel %vm799, %v795, %v797
  %v801 = vsel %vm799, %v796, %v798
  %v802 = vsel %vm799, %v793, %v795
  %v803 = vsel %vm799, %v794, %v796
  %v804 = vsel %vm799, %v791, %v793
  %v805 = vsel %vm799, %v792, %v794
  %v806 = vsel %vm799, %v789, %v791
  %v807 = vsel %vm799, %v790, %v792
  %v808 = vsel %vm799, %v787, %v789
  %v809 = vsel %vm799, %v788, %v790
  %v810 = vsel %vm799, %v785, %v787
  %v811 = vsel %vm799, %v786, %v788
  %v812 = vsel %vm799, %v783, %v785
  %v813 = vsel %vm799, %v784, %v786
  %v814 = vsel %vm799, %v781, %v783
  %v815 = vsel %vm799, %v782, %v784
  %v816 = vsel %vm799, %v779, %v781
  %v817 = vsel %vm799, %v780, %v782
  %v818 = vsel %vm799, %v777, %v779
  %v819 = vsel %vm799, %v778, %v780
  %v820 = vsel %vm799, %v775, %v777
  %v821 = vsel %vm799, %v776, %v778
  %v822 = vsel %vm799, %v773, %v775
  %v823 = vsel %vm799, %v774, %v776
  %v824 = vsel %vm799, %v771, %v773
  %v825 = vsel %vm799, %v772, %v774
  %v826 = vsel %vm799, %v769, %v771
  %v827 = vsel %vm799, %v770, %v772
  %v828 = vsel %vm799, %v767, %v769
  %v829 = vsel %vm799, %v768, %v770
  %v830 = vsel %vm799, %v797, %v767
  %v831 = vsel %vm799, %v798, %v768
  %v832 = vadd.f32 %v503, %v828
  %v833 = vadd.f32 %v505, %v829
  %v834 = vadd.f32 %v509, %v826
  %v835 = vadd.f32 %v511, %v827
  %v836 = vadd.f32 %v515, %v824
  %v837 = vadd.f32 %v517, %v825
  %v838 = vadd.f32 %v521, %v822
  %v839 = vadd.f32 %v523, %v823
  %v840 = vadd.f32 %v527, %v820
  %v841 = vadd.f32 %v529, %v821
  %v842 = vadd.f32 %v533, %v818
  %v843 = vadd.f32 %v535, %v819
  %v844 = vadd.f32 %v539, %v816
  %v845 = vadd.f32 %v541, %v817
  %v846 = vadd.f32 %v545, %v814
  %v847 = vadd.f32 %v547, %v815
  %v848 = vadd.f32 %v551, %v812
  %v849 = vadd.f32 %v553, %v813
  %v850 = vadd.f32 %v557, %v810
  %v851 = vadd.f32 %v559, %v811
  %v852 = vadd.f32 %v563, %v808
  %v853 = vadd.f32 %v565, %v809
  %v854 = vadd.f32 %v569, %v806
  %v855 = vadd.f32 %v571, %v807
  %v856 = vadd.f32 %v575, %v804
  %v857 = vadd.f32 %v577, %v805
  %v858 = vadd.f32 %v581, %v802
  %v859 = vadd.f32 %v583, %v803
  %v860 = vadd.f32 %v587, %v800
  %v861 = vadd.f32 %v589, %v801
  %v862 = vadd.f32 %v593, %v830
  %v863 = vadd.f32 %v595, %v831
  %v864 = vld [vmem:[%s5] sm:$0x3]
  %v866 = vlaneseq
  %v867 = vshrl.u32 %v866, 7
  %v868 = vsub.s32 0, %v867
  %v869 = vrot.slane %v864, %v868
  %v870 = vlaneseq
  %v871 = vshrl.u32 %v870, 7
  %v872 = vsub.s32 1, %v871
  %v873 = vrot.slane %v864, %v872
  %v876 = vadd.f32 %v832, %v869
  %v877 = vadd.f32 %v833, %v873
  %v878 = vadd.f32 %v834, %v869
  %v879 = vadd.f32 %v835, %v873
  %v880 = vadd.f32 %v836, %v869
  %v881 = vadd.f32 %v837, %v873
  %v882 = vadd.f32 %v838, %v869
  %v883 = vadd.f32 %v839, %v873
  %v884 = vadd.f32 %v840, %v869
  %v885 = vadd.f32 %v841, %v873
  %v886 = vadd.f32 %v842, %v869
  %v887 = vadd.f32 %v843, %v873
  %v888 = vadd.f32 %v844, %v869
  %v889 = vadd.f32 %v845, %v873
  %v890 = vadd.f32 %v846, %v869
  %v891 = vadd.f32 %v847, %v873
  %v892 = vadd.f32 %v848, %v869
  %v893 = vadd.f32 %v849, %v873
  %v894 = vadd.f32 %v850, %v869
  %v895 = vadd.f32 %v851, %v873
  %v896 = vadd.f32 %v852, %v869
  %v897 = vadd.f32 %v853, %v873
  %v898 = vadd.f32 %v854, %v869
  %v899 = vadd.f32 %v855, %v873
  %v900 = vadd.f32 %v856, %v869
  %v901 = vadd.f32 %v857, %v873
  %v902 = vadd.f32 %v858, %v869
  %v903 = vadd.f32 %v859, %v873
  %v904 = vadd.f32 %v860, %v869
  %v905 = vadd.f32 %v861, %v873
  %v906 = vadd.f32 %v862, %v869
  %v907 = vadd.f32 %v863, %v873
  %v908 = vtanh.pop %v876
  %v909 = vtanh.pop %v878
  %v910 = vtanh.pop %v880
  %v911 = vtanh.pop %v882
  %v912 = vtanh.pop %v884
  %v913 = vtanh.pop %v886
  %v914 = vtanh.pop %v888
  %v915 = vtanh.pop %v890
  %v916 = vtanh.pop %v892
  %v917 = vtanh.pop %v894
  %v918 = vtanh.pop %v896
  %v919 = vtanh.pop %v898
  %v920 = vtanh.pop %v900
  %v921 = vtanh.pop %v902
  %v922 = vtanh.pop %v904
  %v923 = vtanh.pop %v906
  %v925 = vcombine.high %v140, %v140
  %v927 = vunpack.c.l.s4 1966171168
  %v928 = vunpack.c.0.s8 %v927
  %v929 = vlaneseq
  %v930 = vshrl.u32 %v929, 7
  %v931 = vsub.s32 %v928, %v930
  %v932 = vrot.slane %v140, %v931
  %v934 = vunpack.c.l.s4 1966171168
  %v935 = vunpack.c.0.s8 %v934
  %v936 = vlaneseq
  %v937 = vshrl.u32 %v936, 7
  %v938 = vsub.s32 %v935, %v937
  %v939 = vrot.slane %v925, %v938
  %v940 = vcombine.high %v932, %v932
  %v941 = vcombine.high %v939, %v939
  %v943 = vunpack.c.l.s4 1966171168
  %v944 = vunpack.c.0.s8 %v943
  %v945 = vlaneseq
  %v946 = vshrl.u32 %v945, 7
  %v947 = vsub.s32 %v944, %v946
  %v948 = vrot.slane %v932, %v947
  %v950 = vunpack.c.l.s4 1966171168
  %v951 = vunpack.c.0.s8 %v950
  %v952 = vlaneseq
  %v953 = vshrl.u32 %v952, 7
  %v954 = vsub.s32 %v951, %v953
  %v955 = vrot.slane %v939, %v954
  %v957 = vunpack.c.l.s4 1966171168
  %v958 = vunpack.c.0.s8 %v957
  %v959 = vlaneseq
  %v960 = vshrl.u32 %v959, 7
  %v961 = vsub.s32 %v958, %v960
  %v962 = vrot.slane %v940, %v961
  %v964 = vunpack.c.l.s4 1966171168
  %v965 = vunpack.c.0.s8 %v964
  %v966 = vlaneseq
  %v967 = vshrl.u32 %v966, 7
  %v968 = vsub.s32 %v965, %v967
  %v969 = vrot.slane %v941, %v968
  %v970 = vcombine.high %v948, %v948
  %v971 = vcombine.high %v955, %v955
  %v972 = vcombine.high %v962, %v962
  %v973 = vcombine.high %v969, %v969
  %v974 = vlaneseq
  %v975 = vshrl.u32 %v974, 7
  %v976 = vsub.s32 0, %v975
  %v977 = vrot.slane %v948, %v976
  %v978 = vlaneseq
  %v979 = vshrl.u32 %v978, 7
  %v980 = vsub.s32 0, %v979
  %v981 = vrot.slane %v962, %v980
  %v982 = vlaneseq
  %v983 = vshrl.u32 %v982, 7
  %v984 = vsub.s32 0, %v983
  %v985 = vrot.slane %v970, %v984
  %v986 = vlaneseq
  %v987 = vshrl.u32 %v986, 7
  %v988 = vsub.s32 0, %v987
  %v989 = vrot.slane %v972, %v988
  %v990 = vlaneseq
  %v991 = vshrl.u32 %v990, 7
  %v992 = vsub.s32 0, %v991
  %v993 = vrot.slane %v955, %v992
  %v994 = vlaneseq
  %v995 = vshrl.u32 %v994, 7
  %v996 = vsub.s32 0, %v995
  %v997 = vrot.slane %v969, %v996
  %v998 = vlaneseq
  %v999 = vshrl.u32 %v998, 7
  %v1000 = vsub.s32 0, %v999
  %v1001 = vrot.slane %v971, %v1000
  %v1002 = vlaneseq
  %v1003 = vshrl.u32 %v1002, 7
  %v1004 = vsub.s32 0, %v1003
  %v1005 = vrot.slane %v973, %v1004
  %v1014 = vadd.f32 %v877, %v977
  %v1015 = vadd.f32 %v879, %v977
  %v1016 = vadd.f32 %v881, %v981
  %v1017 = vadd.f32 %v883, %v981
  %v1018 = vadd.f32 %v885, %v985
  %v1019 = vadd.f32 %v887, %v985
  %v1020 = vadd.f32 %v889, %v989
  %v1021 = vadd.f32 %v891, %v989
  %v1022 = vadd.f32 %v893, %v993
  %v1023 = vadd.f32 %v895, %v993
  %v1024 = vadd.f32 %v897, %v997
  %v1025 = vadd.f32 %v899, %v997
  %v1026 = vadd.f32 %v901, %v1001
  %v1027 = vadd.f32 %v903, %v1001
  %v1028 = vadd.f32 %v905, %v1005
  %v1029 = vadd.f32 %v907, %v1005
  %v1030 = vmax.f32 %v1014, 0.0
  %v1031 = vmax.f32 %v1015, 0.0
  %v1032 = vmax.f32 %v1016, 0.0
  %v1033 = vmax.f32 %v1017, 0.0
  %v1034 = vmax.f32 %v1018, 0.0
  %v1035 = vmax.f32 %v1019, 0.0
  %v1036 = vmax.f32 %v1020, 0.0
  %v1037 = vmax.f32 %v1021, 0.0
  %v1038 = vmax.f32 %v1022, 0.0
  %v1039 = vmax.f32 %v1023, 0.0
  %v1040 = vmax.f32 %v1024, 0.0
  %v1041 = vmax.f32 %v1025, 0.0
  %v1042 = vmax.f32 %v1026, 0.0
  %v1043 = vmax.f32 %v1027, 0.0
  %v1044 = vmax.f32 %v1028, 0.0
  %v1045 = vmax.f32 %v1029, 0.0
  %v1046 = vmul.f32 %v908, %v1030
  %v1047 = vmul.f32 %v909, %v1031
  %v1048 = vmul.f32 %v910, %v1032
  %v1049 = vmul.f32 %v911, %v1033
  %v1050 = vmul.f32 %v912, %v1034
  %v1051 = vmul.f32 %v913, %v1035
  %v1052 = vmul.f32 %v914, %v1036
  %v1053 = vmul.f32 %v915, %v1037
  %v1054 = vmul.f32 %v916, %v1038
  %v1055 = vmul.f32 %v917, %v1039
  %v1056 = vmul.f32 %v918, %v1040
  %v1057 = vmul.f32 %v919, %v1041
  %v1058 = vmul.f32 %v920, %v1042
  %v1059 = vmul.f32 %v921, %v1043
  %v1060 = vmul.f32 %v922, %v1044
  %v1061 = vmul.f32 %v923, %v1045
  %v1062 = vadd.s32 %v402, 8
  %vm1063 = vcmp.lt.s32.totalorder %v402, 14
  %vm1064 = vcmp.lt.s32.totalorder %v1062, 14
  %v1065 = vsel %vm1063, %v1046, -1e+30
  %v1066 = vsel %vm1064, %v1047, -1e+30
  %v1067 = vsel %vm1063, %v1048, -1e+30
  %v1068 = vsel %vm1064, %v1049, -1e+30
  %v1069 = vsel %vm1063, %v1050, -1e+30
  %v1070 = vsel %vm1064, %v1051, -1e+30
  %v1071 = vsel %vm1063, %v1052, -1e+30
  %v1072 = vsel %vm1064, %v1053, -1e+30
  %v1073 = vsel %vm1063, %v1054, -1e+30
  %v1074 = vsel %vm1064, %v1055, -1e+30
  %v1075 = vsel %vm1063, %v1056, -1e+30
  %v1076 = vsel %vm1064, %v1057, -1e+30
  %v1077 = vsel %vm1063, %v1058, -1e+30
  %v1078 = vsel %vm1064, %v1059, -1e+30
  %v1079 = vsel %vm1063, %v1060, -1e+30
  %v1080 = vsel %vm1064, %v1061, -1e+30
  %v1081 = vmax.f32 %v1065, %v1066
  %v1082 = vrot.slane %v1081, 4
  %v1083 = vmax.f32 %v1081, %v1082
  %v1084 = vrot.slane %v1083, 2
  %v1085 = vmax.f32 %v1083, %v1084
  %v1086 = vrot.slane %v1085, 1
  %v1087 = vmax.f32 %v1085, %v1086
  %v1088 = vmax.f32 %v1067, %v1068
  %v1089 = vrot.slane %v1088, 4
  %v1090 = vmax.f32 %v1088, %v1089
  %v1091 = vrot.slane %v1090, 2
  %v1092 = vmax.f32 %v1090, %v1091
  %v1093 = vrot.slane %v1092, 1
  %v1094 = vmax.f32 %v1092, %v1093
  %v1095 = vmax.f32 %v1069, %v1070
  %v1096 = vrot.slane %v1095, 4
  %v1097 = vmax.f32 %v1095, %v1096
  %v1098 = vrot.slane %v1097, 2
  %v1099 = vmax.f32 %v1097, %v1098
  %v1100 = vrot.slane %v1099, 1
  %v1101 = vmax.f32 %v1099, %v1100
  %v1102 = vmax.f32 %v1071, %v1072
  %v1103 = vrot.slane %v1102, 4
  %v1104 = vmax.f32 %v1102, %v1103
  %v1105 = vrot.slane %v1104, 2
  %v1106 = vmax.f32 %v1104, %v1105
  %v1107 = vrot.slane %v1106, 1
  %v1108 = vmax.f32 %v1106, %v1107
  %v1109 = vmax.f32 %v1073, %v1074
  %v1110 = vrot.slane %v1109, 4
  %v1111 = vmax.f32 %v1109, %v1110
  %v1112 = vrot.slane %v1111, 2
  %v1113 = vmax.f32 %v1111, %v1112
  %v1114 = vrot.slane %v1113, 1
  %v1115 = vmax.f32 %v1113, %v1114
  %v1116 = vmax.f32 %v1075, %v1076
  %v1117 = vrot.slane %v1116, 4
  %v1118 = vmax.f32 %v1116, %v1117
  %v1119 = vrot.slane %v1118, 2
  %v1120 = vmax.f32 %v1118, %v1119
  %v1121 = vrot.slane %v1120, 1
  %v1122 = vmax.f32 %v1120, %v1121
  %v1123 = vmax.f32 %v1077, %v1078
  %v1124 = vrot.slane %v1123, 4
  %v1125 = vmax.f32 %v1123, %v1124
  %v1126 = vrot.slane %v1125, 2
  %v1127 = vmax.f32 %v1125, %v1126
  %v1128 = vrot.slane %v1127, 1
  %v1129 = vmax.f32 %v1127, %v1128
  %v1130 = vmax.f32 %v1079, %v1080
  %v1131 = vrot.slane %v1130, 4
  %v1132 = vmax.f32 %v1130, %v1131
  %v1133 = vrot.slane %v1132, 2
  %v1134 = vmax.f32 %v1132, %v1133
  %v1135 = vrot.slane %v1134, 1
  %v1136 = vmax.f32 %v1134, %v1135
  %v1137 = vld [vmem:[%s6] sm:$0xff]
  %v1138 = vld [vmem:[%s6 + $0x8] sm:$0xff]
  %v1139 = vld [vmem:[%s6 + $0x10] sm:$0xff]
  %v1140 = vld [vmem:[%s6 + $0x18] sm:$0xff]
  %v1141 = vld [vmem:[%s6 + $0x20] sm:$0xff]
  %v1142 = vld [vmem:[%s6 + $0x28] sm:$0xff]
  %v1143 = vld [vmem:[%s6 + $0x30] sm:$0xff]
  %v1144 = vld [vmem:[%s6 + $0x38] sm:$0xff]
  %s1145 = scalar_lea.vmem %s6, 64
  %v1146 = vld [vmem:[%s1145] sm:$0xff]
  %v1147 = vld [vmem:[%s1145 + $0x8] sm:$0xff]
  %v1148 = vld [vmem:[%s1145 + $0x10] sm:$0xff]
  %v1149 = vld [vmem:[%s1145 + $0x18] sm:$0xff]
  %v1150 = vld [vmem:[%s1145 + $0x20] sm:$0xff]
  %v1151 = vld [vmem:[%s1145 + $0x28] sm:$0xff]
  %v1152 = vld [vmem:[%s1145 + $0x30] sm:$0xff]
  %v1153 = vld [vmem:[%s1145 + $0x38] sm:$0xff]
  %1154 = vmatprep.subr.mxu0 %v1147
  %1155 = vmatpush1.msra.mxu0 %v1146
  %1156 = vmatprep.subr.mxu0 %v1149
  %1157 = vmatpush1.msra.mxu0 %v1148
  %1158 = vmatprep.subr.mxu0 %v1151
  %1159 = vmatpush1.msra.mxu0 %v1150
  %1160 = vmatprep.subr.mxu0 %v1153
  %1161 = vmatpush1.msra.mxu0 %v1152
  %1162 = vmatprep.subr.mxu0 0.0
  %1163 = vmatpush1.msra.mxu0 0.0
  %1164 = vmatprep.subr.mxu0 0.0
  %1165 = vmatpush1.msra.mxu0 0.0
  %1166 = vmatprep.subr.mxu0 0.0
  %1167 = vmatpush1.msra.mxu0 0.0
  %1168 = vmatprep.subr.mxu0 0.0
  %1169 = vmatpush1.msra.mxu0 0.0
  %1170 = vmatprep.subr.mxu0 0.0
  %1171 = vmatpush1.msra.mxu0 0.0
  %1172 = vmatprep.subr.mxu0 0.0
  %1173 = vmatpush1.msra.mxu0 0.0
  %1174 = vmatprep.subr.mxu0 0.0
  %1175 = vmatpush1.msra.mxu0 0.0
  %1176 = vmatprep.subr.mxu0 0.0
  %1177 = vmatpush1.msra.mxu0 0.0
  %1178 = vmatprep.subr.mxu0 0.0
  %1179 = vmatpush1.msra.mxu0 0.0
  %1180 = vmatprep.subr.mxu0 0.0
  %1181 = vmatpush1.msra.mxu0 0.0
  %1182 = vmatprep.subr.mxu0 0.0
  %1183 = vmatpush1.msra.mxu0 0.0
  %1184 = vmatprep.subr.mxu0 0.0
  %1185 = vmatpush1.msra.mxu0 0.0
  %1186 = vmatprep.subr.mxu0 0.0
  %1187 = vmatpush1.msra.mxu0 0.0
  %1188 = vmatprep.subr.mxu0 0.0
  %1189 = vmatpush1.msra.mxu0 0.0
  %1190 = vmatprep.subr.mxu0 0.0
  %1191 = vmatpush1.msra.mxu0 0.0
  %1192 = vmatprep.subr.mxu0 0.0
  %1193 = vmatpush1.msra.mxu0 0.0
  %1194 = vmatprep.subr.mxu0 0.0
  %1195 = vmatpush1.msra.mxu0 0.0
  %1196 = vmatprep.subr.mxu0 0.0
  %1197 = vmatpush1.msra.mxu0 0.0
  %1198 = vmatprep.subr.mxu0 0.0
  %1199 = vmatpush1.msra.mxu0 0.0
  %1200 = vmatprep.subr.mxu0 0.0
  %1201 = vmatpush1.msra.mxu0 0.0
  %1202 = vmatprep.subr.mxu0 0.0
  %1203 = vmatpush1.msra.mxu0 0.0
  %1204 = vmatprep.subr.mxu0 0.0
  %1205 = vmatpush1.msra.mxu0 0.0
  %1206 = vmatprep.subr.mxu0 0.0
  %1207 = vmatpush1.msra.mxu0 0.0
  %1208 = vmatprep.subr.mxu0 0.0
  %1209 = vmatpush1.msra.mxu0 0.0
  %1210 = vmatprep.subr.mxu0 0.0
  %1211 = vmatpush1.msra.mxu0 0.0
  %1212 = vmatprep.subr.mxu0 0.0
  %1213 = vmatpush1.msra.mxu0 0.0
  %1214 = vmatprep.subr.mxu0 0.0
  %1215 = vmatpush1.msra.mxu0 0.0
  %1216 = vmatprep.subr.mxu0 0.0
  %1217 = vmatpush1.msra.mxu0 0.0
  %1218 = vmatprep.mubr.f32.mxu0 0.0
  %1219 = vmatmul.mubr.f32.gmra.mrb[0].mxu0 %v161
  %v1220 = vpop.f32.mrb[0].mxu0
  %v1221 = vadd.f32 0.0, %v1220
  %v1222 = vpop.f32.mrb[0].mxu0
  %v1223 = vadd.f32 0.0, %v1222
  %1224 = vmatprep.mubr.f32.mxu0 0.0
  %1225 = vmatmul.mubr.f32.gmra.mrb[0].mxu0 %v164
  %v1226 = vpop.f32.mrb[0].mxu0
  %v1227 = vadd.f32 0.0, %v1226
  %v1228 = vpop.f32.mrb[0].mxu0
  %v1229 = vadd.f32 0.0, %v1228
  %1230 = vmatprep.mubr.f32.mxu0 0.0
  %1231 = vmatmul.mubr.f32.gmra.mrb[0].mxu0 %v167
  %v1232 = vpop.f32.mrb[0].mxu0
  %v1233 = vadd.f32 0.0, %v1232
  %v1234 = vpop.f32.mrb[0].mxu0
  %v1235 = vadd.f32 0.0, %v1234
  %1236 = vmatprep.mubr.f32.mxu0 0.0
  %1237 = vmatmul.mubr.f32.gmra.mrb[0].mxu0 %v170
  %v1238 = vpop.f32.mrb[0].mxu0
  %v1239 = vadd.f32 0.0, %v1238
  %v1240 = vpop.f32.mrb[0].mxu0
  %v1241 = vadd.f32 0.0, %v1240
  %1242 = vmatprep.mubr.f32.mxu0 0.0
  %1243 = vmatmul.mubr.f32.gmra.mrb[0].mxu0 %v173
  %v1244 = vpop.f32.mrb[0].mxu0
  %v1245 = vadd.f32 0.0, %v1244
  %v1246 = vpop.f32.mrb[0].mxu0
  %v1247 = vadd.f32 0.0, %v1246
  %1248 = vmatprep.mubr.f32.mxu0 0.0
  %1249 = vmatmul.mubr.f32.gmra.mrb[0].mxu0 %v176
  %v1250 = vpop.f32.mrb[0].mxu0
  %v1251 = vadd.f32 0.0, %v1250
  %v1252 = vpop.f32.mrb[0].mxu0
  %v1253 = vadd.f32 0.0, %v1252
  %1254 = vmatprep.mubr.f32.mxu0 0.0
  %1255 = vmatmul.mubr.f32.gmra.mrb[0].mxu0 %v179
  %v1256 = vpop.f32.mrb[0].mxu0
  %v1257 = vadd.f32 0.0, %v1256
  %v1258 = vpop.f32.mrb[0].mxu0
  %v1259 = vadd.f32 0.0, %v1258
  %1260 = vmatprep.mubr.f32.mxu0 0.0
  %1261 = vmatmul.mubr.f32.gmra.mrb[0].mxu0 %v182
  %v1262 = vpop.f32.mrb[0].mxu0
  %v1263 = vadd.f32 0.0, %v1262
  %v1264 = vpop.f32.mrb[0].mxu0
  %v1265 = vadd.f32 0.0, %v1264
  %1266 = vmatprep.mubr.f32.mxu0 0.0
  %1267 = vmatmul.mubr.f32.gmra.mrb[0].mxu0 %v185
  %v1268 = vpop.f32.mrb[0].mxu0
  %v1269 = vadd.f32 0.0, %v1268
  %v1270 = vpop.f32.mrb[0].mxu0
  %v1271 = vadd.f32 0.0, %v1270
  %1272 = vmatprep.mubr.f32.mxu0 0.0
  %1273 = vmatmul.mubr.f32.gmra.mrb[0].mxu0 %v188
  %v1274 = vpop.f32.mrb[0].mxu0
  %v1275 = vadd.f32 0.0, %v1274
  %v1276 = vpop.f32.mrb[0].mxu0
  %v1277 = vadd.f32 0.0, %v1276
  %1278 = vmatprep.mubr.f32.mxu0 0.0
  %1279 = vmatmul.mubr.f32.gmra.mrb[0].mxu0 %v191
  %v1280 = vpop.f32.mrb[0].mxu0
  %v1281 = vadd.f32 0.0, %v1280
  %v1282 = vpop.f32.mrb[0].mxu0
  %v1283 = vadd.f32 0.0, %v1282
  %1284 = vmatprep.mubr.f32.mxu0 0.0
  %1285 = vmatmul.mubr.f32.gmra.mrb[0].mxu0 %v194
  %v1286 = vpop.f32.mrb[0].mxu0
  %v1287 = vadd.f32 0.0, %v1286
  %v1288 = vpop.f32.mrb[0].mxu0
  %v1289 = vadd.f32 0.0, %v1288
  %1290 = vmatprep.mubr.f32.mxu0 0.0
  %1291 = vmatmul.mubr.f32.gmra.mrb[0].mxu0 %v197
  %v1292 = vpop.f32.mrb[0].mxu0
  %v1293 = vadd.f32 0.0, %v1292
  %v1294 = vpop.f32.mrb[0].mxu0
  %v1295 = vadd.f32 0.0, %v1294
  %1296 = vmatprep.mubr.f32.mxu0 0.0
  %1297 = vmatmul.mubr.f32.gmra.mrb[0].mxu0 %v200
  %v1298 = vpop.f32.mrb[0].mxu0
  %v1299 = vadd.f32 0.0, %v1298
  %v1300 = vpop.f32.mrb[0].mxu0
  %v1301 = vadd.f32 0.0, %v1300
  %1302 = vmatprep.mubr.f32.mxu0 0.0
  %1303 = vmatmul.mubr.f32.gmra.mrb[0].mxu0 %v203
  %v1304 = vpop.f32.mrb[0].mxu0
  %v1305 = vadd.f32 0.0, %v1304
  %v1306 = vpop.f32.mrb[0].mxu0
  %v1307 = vadd.f32 0.0, %v1306
  %1308 = vmatprep.mubr.f32.mxu0 0.0
  %1309 = vmatmul.mubr.f32.gmra.mrb[0].mxu0 %v206
  %v1310 = vpop.f32.mrb[0].mxu0
  %v1311 = vadd.f32 0.0, %v1310
  %v1312 = vpop.f32.mrb[0].mxu0
  %v1313 = vadd.f32 0.0, %v1312
  %1314 = vdwg.mxu0
  %v1315 = vrot.slane %v1221, 1
  %v1316 = vrot.slane %v1223, 1
  %v1317 = vrot.slane %v1227, 1
  %v1318 = vrot.slane %v1229, 1
  %v1319 = vrot.slane %v1233, 1
  %v1320 = vrot.slane %v1235, 1
  %v1321 = vrot.slane %v1239, 1
  %v1322 = vrot.slane %v1241, 1
  %v1323 = vrot.slane %v1245, 1
  %v1324 = vrot.slane %v1247, 1
  %v1325 = vrot.slane %v1251, 1
  %v1326 = vrot.slane %v1253, 1
  %v1327 = vrot.slane %v1257, 1
  %v1328 = vrot.slane %v1259, 1
  %v1329 = vrot.slane %v1263, 1
  %v1330 = vrot.slane %v1265, 1
  %v1331 = vrot.slane %v1269, 1
  %v1332 = vrot.slane %v1271, 1
  %v1333 = vrot.slane %v1275, 1
  %v1334 = vrot.slane %v1277, 1
  %v1335 = vrot.slane %v1281, 1
  %v1336 = vrot.slane %v1283, 1
  %v1337 = vrot.slane %v1287, 1
  %v1338 = vrot.slane %v1289, 1
  %v1339 = vrot.slane %v1293, 1
  %v1340 = vrot.slane %v1295, 1
  %v1341 = vrot.slane %v1299, 1
  %v1342 = vrot.slane %v1301, 1
  %v1343 = vrot.slane %v1305, 1
  %v1344 = vrot.slane %v1307, 1
  %v1345 = vrot.slane %v1311, 1
  %v1346 = vrot.slane %v1313, 1
  %v1347 = vsel %vm403, %v1343, %v1345
  %v1348 = vsel %vm403, %v1344, %v1346
  %v1349 = vsel %vm403, %v1341, %v1343
  %v1350 = vsel %vm403, %v1342, %v1344
  %v1351 = vsel %vm403, %v1339, %v1341
  %v1352 = vsel %vm403, %v1340, %v1342
  %v1353 = vsel %vm403, %v1337, %v1339
  %v1354 = vsel %vm403, %v1338, %v1340
  %v1355 = vsel %vm403, %v1335, %v1337
  %v1356 = vsel %vm403, %v1336, %v1338
  %v1357 = vsel %vm403, %v1333, %v1335
  %v1358 = vsel %vm403, %v1334, %v1336
  %v1359 = vsel %vm403, %v1331, %v1333
  %v1360 = vsel %vm403, %v1332, %v1334
  %v1361 = vsel %vm403, %v1329, %v1331
  %v1362 = vsel %vm403, %v1330, %v1332
  %v1363 = vsel %vm403, %v1327, %v1329
  %v1364 = vsel %vm403, %v1328, %v1330
  %v1365 = vsel %vm403, %v1325, %v1327
  %v1366 = vsel %vm403, %v1326, %v1328
  %v1367 = vsel %vm403, %v1323, %v1325
  %v1368 = vsel %vm403, %v1324, %v1326
  %v1369 = vsel %vm403, %v1321, %v1323
  %v1370 = vsel %vm403, %v1322, %v1324
  %v1371 = vsel %vm403, %v1319, %v1321
  %v1372 = vsel %vm403, %v1320, %v1322
  %v1373 = vsel %vm403, %v1317, %v1319
  %v1374 = vsel %vm403, %v1318, %v1320
  %v1375 = vsel %vm403, %v1315, %v1317
  %v1376 = vsel %vm403, %v1316, %v1318
  %v1377 = vsel %vm403, %v1345, %v1315
  %v1378 = vsel %vm403, %v1346, %v1316
  %1379 = vmatprep.subr.mxu0 %v1138
  %1380 = vmatpush1.msra.mxu0 %v1137
  %1381 = vmatprep.subr.mxu0 %v1140
  %1382 = vmatpush1.msra.mxu0 %v1139
  %1383 = vmatprep.subr.mxu0 %v1142
  %1384 = vmatpush1.msra.mxu0 %v1141
  %1385 = vmatprep.subr.mxu0 %v1144
  %1386 = vmatpush1.msra.mxu0 %v1143
  %1387 = vmatprep.subr.mxu0 0.0
  %1388 = vmatpush1.msra.mxu0 0.0
  %1389 = vmatprep.subr.mxu0 0.0
  %1390 = vmatpush1.msra.mxu0 0.0
  %1391 = vmatprep.subr.mxu0 0.0
  %1392 = vmatpush1.msra.mxu0 0.0
  %1393 = vmatprep.subr.mxu0 0.0
  %1394 = vmatpush1.msra.mxu0 0.0
  %1395 = vmatprep.subr.mxu0 0.0
  %1396 = vmatpush1.msra.mxu0 0.0
  %1397 = vmatprep.subr.mxu0 0.0
  %1398 = vmatpush1.msra.mxu0 0.0
  %1399 = vmatprep.subr.mxu0 0.0
  %1400 = vmatpush1.msra.mxu0 0.0
  %1401 = vmatprep.subr.mxu0 0.0
  %1402 = vmatpush1.msra.mxu0 0.0
  %1403 = vmatprep.subr.mxu0 0.0
  %1404 = vmatpush1.msra.mxu0 0.0
  %1405 = vmatprep.subr.mxu0 0.0
  %1406 = vmatpush1.msra.mxu0 0.0
  %1407 = vmatprep.subr.mxu0 0.0
  %1408 = vmatpush1.msra.mxu0 0.0
  %1409 = vmatprep.subr.mxu0 0.0
  %1410 = vmatpush1.msra.mxu0 0.0
  %1411 = vmatprep.subr.mxu0 0.0
  %1412 = vmatpush1.msra.mxu0 0.0
  %1413 = vmatprep.subr.mxu0 0.0
  %1414 = vmatpush1.msra.mxu0 0.0
  %1415 = vmatprep.subr.mxu0 0.0
  %1416 = vmatpush1.msra.mxu0 0.0
  %1417 = vmatprep.subr.mxu0 0.0
  %1418 = vmatpush1.msra.mxu0 0.0
  %1419 = vmatprep.subr.mxu0 0.0
  %1420 = vmatpush1.msra.mxu0 0.0
  %1421 = vmatprep.subr.mxu0 0.0
  %1422 = vmatpush1.msra.mxu0 0.0
  %1423 = vmatprep.subr.mxu0 0.0
  %1424 = vmatpush1.msra.mxu0 0.0
  %1425 = vmatprep.subr.mxu0 0.0
  %1426 = vmatpush1.msra.mxu0 0.0
  %1427 = vmatprep.subr.mxu0 0.0
  %1428 = vmatpush1.msra.mxu0 0.0
  %1429 = vmatprep.subr.mxu0 0.0
  %1430 = vmatpush1.msra.mxu0 0.0
  %1431 = vmatprep.subr.mxu0 0.0
  %1432 = vmatpush1.msra.mxu0 0.0
  %1433 = vmatprep.subr.mxu0 0.0
  %1434 = vmatpush1.msra.mxu0 0.0
  %1435 = vmatprep.subr.mxu0 0.0
  %1436 = vmatpush1.msra.mxu0 0.0
  %1437 = vmatprep.subr.mxu0 0.0
  %1438 = vmatpush1.msra.mxu0 0.0
  %1439 = vmatprep.subr.mxu0 0.0
  %1440 = vmatpush1.msra.mxu0 0.0
  %1441 = vmatprep.subr.mxu0 0.0
  %1442 = vmatpush1.msra.mxu0 0.0
  %1443 = vmatprep.mubr.f32.mxu0 0.0
  %1444 = vmatmul.mubr.f32.gmra.mrb[0].mxu0 %v161
  %v1445 = vpop.f32.mrb[0].mxu0
  %v1446 = vadd.f32 %v1375, %v1445
  %v1447 = vpop.f32.mrb[0].mxu0
  %v1448 = vadd.f32 %v1376, %v1447
  %1449 = vmatprep.mubr.f32.mxu0 0.0
  %1450 = vmatmul.mubr.f32.gmra.mrb[0].mxu0 %v164
  %v1451 = vpop.f32.mrb[0].mxu0
  %v1452 = vadd.f32 %v1373, %v1451
  %v1453 = vpop.f32.mrb[0].mxu0
  %v1454 = vadd.f32 %v1374, %v1453
  %1455 = vmatprep.mubr.f32.mxu0 0.0
  %1456 = vmatmul.mubr.f32.gmra.mrb[0].mxu0 %v167
  %v1457 = vpop.f32.mrb[0].mxu0
  %v1458 = vadd.f32 %v1371, %v1457
  %v1459 = vpop.f32.mrb[0].mxu0
  %v1460 = vadd.f32 %v1372, %v1459
  %1461 = vmatprep.mubr.f32.mxu0 0.0
  %1462 = vmatmul.mubr.f32.gmra.mrb[0].mxu0 %v170
  %v1463 = vpop.f32.mrb[0].mxu0
  %v1464 = vadd.f32 %v1369, %v1463
  %v1465 = vpop.f32.mrb[0].mxu0
  %v1466 = vadd.f32 %v1370, %v1465
  %1467 = vmatprep.mubr.f32.mxu0 0.0
  %1468 = vmatmul.mubr.f32.gmra.mrb[0].mxu0 %v173
  %v1469 = vpop.f32.mrb[0].mxu0
  %v1470 = vadd.f32 %v1367, %v1469
  %v1471 = vpop.f32.mrb[0].mxu0
  %v1472 = vadd.f32 %v1368, %v1471
  %1473 = vmatprep.mubr.f32.mxu0 0.0
  %1474 = vmatmul.mubr.f32.gmra.mrb[0].mxu0 %v176
  %v1475 = vpop.f32.mrb[0].mxu0
  %v1476 = vadd.f32 %v1365, %v1475
  %v1477 = vpop.f32.mrb[0].mxu0
  %v1478 = vadd.f32 %v1366, %v1477
  %1479 = vmatprep.mubr.f32.mxu0 0.0
  %1480 = vmatmul.mubr.f32.gmra.mrb[0].mxu0 %v179
  %v1481 = vpop.f32.mrb[0].mxu0
  %v1482 = vadd.f32 %v1363, %v1481
  %v1483 = vpop.f32.mrb[0].mxu0
  %v1484 = vadd.f32 %v1364, %v1483
  %1485 = vmatprep.mubr.f32.mxu0 0.0
  %1486 = vmatmul.mubr.f32.gmra.mrb[0].mxu0 %v182
  %v1487 = vpop.f32.mrb[0].mxu0
  %v1488 = vadd.f32 %v1361, %v1487
  %v1489 = vpop.f32.mrb[0].mxu0
  %v1490 = vadd.f32 %v1362, %v1489
  %1491 = vmatprep.mubr.f32.mxu0 0.0
  %1492 = vmatmul.mubr.f32.gmra.mrb[0].mxu0 %v185
  %v1493 = vpop.f32.mrb[0].mxu0
  %v1494 = vadd.f32 %v1359, %v1493
  %v1495 = vpop.f32.mrb[0].mxu0
  %v1496 = vadd.f32 %v1360, %v1495
  %1497 = vmatprep.mubr.f32.mxu0 0.0
  %1498 = vmatmul.mubr.f32.gmra.mrb[0].mxu0 %v188
  %v1499 = vpop.f32.mrb[0].mxu0
  %v1500 = vadd.f32 %v1357, %v1499
  %v1501 = vpop.f32.mrb[0].mxu0
  %v1502 = vadd.f32 %v1358, %v1501
  %1503 = vmatprep.mubr.f32.mxu0 0.0
  %1504 = vmatmul.mubr.f32.gmra.mrb[0].mxu0 %v191
  %v1505 = vpop.f32.mrb[0].mxu0
  %v1506 = vadd.f32 %v1355, %v1505
  %v1507 = vpop.f32.mrb[0].mxu0
  %v1508 = vadd.f32 %v1356, %v1507
  %1509 = vmatprep.mubr.f32.mxu0 0.0
  %1510 = vmatmul.mubr.f32.gmra.mrb[0].mxu0 %v194
  %v1511 = vpop.f32.mrb[0].mxu0
  %v1512 = vadd.f32 %v1353, %v1511
  %v1513 = vpop.f32.mrb[0].mxu0
  %v1514 = vadd.f32 %v1354, %v1513
  %1515 = vmatprep.mubr.f32.mxu0 0.0
  %1516 = vmatmul.mubr.f32.gmra.mrb[0].mxu0 %v197
  %v1517 = vpop.f32.mrb[0].mxu0
  %v1518 = vadd.f32 %v1351, %v1517
  %v1519 = vpop.f32.mrb[0].mxu0
  %v1520 = vadd.f32 %v1352, %v1519
  %1521 = vmatprep.mubr.f32.mxu0 0.0
  %1522 = vmatmul.mubr.f32.gmra.mrb[0].mxu0 %v200
  %v1523 = vpop.f32.mrb[0].mxu0
  %v1524 = vadd.f32 %v1349, %v1523
  %v1525 = vpop.f32.mrb[0].mxu0
  %v1526 = vadd.f32 %v1350, %v1525
  %1527 = vmatprep.mubr.f32.mxu0 0.0
  %1528 = vmatmul.mubr.f32.gmra.mrb[0].mxu0 %v203
  %v1529 = vpop.f32.mrb[0].mxu0
  %v1530 = vadd.f32 %v1347, %v1529
  %v1531 = vpop.f32.mrb[0].mxu0
  %v1532 = vadd.f32 %v1348, %v1531
  %1533 = vmatprep.mubr.f32.mxu0 0.0
  %1534 = vmatmul.mubr.f32.gmra.mrb[0].mxu0 %v206
  %v1535 = vpop.f32.mrb[0].mxu0
  %v1536 = vadd.f32 %v1377, %v1535
  %v1537 = vpop.f32.mrb[0].mxu0
  %v1538 = vadd.f32 %v1378, %v1537
  %1539 = vdwg.mxu0
  %s1540 = scalar_lea.vmem %s6, 128
  %v1541 = vld [vmem:[%s1540] sm:$0xff]
  %v1542 = vld [vmem:[%s1540 + $0x8] sm:$0xff]
  %v1543 = vld [vmem:[%s1540 + $0x10] sm:$0xff]
  %v1544 = vld [vmem:[%s1540 + $0x18] sm:$0xff]
  %v1545 = vld [vmem:[%s1540 + $0x20] sm:$0xff]
  %v1546 = vld [vmem:[%s1540 + $0x28] sm:$0xff]
  %v1547 = vld [vmem:[%s1540 + $0x30] sm:$0xff]
  %v1548 = vld [vmem:[%s1540 + $0x38] sm:$0xff]
  %1549 = vmatprep.subr.mxu0 %v1542
  %1550 = vmatpush1.msra.mxu0 %v1541
  %1551 = vmatprep.subr.mxu0 %v1544
  %1552 = vmatpush1.msra.mxu0 %v1543
  %1553 = vmatprep.subr.mxu0 %v1546
  %1554 = vmatpush1.msra.mxu0 %v1545
  %1555 = vmatprep.subr.mxu0 %v1548
  %1556 = vmatpush1.msra.mxu0 %v1547
  %1557 = vmatprep.subr.mxu0 0.0
  %1558 = vmatpush1.msra.mxu0 0.0
  %1559 = vmatprep.subr.mxu0 0.0
  %1560 = vmatpush1.msra.mxu0 0.0
  %1561 = vmatprep.subr.mxu0 0.0
  %1562 = vmatpush1.msra.mxu0 0.0
  %1563 = vmatprep.subr.mxu0 0.0
  %1564 = vmatpush1.msra.mxu0 0.0
  %1565 = vmatprep.subr.mxu0 0.0
  %1566 = vmatpush1.msra.mxu0 0.0
  %1567 = vmatprep.subr.mxu0 0.0
  %1568 = vmatpush1.msra.mxu0 0.0
  %1569 = vmatprep.subr.mxu0 0.0
  %1570 = vmatpush1.msra.mxu0 0.0
  %1571 = vmatprep.subr.mxu0 0.0
  %1572 = vmatpush1.msra.mxu0 0.0
  %1573 = vmatprep.subr.mxu0 0.0
  %1574 = vmatpush1.msra.mxu0 0.0
  %1575 = vmatprep.subr.mxu0 0.0
  %1576 = vmatpush1.msra.mxu0 0.0
  %1577 = vmatprep.subr.mxu0 0.0
  %1578 = vmatpush1.msra.mxu0 0.0
  %1579 = vmatprep.subr.mxu0 0.0
  %1580 = vmatpush1.msra.mxu0 0.0
  %1581 = vmatprep.subr.mxu0 0.0
  %1582 = vmatpush1.msra.mxu0 0.0
  %1583 = vmatprep.subr.mxu0 0.0
  %1584 = vmatpush1.msra.mxu0 0.0
  %1585 = vmatprep.subr.mxu0 0.0
  %1586 = vmatpush1.msra.mxu0 0.0
  %1587 = vmatprep.subr.mxu0 0.0
  %1588 = vmatpush1.msra.mxu0 0.0
  %1589 = vmatprep.subr.mxu0 0.0
  %1590 = vmatpush1.msra.mxu0 0.0
  %1591 = vmatprep.subr.mxu0 0.0
  %1592 = vmatpush1.msra.mxu0 0.0
  %1593 = vmatprep.subr.mxu0 0.0
  %1594 = vmatpush1.msra.mxu0 0.0
  %1595 = vmatprep.subr.mxu0 0.0
  %1596 = vmatpush1.msra.mxu0 0.0
  %1597 = vmatprep.subr.mxu0 0.0
  %1598 = vmatpush1.msra.mxu0 0.0
  %1599 = vmatprep.subr.mxu0 0.0
  %1600 = vmatpush1.msra.mxu0 0.0
  %1601 = vmatprep.subr.mxu0 0.0
  %1602 = vmatpush1.msra.mxu0 0.0
  %1603 = vmatprep.subr.mxu0 0.0
  %1604 = vmatpush1.msra.mxu0 0.0
  %1605 = vmatprep.subr.mxu0 0.0
  %1606 = vmatpush1.msra.mxu0 0.0
  %1607 = vmatprep.subr.mxu0 0.0
  %1608 = vmatpush1.msra.mxu0 0.0
  %1609 = vmatprep.subr.mxu0 0.0
  %1610 = vmatpush1.msra.mxu0 0.0
  %1611 = vmatprep.subr.mxu0 0.0
  %1612 = vmatpush1.msra.mxu0 0.0
  %1613 = vmatprep.mubr.f32.mxu0 0.0
  %1614 = vmatmul.mubr.f32.gmra.mrb[0].mxu0 %v161
  %v1615 = vpop.f32.mrb[0].mxu0
  %v1616 = vadd.f32 0.0, %v1615
  %v1617 = vpop.f32.mrb[0].mxu0
  %v1618 = vadd.f32 0.0, %v1617
  %1619 = vmatprep.mubr.f32.mxu0 0.0
  %1620 = vmatmul.mubr.f32.gmra.mrb[0].mxu0 %v164
  %v1621 = vpop.f32.mrb[0].mxu0
  %v1622 = vadd.f32 0.0, %v1621
  %v1623 = vpop.f32.mrb[0].mxu0
  %v1624 = vadd.f32 0.0, %v1623
  %1625 = vmatprep.mubr.f32.mxu0 0.0
  %1626 = vmatmul.mubr.f32.gmra.mrb[0].mxu0 %v167
  %v1627 = vpop.f32.mrb[0].mxu0
  %v1628 = vadd.f32 0.0, %v1627
  %v1629 = vpop.f32.mrb[0].mxu0
  %v1630 = vadd.f32 0.0, %v1629
  %1631 = vmatprep.mubr.f32.mxu0 0.0
  %1632 = vmatmul.mubr.f32.gmra.mrb[0].mxu0 %v170
  %v1633 = vpop.f32.mrb[0].mxu0
  %v1634 = vadd.f32 0.0, %v1633
  %v1635 = vpop.f32.mrb[0].mxu0
  %v1636 = vadd.f32 0.0, %v1635
  %1637 = vmatprep.mubr.f32.mxu0 0.0
  %1638 = vmatmul.mubr.f32.gmra.mrb[0].mxu0 %v173
  %v1639 = vpop.f32.mrb[0].mxu0
  %v1640 = vadd.f32 0.0, %v1639
  %v1641 = vpop.f32.mrb[0].mxu0
  %v1642 = vadd.f32 0.0, %v1641
  %1643 = vmatprep.mubr.f32.mxu0 0.0
  %1644 = vmatmul.mubr.f32.gmra.mrb[0].mxu0 %v176
  %v1645 = vpop.f32.mrb[0].mxu0
  %v1646 = vadd.f32 0.0, %v1645
  %v1647 = vpop.f32.mrb[0].mxu0
  %v1648 = vadd.f32 0.0, %v1647
  %1649 = vmatprep.mubr.f32.mxu0 0.0
  %1650 = vmatmul.mubr.f32.gmra.mrb[0].mxu0 %v179
  %v1651 = vpop.f32.mrb[0].mxu0
  %v1652 = vadd.f32 0.0, %v1651
  %v1653 = vpop.f32.mrb[0].mxu0
  %v1654 = vadd.f32 0.0, %v1653
  %1655 = vmatprep.mubr.f32.mxu0 0.0
  %1656 = vmatmul.mubr.f32.gmra.mrb[0].mxu0 %v182
  %v1657 = vpop.f32.mrb[0].mxu0
  %v1658 = vadd.f32 0.0, %v1657
  %v1659 = vpop.f32.mrb[0].mxu0
  %v1660 = vadd.f32 0.0, %v1659
  %1661 = vmatprep.mubr.f32.mxu0 0.0
  %1662 = vmatmul.mubr.f32.gmra.mrb[0].mxu0 %v185
  %v1663 = vpop.f32.mrb[0].mxu0
  %v1664 = vadd.f32 0.0, %v1663
  %v1665 = vpop.f32.mrb[0].mxu0
  %v1666 = vadd.f32 0.0, %v1665
  %1667 = vmatprep.mubr.f32.mxu0 0.0
  %1668 = vmatmul.mubr.f32.gmra.mrb[0].mxu0 %v188
  %v1669 = vpop.f32.mrb[0].mxu0
  %v1670 = vadd.f32 0.0, %v1669
  %v1671 = vpop.f32.mrb[0].mxu0
  %v1672 = vadd.f32 0.0, %v1671
  %1673 = vmatprep.mubr.f32.mxu0 0.0
  %1674 = vmatmul.mubr.f32.gmra.mrb[0].mxu0 %v191
  %v1675 = vpop.f32.mrb[0].mxu0
  %v1676 = vadd.f32 0.0, %v1675
  %v1677 = vpop.f32.mrb[0].mxu0
  %v1678 = vadd.f32 0.0, %v1677
  %1679 = vmatprep.mubr.f32.mxu0 0.0
  %1680 = vmatmul.mubr.f32.gmra.mrb[0].mxu0 %v194
  %v1681 = vpop.f32.mrb[0].mxu0
  %v1682 = vadd.f32 0.0, %v1681
  %v1683 = vpop.f32.mrb[0].mxu0
  %v1684 = vadd.f32 0.0, %v1683
  %1685 = vmatprep.mubr.f32.mxu0 0.0
  %1686 = vmatmul.mubr.f32.gmra.mrb[0].mxu0 %v197
  %v1687 = vpop.f32.mrb[0].mxu0
  %v1688 = vadd.f32 0.0, %v1687
  %v1689 = vpop.f32.mrb[0].mxu0
  %v1690 = vadd.f32 0.0, %v1689
  %1691 = vmatprep.mubr.f32.mxu0 0.0
  %1692 = vmatmul.mubr.f32.gmra.mrb[0].mxu0 %v200
  %v1693 = vpop.f32.mrb[0].mxu0
  %v1694 = vadd.f32 0.0, %v1693
  %v1695 = vpop.f32.mrb[0].mxu0
  %v1696 = vadd.f32 0.0, %v1695
  %1697 = vmatprep.mubr.f32.mxu0 0.0
  %1698 = vmatmul.mubr.f32.gmra.mrb[0].mxu0 %v203
  %v1699 = vpop.f32.mrb[0].mxu0
  %v1700 = vadd.f32 0.0, %v1699
  %v1701 = vpop.f32.mrb[0].mxu0
  %v1702 = vadd.f32 0.0, %v1701
  %1703 = vmatprep.mubr.f32.mxu0 0.0
  %1704 = vmatmul.mubr.f32.gmra.mrb[0].mxu0 %v206
  %v1705 = vpop.f32.mrb[0].mxu0
  %v1706 = vadd.f32 0.0, %v1705
  %v1707 = vpop.f32.mrb[0].mxu0
  %v1708 = vadd.f32 0.0, %v1707
  %1709 = vdwg.mxu0
  %v1710 = vrot.slane %v1616, 2
  %v1711 = vrot.slane %v1618, 2
  %v1712 = vrot.slane %v1622, 2
  %v1713 = vrot.slane %v1624, 2
  %v1714 = vrot.slane %v1628, 2
  %v1715 = vrot.slane %v1630, 2
  %v1716 = vrot.slane %v1634, 2
  %v1717 = vrot.slane %v1636, 2
  %v1718 = vrot.slane %v1640, 2
  %v1719 = vrot.slane %v1642, 2
  %v1720 = vrot.slane %v1646, 2
  %v1721 = vrot.slane %v1648, 2
  %v1722 = vrot.slane %v1652, 2
  %v1723 = vrot.slane %v1654, 2
  %v1724 = vrot.slane %v1658, 2
  %v1725 = vrot.slane %v1660, 2
  %v1726 = vrot.slane %v1664, 2
  %v1727 = vrot.slane %v1666, 2
  %v1728 = vrot.slane %v1670, 2
  %v1729 = vrot.slane %v1672, 2
  %v1730 = vrot.slane %v1676, 2
  %v1731 = vrot.slane %v1678, 2
  %v1732 = vrot.slane %v1682, 2
  %v1733 = vrot.slane %v1684, 2
  %v1734 = vrot.slane %v1688, 2
  %v1735 = vrot.slane %v1690, 2
  %v1736 = vrot.slane %v1694, 2
  %v1737 = vrot.slane %v1696, 2
  %v1738 = vrot.slane %v1700, 2
  %v1739 = vrot.slane %v1702, 2
  %v1740 = vrot.slane %v1706, 2
  %v1741 = vrot.slane %v1708, 2
  %v1742 = vsel %vm799, %v1738, %v1740
  %v1743 = vsel %vm799, %v1739, %v1741
  %v1744 = vsel %vm799, %v1736, %v1738
  %v1745 = vsel %vm799, %v1737, %v1739
  %v1746 = vsel %vm799, %v1734, %v1736
  %v1747 = vsel %vm799, %v1735, %v1737
  %v1748 = vsel %vm799, %v1732, %v1734
  %v1749 = vsel %vm799, %v1733, %v1735
  %v1750 = vsel %vm799, %v1730, %v1732
  %v1751 = vsel %vm799, %v1731, %v1733
  %v1752 = vsel %vm799, %v1728, %v1730
  %v1753 = vsel %vm799, %v1729, %v1731
  %v1754 = vsel %vm799, %v1726, %v1728
  %v1755 = vsel %vm799, %v1727, %v1729
  %v1756 = vsel %vm799, %v1724, %v1726
  %v1757 = vsel %vm799, %v1725, %v1727
  %v1758 = vsel %vm799, %v1722, %v1724
  %v1759 = vsel %vm799, %v1723, %v1725
  %v1760 = vsel %vm799, %v1720, %v1722
  %v1761 = vsel %vm799, %v1721, %v1723
  %v1762 = vsel %vm799, %v1718, %v1720
  %v1763 = vsel %vm799, %v1719, %v1721
  %v1764 = vsel %vm799, %v1716, %v1718
  %v1765 = vsel %vm799, %v1717, %v1719
  %v1766 = vsel %vm799, %v1714, %v1716
  %v1767 = vsel %vm799, %v1715, %v1717
  %v1768 = vsel %vm799, %v1712, %v1714
  %v1769 = vsel %vm799, %v1713, %v1715
  %v1770 = vsel %vm799, %v1710, %v1712
  %v1771 = vsel %vm799, %v1711, %v1713
  %v1772 = vsel %vm799, %v1740, %v1710
  %v1773 = vsel %vm799, %v1741, %v1711
  %v1774 = vadd.f32 %v1446, %v1770
  %v1775 = vadd.f32 %v1448, %v1771
  %v1776 = vadd.f32 %v1452, %v1768
  %v1777 = vadd.f32 %v1454, %v1769
  %v1778 = vadd.f32 %v1458, %v1766
  %v1779 = vadd.f32 %v1460, %v1767
  %v1780 = vadd.f32 %v1464, %v1764
  %v1781 = vadd.f32 %v1466, %v1765
  %v1782 = vadd.f32 %v1470, %v1762
  %v1783 = vadd.f32 %v1472, %v1763
  %v1784 = vadd.f32 %v1476, %v1760
  %v1785 = vadd.f32 %v1478, %v1761
  %v1786 = vadd.f32 %v1482, %v1758
  %v1787 = vadd.f32 %v1484, %v1759
  %v1788 = vadd.f32 %v1488, %v1756
  %v1789 = vadd.f32 %v1490, %v1757
  %v1790 = vadd.f32 %v1494, %v1754
  %v1791 = vadd.f32 %v1496, %v1755
  %v1792 = vadd.f32 %v1500, %v1752
  %v1793 = vadd.f32 %v1502, %v1753
  %v1794 = vadd.f32 %v1506, %v1750
  %v1795 = vadd.f32 %v1508, %v1751
  %v1796 = vadd.f32 %v1512, %v1748
  %v1797 = vadd.f32 %v1514, %v1749
  %v1798 = vadd.f32 %v1518, %v1746
  %v1799 = vadd.f32 %v1520, %v1747
  %v1800 = vadd.f32 %v1524, %v1744
  %v1801 = vadd.f32 %v1526, %v1745
  %v1802 = vadd.f32 %v1530, %v1742
  %v1803 = vadd.f32 %v1532, %v1743
  %v1804 = vadd.f32 %v1536, %v1772
  %v1805 = vadd.f32 %v1538, %v1773
  %s1806 = scalar_lea.vmem %s6, 192
  %v1807 = vld [vmem:[%s1806] sm:$0xff]
  %v1808 = vld [vmem:[%s1806 + $0x8] sm:$0xff]
  %v1809 = vld [vmem:[%s1806 + $0x10] sm:$0xff]
  %v1810 = vld [vmem:[%s1806 + $0x18] sm:$0xff]
  %v1811 = vld [vmem:[%s1806 + $0x20] sm:$0xff]
  %v1812 = vld [vmem:[%s1806 + $0x28] sm:$0xff]
  %v1813 = vld [vmem:[%s1806 + $0x30] sm:$0xff]
  %v1814 = vld [vmem:[%s1806 + $0x38] sm:$0xff]
  %1815 = vmatprep.subr.mxu0 %v1808
  %1816 = vmatpush1.msra.mxu0 %v1807
  %1817 = vmatprep.subr.mxu0 %v1810
  %1818 = vmatpush1.msra.mxu0 %v1809
  %1819 = vmatprep.subr.mxu0 %v1812
  %1820 = vmatpush1.msra.mxu0 %v1811
  %1821 = vmatprep.subr.mxu0 %v1814
  %1822 = vmatpush1.msra.mxu0 %v1813
  %1823 = vmatprep.subr.mxu0 0.0
  %1824 = vmatpush1.msra.mxu0 0.0
  %1825 = vmatprep.subr.mxu0 0.0
  %1826 = vmatpush1.msra.mxu0 0.0
  %1827 = vmatprep.subr.mxu0 0.0
  %1828 = vmatpush1.msra.mxu0 0.0
  %1829 = vmatprep.subr.mxu0 0.0
  %1830 = vmatpush1.msra.mxu0 0.0
  %1831 = vmatprep.subr.mxu0 0.0
  %1832 = vmatpush1.msra.mxu0 0.0
  %1833 = vmatprep.subr.mxu0 0.0
  %1834 = vmatpush1.msra.mxu0 0.0
  %1835 = vmatprep.subr.mxu0 0.0
  %1836 = vmatpush1.msra.mxu0 0.0
  %1837 = vmatprep.subr.mxu0 0.0
  %1838 = vmatpush1.msra.mxu0 0.0
  %1839 = vmatprep.subr.mxu0 0.0
  %1840 = vmatpush1.msra.mxu0 0.0
  %1841 = vmatprep.subr.mxu0 0.0
  %1842 = vmatpush1.msra.mxu0 0.0
  %1843 = vmatprep.subr.mxu0 0.0
  %1844 = vmatpush1.msra.mxu0 0.0
  %1845 = vmatprep.subr.mxu0 0.0
  %1846 = vmatpush1.msra.mxu0 0.0
  %1847 = vmatprep.subr.mxu0 0.0
  %1848 = vmatpush1.msra.mxu0 0.0
  %1849 = vmatprep.subr.mxu0 0.0
  %1850 = vmatpush1.msra.mxu0 0.0
  %1851 = vmatprep.subr.mxu0 0.0
  %1852 = vmatpush1.msra.mxu0 0.0
  %1853 = vmatprep.subr.mxu0 0.0
  %1854 = vmatpush1.msra.mxu0 0.0
  %1855 = vmatprep.subr.mxu0 0.0
  %1856 = vmatpush1.msra.mxu0 0.0
  %1857 = vmatprep.subr.mxu0 0.0
  %1858 = vmatpush1.msra.mxu0 0.0
  %1859 = vmatprep.subr.mxu0 0.0
  %1860 = vmatpush1.msra.mxu0 0.0
  %1861 = vmatprep.subr.mxu0 0.0
  %1862 = vmatpush1.msra.mxu0 0.0
  %1863 = vmatprep.subr.mxu0 0.0
  %1864 = vmatpush1.msra.mxu0 0.0
  %1865 = vmatprep.subr.mxu0 0.0
  %1866 = vmatpush1.msra.mxu0 0.0
  %1867 = vmatprep.subr.mxu0 0.0
  %1868 = vmatpush1.msra.mxu0 0.0
  %1869 = vmatprep.subr.mxu0 0.0
  %1870 = vmatpush1.msra.mxu0 0.0
  %1871 = vmatprep.subr.mxu0 0.0
  %1872 = vmatpush1.msra.mxu0 0.0
  %1873 = vmatprep.subr.mxu0 0.0
  %1874 = vmatpush1.msra.mxu0 0.0
  %1875 = vmatprep.subr.mxu0 0.0
  %1876 = vmatpush1.msra.mxu0 0.0
  %1877 = vmatprep.subr.mxu0 0.0
  %1878 = vmatpush1.msra.mxu0 0.0
  %1879 = vmatprep.mubr.f32.mxu0 0.0
  %1880 = vmatmul.mubr.f32.gmra.mrb[0].mxu0 %v161
  %v1881 = vpop.f32.mrb[0].mxu0
  %v1882 = vadd.f32 0.0, %v1881
  %v1883 = vpop.f32.mrb[0].mxu0
  %v1884 = vadd.f32 0.0, %v1883
  %1885 = vmatprep.mubr.f32.mxu0 0.0
  %1886 = vmatmul.mubr.f32.gmra.mrb[0].mxu0 %v164
  %v1887 = vpop.f32.mrb[0].mxu0
  %v1888 = vadd.f32 0.0, %v1887
  %v1889 = vpop.f32.mrb[0].mxu0
  %v1890 = vadd.f32 0.0, %v1889
  %1891 = vmatprep.mubr.f32.mxu0 0.0
  %1892 = vmatmul.mubr.f32.gmra.mrb[0].mxu0 %v167
  %v1893 = vpop.f32.mrb[0].mxu0
  %v1894 = vadd.f32 0.0, %v1893
  %v1895 = vpop.f32.mrb[0].mxu0
  %v1896 = vadd.f32 0.0, %v1895
  %1897 = vmatprep.mubr.f32.mxu0 0.0
  %1898 = vmatmul.mubr.f32.gmra.mrb[0].mxu0 %v170
  %v1899 = vpop.f32.mrb[0].mxu0
  %v1900 = vadd.f32 0.0, %v1899
  %v1901 = vpop.f32.mrb[0].mxu0
  %v1902 = vadd.f32 0.0, %v1901
  %1903 = vmatprep.mubr.f32.mxu0 0.0
  %1904 = vmatmul.mubr.f32.gmra.mrb[0].mxu0 %v173
  %v1905 = vpop.f32.mrb[0].mxu0
  %v1906 = vadd.f32 0.0, %v1905
  %v1907 = vpop.f32.mrb[0].mxu0
  %v1908 = vadd.f32 0.0, %v1907
  %1909 = vmatprep.mubr.f32.mxu0 0.0
  %1910 = vmatmul.mubr.f32.gmra.mrb[0].mxu0 %v176
  %v1911 = vpop.f32.mrb[0].mxu0
  %v1912 = vadd.f32 0.0, %v1911
  %v1913 = vpop.f32.mrb[0].mxu0
  %v1914 = vadd.f32 0.0, %v1913
  %1915 = vmatprep.mubr.f32.mxu0 0.0
  %1916 = vmatmul.mubr.f32.gmra.mrb[0].mxu0 %v179
  %v1917 = vpop.f32.mrb[0].mxu0
  %v1918 = vadd.f32 0.0, %v1917
  %v1919 = vpop.f32.mrb[0].mxu0
  %v1920 = vadd.f32 0.0, %v1919
  %1921 = vmatprep.mubr.f32.mxu0 0.0
  %1922 = vmatmul.mubr.f32.gmra.mrb[0].mxu0 %v182
  %v1923 = vpop.f32.mrb[0].mxu0
  %v1924 = vadd.f32 0.0, %v1923
  %v1925 = vpop.f32.mrb[0].mxu0
  %v1926 = vadd.f32 0.0, %v1925
  %1927 = vmatprep.mubr.f32.mxu0 0.0
  %1928 = vmatmul.mubr.f32.gmra.mrb[0].mxu0 %v185
  %v1929 = vpop.f32.mrb[0].mxu0
  %v1930 = vadd.f32 0.0, %v1929
  %v1931 = vpop.f32.mrb[0].mxu0
  %v1932 = vadd.f32 0.0, %v1931
  %1933 = vmatprep.mubr.f32.mxu0 0.0
  %1934 = vmatmul.mubr.f32.gmra.mrb[0].mxu0 %v188
  %v1935 = vpop.f32.mrb[0].mxu0
  %v1936 = vadd.f32 0.0, %v1935
  %v1937 = vpop.f32.mrb[0].mxu0
  %v1938 = vadd.f32 0.0, %v1937
  %1939 = vmatprep.mubr.f32.mxu0 0.0
  %1940 = vmatmul.mubr.f32.gmra.mrb[0].mxu0 %v191
  %v1941 = vpop.f32.mrb[0].mxu0
  %v1942 = vadd.f32 0.0, %v1941
  %v1943 = vpop.f32.mrb[0].mxu0
  %v1944 = vadd.f32 0.0, %v1943
  %1945 = vmatprep.mubr.f32.mxu0 0.0
  %1946 = vmatmul.mubr.f32.gmra.mrb[0].mxu0 %v194
  %v1947 = vpop.f32.mrb[0].mxu0
  %v1948 = vadd.f32 0.0, %v1947
  %v1949 = vpop.f32.mrb[0].mxu0
  %v1950 = vadd.f32 0.0, %v1949
  %1951 = vmatprep.mubr.f32.mxu0 0.0
  %1952 = vmatmul.mubr.f32.gmra.mrb[0].mxu0 %v197
  %v1953 = vpop.f32.mrb[0].mxu0
  %v1954 = vadd.f32 0.0, %v1953
  %v1955 = vpop.f32.mrb[0].mxu0
  %v1956 = vadd.f32 0.0, %v1955
  %1957 = vmatprep.mubr.f32.mxu0 0.0
  %1958 = vmatmul.mubr.f32.gmra.mrb[0].mxu0 %v200
  %v1959 = vpop.f32.mrb[0].mxu0
  %v1960 = vadd.f32 0.0, %v1959
  %v1961 = vpop.f32.mrb[0].mxu0
  %v1962 = vadd.f32 0.0, %v1961
  %1963 = vmatprep.mubr.f32.mxu0 0.0
  %1964 = vmatmul.mubr.f32.gmra.mrb[0].mxu0 %v203
  %v1965 = vpop.f32.mrb[0].mxu0
  %v1966 = vadd.f32 0.0, %v1965
  %v1967 = vpop.f32.mrb[0].mxu0
  %v1968 = vadd.f32 0.0, %v1967
  %1969 = vmatprep.mubr.f32.mxu0 0.0
  %1970 = vmatmul.mubr.f32.gmra.mrb[0].mxu0 %v206
  %v1971 = vpop.f32.mrb[0].mxu0
  %v1972 = vadd.f32 0.0, %v1971
  %v1973 = vpop.f32.mrb[0].mxu0
  %v1974 = vadd.f32 0.0, %v1973
  %1975 = vdwg.mxu0
  %v1976 = vrot.slane %v1882, 3
  %v1977 = vrot.slane %v1884, 3
  %v1978 = vrot.slane %v1888, 3
  %v1979 = vrot.slane %v1890, 3
  %v1980 = vrot.slane %v1894, 3
  %v1981 = vrot.slane %v1896, 3
  %v1982 = vrot.slane %v1900, 3
  %v1983 = vrot.slane %v1902, 3
  %v1984 = vrot.slane %v1906, 3
  %v1985 = vrot.slane %v1908, 3
  %v1986 = vrot.slane %v1912, 3
  %v1987 = vrot.slane %v1914, 3
  %v1988 = vrot.slane %v1918, 3
  %v1989 = vrot.slane %v1920, 3
  %v1990 = vrot.slane %v1924, 3
  %v1991 = vrot.slane %v1926, 3
  %v1992 = vrot.slane %v1930, 3
  %v1993 = vrot.slane %v1932, 3
  %v1994 = vrot.slane %v1936, 3
  %v1995 = vrot.slane %v1938, 3
  %v1996 = vrot.slane %v1942, 3
  %v1997 = vrot.slane %v1944, 3
  %v1998 = vrot.slane %v1948, 3
  %v1999 = vrot.slane %v1950, 3
  %v2000 = vrot.slane %v1954, 3
  %v2001 = vrot.slane %v1956, 3
  %v2002 = vrot.slane %v1960, 3
  %v2003 = vrot.slane %v1962, 3
  %v2004 = vrot.slane %v1966, 3
  %v2005 = vrot.slane %v1968, 3
  %v2006 = vrot.slane %v1972, 3
  %v2007 = vrot.slane %v1974, 3
  %vm2008 = vcmp.lt.s32.totalorder %v402, 5
  %v2009 = vsel %vm2008, %v2004, %v2006
  %v2010 = vsel %vm2008, %v2005, %v2007
  %v2011 = vsel %vm2008, %v2002, %v2004
  %v2012 = vsel %vm2008, %v2003, %v2005
  %v2013 = vsel %vm2008, %v2000, %v2002
  %v2014 = vsel %vm2008, %v2001, %v2003
  %v2015 = vsel %vm2008, %v1998, %v2000
  %v2016 = vsel %vm2008, %v1999, %v2001
  %v2017 = vsel %vm2008, %v1996, %v1998
  %v2018 = vsel %vm2008, %v1997, %v1999
  %v2019 = vsel %vm2008, %v1994, %v1996
  %v2020 = vsel %vm2008, %v1995, %v1997
  %v2021 = vsel %vm2008, %v1992, %v1994
  %v2022 = vsel %vm2008, %v1993, %v1995
  %v2023 = vsel %vm2008, %v1990, %v1992
  %v2024 = vsel %vm2008, %v1991, %v1993
  %v2025 = vsel %vm2008, %v1988, %v1990
  %v2026 = vsel %vm2008, %v1989, %v1991
  %v2027 = vsel %vm2008, %v1986, %v1988
  %v2028 = vsel %vm2008, %v1987, %v1989
  %v2029 = vsel %vm2008, %v1984, %v1986
  %v2030 = vsel %vm2008, %v1985, %v1987
  %v2031 = vsel %vm2008, %v1982, %v1984
  %v2032 = vsel %vm2008, %v1983, %v1985
  %v2033 = vsel %vm2008, %v1980, %v1982
  %v2034 = vsel %vm2008, %v1981, %v1983
  %v2035 = vsel %vm2008, %v1978, %v1980
  %v2036 = vsel %vm2008, %v1979, %v1981
  %v2037 = vsel %vm2008, %v1976, %v1978
  %v2038 = vsel %vm2008, %v1977, %v1979
  %v2039 = vsel %vm2008, %v2006, %v1976
  %v2040 = vsel %vm2008, %v2007, %v1977
  %v2041 = vadd.f32 %v1774, %v2037
  %v2042 = vadd.f32 %v1775, %v2038
  %v2043 = vadd.f32 %v1776, %v2035
  %v2044 = vadd.f32 %v1777, %v2036
  %v2045 = vadd.f32 %v1778, %v2033
  %v2046 = vadd.f32 %v1779, %v2034
  %v2047 = vadd.f32 %v1780, %v2031
  %v2048 = vadd.f32 %v1781, %v2032
  %v2049 = vadd.f32 %v1782, %v2029
  %v2050 = vadd.f32 %v1783, %v2030
  %v2051 = vadd.f32 %v1784, %v2027
  %v2052 = vadd.f32 %v1785, %v2028
  %v2053 = vadd.f32 %v1786, %v2025
  %v2054 = vadd.f32 %v1787, %v2026
  %v2055 = vadd.f32 %v1788, %v2023
  %v2056 = vadd.f32 %v1789, %v2024
  %v2057 = vadd.f32 %v1790, %v2021
  %v2058 = vadd.f32 %v1791, %v2022
  %v2059 = vadd.f32 %v1792, %v2019
  %v2060 = vadd.f32 %v1793, %v2020
  %v2061 = vadd.f32 %v1794, %v2017
  %v2062 = vadd.f32 %v1795, %v2018
  %v2063 = vadd.f32 %v1796, %v2015
  %v2064 = vadd.f32 %v1797, %v2016
  %v2065 = vadd.f32 %v1798, %v2013
  %v2066 = vadd.f32 %v1799, %v2014
  %v2067 = vadd.f32 %v1800, %v2011
  %v2068 = vadd.f32 %v1801, %v2012
  %v2069 = vadd.f32 %v1802, %v2009
  %v2070 = vadd.f32 %v1803, %v2010
  %v2071 = vadd.f32 %v1804, %v2039
  %v2072 = vadd.f32 %v1805, %v2040
  %v2073 = vld [vmem:[%s7] sm:$0x3]
  %v2075 = vlaneseq
  %v2076 = vshrl.u32 %v2075, 7
  %v2077 = vsub.s32 0, %v2076
  %v2078 = vrot.slane %v2073, %v2077
  %v2079 = vlaneseq
  %v2080 = vshrl.u32 %v2079, 7
  %v2081 = vsub.s32 1, %v2080
  %v2082 = vrot.slane %v2073, %v2081
  %v2085 = vadd.f32 %v2041, %v2078
  %v2086 = vadd.f32 %v2042, %v2082
  %v2087 = vadd.f32 %v2043, %v2078
  %v2088 = vadd.f32 %v2044, %v2082
  %v2089 = vadd.f32 %v2045, %v2078
  %v2090 = vadd.f32 %v2046, %v2082
  %v2091 = vadd.f32 %v2047, %v2078
  %v2092 = vadd.f32 %v2048, %v2082
  %v2093 = vadd.f32 %v2049, %v2078
  %v2094 = vadd.f32 %v2050, %v2082
  %v2095 = vadd.f32 %v2051, %v2078
  %v2096 = vadd.f32 %v2052, %v2082
  %v2097 = vadd.f32 %v2053, %v2078
  %v2098 = vadd.f32 %v2054, %v2082
  %v2099 = vadd.f32 %v2055, %v2078
  %v2100 = vadd.f32 %v2056, %v2082
  %v2101 = vadd.f32 %v2057, %v2078
  %v2102 = vadd.f32 %v2058, %v2082
  %v2103 = vadd.f32 %v2059, %v2078
  %v2104 = vadd.f32 %v2060, %v2082
  %v2105 = vadd.f32 %v2061, %v2078
  %v2106 = vadd.f32 %v2062, %v2082
  %v2107 = vadd.f32 %v2063, %v2078
  %v2108 = vadd.f32 %v2064, %v2082
  %v2109 = vadd.f32 %v2065, %v2078
  %v2110 = vadd.f32 %v2066, %v2082
  %v2111 = vadd.f32 %v2067, %v2078
  %v2112 = vadd.f32 %v2068, %v2082
  %v2113 = vadd.f32 %v2069, %v2078
  %v2114 = vadd.f32 %v2070, %v2082
  %v2115 = vadd.f32 %v2071, %v2078
  %v2116 = vadd.f32 %v2072, %v2082
  %v2117 = vtanh.pop %v2085
  %v2118 = vtanh.pop %v2087
  %v2119 = vtanh.pop %v2089
  %v2120 = vtanh.pop %v2091
  %v2121 = vtanh.pop %v2093
  %v2122 = vtanh.pop %v2095
  %v2123 = vtanh.pop %v2097
  %v2124 = vtanh.pop %v2099
  %v2125 = vtanh.pop %v2101
  %v2126 = vtanh.pop %v2103
  %v2127 = vtanh.pop %v2105
  %v2128 = vtanh.pop %v2107
  %v2129 = vtanh.pop %v2109
  %v2130 = vtanh.pop %v2111
  %v2131 = vtanh.pop %v2113
  %v2132 = vtanh.pop %v2115
  %v2133 = vadd.f32 %v2086, %v977
  %v2134 = vadd.f32 %v2088, %v977
  %v2135 = vadd.f32 %v2090, %v981
  %v2136 = vadd.f32 %v2092, %v981
  %v2137 = vadd.f32 %v2094, %v985
  %v2138 = vadd.f32 %v2096, %v985
  %v2139 = vadd.f32 %v2098, %v989
  %v2140 = vadd.f32 %v2100, %v989
  %v2141 = vadd.f32 %v2102, %v993
  %v2142 = vadd.f32 %v2104, %v993
  %v2143 = vadd.f32 %v2106, %v997
  %v2144 = vadd.f32 %v2108, %v997
  %v2145 = vadd.f32 %v2110, %v1001
  %v2146 = vadd.f32 %v2112, %v1001
  %v2147 = vadd.f32 %v2114, %v1005
  %v2148 = vadd.f32 %v2116, %v1005
  %v2149 = vmax.f32 %v2133, 0.0
  %v2150 = vmax.f32 %v2134, 0.0
  %v2151 = vmax.f32 %v2135, 0.0
  %v2152 = vmax.f32 %v2136, 0.0
  %v2153 = vmax.f32 %v2137, 0.0
  %v2154 = vmax.f32 %v2138, 0.0
  %v2155 = vmax.f32 %v2139, 0.0
  %v2156 = vmax.f32 %v2140, 0.0
  %v2157 = vmax.f32 %v2141, 0.0
  %v2158 = vmax.f32 %v2142, 0.0
  %v2159 = vmax.f32 %v2143, 0.0
  %v2160 = vmax.f32 %v2144, 0.0
  %v2161 = vmax.f32 %v2145, 0.0
  %v2162 = vmax.f32 %v2146, 0.0
  %v2163 = vmax.f32 %v2147, 0.0
  %v2164 = vmax.f32 %v2148, 0.0
  %v2165 = vmul.f32 %v2117, %v2149
  %v2166 = vmul.f32 %v2118, %v2150
  %v2167 = vmul.f32 %v2119, %v2151
  %v2168 = vmul.f32 %v2120, %v2152
  %v2169 = vmul.f32 %v2121, %v2153
  %v2170 = vmul.f32 %v2122, %v2154
  %v2171 = vmul.f32 %v2123, %v2155
  %v2172 = vmul.f32 %v2124, %v2156
  %v2173 = vmul.f32 %v2125, %v2157
  %v2174 = vmul.f32 %v2126, %v2158
  %v2175 = vmul.f32 %v2127, %v2159
  %v2176 = vmul.f32 %v2128, %v2160
  %v2177 = vmul.f32 %v2129, %v2161
  %v2178 = vmul.f32 %v2130, %v2162
  %v2179 = vmul.f32 %v2131, %v2163
  %v2180 = vmul.f32 %v2132, %v2164
  %vm2181 = vcmp.lt.s32.totalorder %v402, 13
  %vm2182 = vcmp.lt.s32.totalorder %v1062, 13
  %v2183 = vsel %vm2181, %v2165, -1e+30
  %v2184 = vsel %vm2182, %v2166, -1e+30
  %v2185 = vsel %vm2181, %v2167, -1e+30
  %v2186 = vsel %vm2182, %v2168, -1e+30
  %v2187 = vsel %vm2181, %v2169, -1e+30
  %v2188 = vsel %vm2182, %v2170, -1e+30
  %v2189 = vsel %vm2181, %v2171, -1e+30
  %v2190 = vsel %vm2182, %v2172, -1e+30
  %v2191 = vsel %vm2181, %v2173, -1e+30
  %v2192 = vsel %vm2182, %v2174, -1e+30
  %v2193 = vsel %vm2181, %v2175, -1e+30
  %v2194 = vsel %vm2182, %v2176, -1e+30
  %v2195 = vsel %vm2181, %v2177, -1e+30
  %v2196 = vsel %vm2182, %v2178, -1e+30
  %v2197 = vsel %vm2181, %v2179, -1e+30
  %v2198 = vsel %vm2182, %v2180, -1e+30
  %v2199 = vmax.f32 %v2183, %v2184
  %v2200 = vrot.slane %v2199, 4
  %v2201 = vmax.f32 %v2199, %v2200
  %v2202 = vrot.slane %v2201, 2
  %v2203 = vmax.f32 %v2201, %v2202
  %v2204 = vrot.slane %v2203, 1
  %v2205 = vmax.f32 %v2203, %v2204
  %v2206 = vmax.f32 %v2185, %v2186
  %v2207 = vrot.slane %v2206, 4
  %v2208 = vmax.f32 %v2206, %v2207
  %v2209 = vrot.slane %v2208, 2
  %v2210 = vmax.f32 %v2208, %v2209
  %v2211 = vrot.slane %v2210, 1
  %v2212 = vmax.f32 %v2210, %v2211
  %v2213 = vmax.f32 %v2187, %v2188
  %v2214 = vrot.slane %v2213, 4
  %v2215 = vmax.f32 %v2213, %v2214
  %v2216 = vrot.slane %v2215, 2
  %v2217 = vmax.f32 %v2215, %v2216
  %v2218 = vrot.slane %v2217, 1
  %v2219 = vmax.f32 %v2217, %v2218
  %v2220 = vmax.f32 %v2189, %v2190
  %v2221 = vrot.slane %v2220, 4
  %v2222 = vmax.f32 %v2220, %v2221
  %v2223 = vrot.slane %v2222, 2
  %v2224 = vmax.f32 %v2222, %v2223
  %v2225 = vrot.slane %v2224, 1
  %v2226 = vmax.f32 %v2224, %v2225
  %v2227 = vmax.f32 %v2191, %v2192
  %v2228 = vrot.slane %v2227, 4
  %v2229 = vmax.f32 %v2227, %v2228
  %v2230 = vrot.slane %v2229, 2
  %v2231 = vmax.f32 %v2229, %v2230
  %v2232 = vrot.slane %v2231, 1
  %v2233 = vmax.f32 %v2231, %v2232
  %v2234 = vmax.f32 %v2193, %v2194
  %v2235 = vrot.slane %v2234, 4
  %v2236 = vmax.f32 %v2234, %v2235
  %v2237 = vrot.slane %v2236, 2
  %v2238 = vmax.f32 %v2236, %v2237
  %v2239 = vrot.slane %v2238, 1
  %v2240 = vmax.f32 %v2238, %v2239
  %v2241 = vmax.f32 %v2195, %v2196
  %v2242 = vrot.slane %v2241, 4
  %v2243 = vmax.f32 %v2241, %v2242
  %v2244 = vrot.slane %v2243, 2
  %v2245 = vmax.f32 %v2243, %v2244
  %v2246 = vrot.slane %v2245, 1
  %v2247 = vmax.f32 %v2245, %v2246
  %v2248 = vmax.f32 %v2197, %v2198
  %v2249 = vrot.slane %v2248, 4
  %v2250 = vmax.f32 %v2248, %v2249
  %v2251 = vrot.slane %v2250, 2
  %v2252 = vmax.f32 %v2250, %v2251
  %v2253 = vrot.slane %v2252, 1
  %v2254 = vmax.f32 %v2252, %v2253
  %v2255 = vld [vmem:[%s8] sm:$0xff]
  %v2256 = vld [vmem:[%s8 + $0x8] sm:$0xff]
  %v2257 = vld [vmem:[%s8 + $0x10] sm:$0xff]
  %v2258 = vld [vmem:[%s8 + $0x18] sm:$0xff]
  %v2259 = vld [vmem:[%s8 + $0x20] sm:$0xff]
  %v2260 = vld [vmem:[%s8 + $0x28] sm:$0xff]
  %v2261 = vld [vmem:[%s8 + $0x30] sm:$0xff]
  %v2262 = vld [vmem:[%s8 + $0x38] sm:$0xff]
  %s2263 = scalar_lea.vmem %s8, 64
  %v2264 = vld [vmem:[%s2263] sm:$0xff]
  %v2265 = vld [vmem:[%s2263 + $0x8] sm:$0xff]
  %v2266 = vld [vmem:[%s2263 + $0x10] sm:$0xff]
  %v2267 = vld [vmem:[%s2263 + $0x18] sm:$0xff]
  %v2268 = vld [vmem:[%s2263 + $0x20] sm:$0xff]
  %v2269 = vld [vmem:[%s2263 + $0x28] sm:$0xff]
  %v2270 = vld [vmem:[%s2263 + $0x30] sm:$0xff]
  %v2271 = vld [vmem:[%s2263 + $0x38] sm:$0xff]
  %2272 = vmatprep.subr.mxu0 %v2265
  %2273 = vmatpush1.msra.mxu0 %v2264
  %2274 = vmatprep.subr.mxu0 %v2267
  %2275 = vmatpush1.msra.mxu0 %v2266
  %2276 = vmatprep.subr.mxu0 %v2269
  %2277 = vmatpush1.msra.mxu0 %v2268
  %2278 = vmatprep.subr.mxu0 %v2271
  %2279 = vmatpush1.msra.mxu0 %v2270
  %2280 = vmatprep.subr.mxu0 0.0
  %2281 = vmatpush1.msra.mxu0 0.0
  %2282 = vmatprep.subr.mxu0 0.0
  %2283 = vmatpush1.msra.mxu0 0.0
  %2284 = vmatprep.subr.mxu0 0.0
  %2285 = vmatpush1.msra.mxu0 0.0
  %2286 = vmatprep.subr.mxu0 0.0
  %2287 = vmatpush1.msra.mxu0 0.0
  %2288 = vmatprep.subr.mxu0 0.0
  %2289 = vmatpush1.msra.mxu0 0.0
  %2290 = vmatprep.subr.mxu0 0.0
  %2291 = vmatpush1.msra.mxu0 0.0
  %2292 = vmatprep.subr.mxu0 0.0
  %2293 = vmatpush1.msra.mxu0 0.0
  %2294 = vmatprep.subr.mxu0 0.0
  %2295 = vmatpush1.msra.mxu0 0.0
  %2296 = vmatprep.subr.mxu0 0.0
  %2297 = vmatpush1.msra.mxu0 0.0
  %2298 = vmatprep.subr.mxu0 0.0
  %2299 = vmatpush1.msra.mxu0 0.0
  %2300 = vmatprep.subr.mxu0 0.0
  %2301 = vmatpush1.msra.mxu0 0.0
  %2302 = vmatprep.subr.mxu0 0.0
  %2303 = vmatpush1.msra.mxu0 0.0
  %2304 = vmatprep.subr.mxu0 0.0
  %2305 = vmatpush1.msra.mxu0 0.0
  %2306 = vmatprep.subr.mxu0 0.0
  %2307 = vmatpush1.msra.mxu0 0.0
  %2308 = vmatprep.subr.mxu0 0.0
  %2309 = vmatpush1.msra.mxu0 0.0
  %2310 = vmatprep.subr.mxu0 0.0
  %2311 = vmatpush1.msra.mxu0 0.0
  %2312 = vmatprep.subr.mxu0 0.0
  %2313 = vmatpush1.msra.mxu0 0.0
  %2314 = vmatprep.subr.mxu0 0.0
  %2315 = vmatpush1.msra.mxu0 0.0
  %2316 = vmatprep.subr.mxu0 0.0
  %2317 = vmatpush1.msra.mxu0 0.0
  %2318 = vmatprep.subr.mxu0 0.0
  %2319 = vmatpush1.msra.mxu0 0.0
  %2320 = vmatprep.subr.mxu0 0.0
  %2321 = vmatpush1.msra.mxu0 0.0
  %2322 = vmatprep.subr.mxu0 0.0
  %2323 = vmatpush1.msra.mxu0 0.0
  %2324 = vmatprep.subr.mxu0 0.0
  %2325 = vmatpush1.msra.mxu0 0.0
  %2326 = vmatprep.subr.mxu0 0.0
  %2327 = vmatpush1.msra.mxu0 0.0
  %2328 = vmatprep.subr.mxu0 0.0
  %2329 = vmatpush1.msra.mxu0 0.0
  %2330 = vmatprep.subr.mxu0 0.0
  %2331 = vmatpush1.msra.mxu0 0.0
  %2332 = vmatprep.subr.mxu0 0.0
  %2333 = vmatpush1.msra.mxu0 0.0
  %2334 = vmatprep.subr.mxu0 0.0
  %2335 = vmatpush1.msra.mxu0 0.0
  %2336 = vmatprep.mubr.f32.mxu0 0.0
  %2337 = vmatmul.mubr.f32.gmra.mrb[0].mxu0 %v161
  %v2338 = vpop.f32.mrb[0].mxu0
  %v2339 = vadd.f32 0.0, %v2338
  %v2340 = vpop.f32.mrb[0].mxu0
  %v2341 = vadd.f32 0.0, %v2340
  %2342 = vmatprep.mubr.f32.mxu0 0.0
  %2343 = vmatmul.mubr.f32.gmra.mrb[0].mxu0 %v164
  %v2344 = vpop.f32.mrb[0].mxu0
  %v2345 = vadd.f32 0.0, %v2344
  %v2346 = vpop.f32.mrb[0].mxu0
  %v2347 = vadd.f32 0.0, %v2346
  %2348 = vmatprep.mubr.f32.mxu0 0.0
  %2349 = vmatmul.mubr.f32.gmra.mrb[0].mxu0 %v167
  %v2350 = vpop.f32.mrb[0].mxu0
  %v2351 = vadd.f32 0.0, %v2350
  %v2352 = vpop.f32.mrb[0].mxu0
  %v2353 = vadd.f32 0.0, %v2352
  %2354 = vmatprep.mubr.f32.mxu0 0.0
  %2355 = vmatmul.mubr.f32.gmra.mrb[0].mxu0 %v170
  %v2356 = vpop.f32.mrb[0].mxu0
  %v2357 = vadd.f32 0.0, %v2356
  %v2358 = vpop.f32.mrb[0].mxu0
  %v2359 = vadd.f32 0.0, %v2358
  %2360 = vmatprep.mubr.f32.mxu0 0.0
  %2361 = vmatmul.mubr.f32.gmra.mrb[0].mxu0 %v173
  %v2362 = vpop.f32.mrb[0].mxu0
  %v2363 = vadd.f32 0.0, %v2362
  %v2364 = vpop.f32.mrb[0].mxu0
  %v2365 = vadd.f32 0.0, %v2364
  %2366 = vmatprep.mubr.f32.mxu0 0.0
  %2367 = vmatmul.mubr.f32.gmra.mrb[0].mxu0 %v176
  %v2368 = vpop.f32.mrb[0].mxu0
  %v2369 = vadd.f32 0.0, %v2368
  %v2370 = vpop.f32.mrb[0].mxu0
  %v2371 = vadd.f32 0.0, %v2370
  %2372 = vmatprep.mubr.f32.mxu0 0.0
  %2373 = vmatmul.mubr.f32.gmra.mrb[0].mxu0 %v179
  %v2374 = vpop.f32.mrb[0].mxu0
  %v2375 = vadd.f32 0.0, %v2374
  %v2376 = vpop.f32.mrb[0].mxu0
  %v2377 = vadd.f32 0.0, %v2376
  %2378 = vmatprep.mubr.f32.mxu0 0.0
  %2379 = vmatmul.mubr.f32.gmra.mrb[0].mxu0 %v182
  %v2380 = vpop.f32.mrb[0].mxu0
  %v2381 = vadd.f32 0.0, %v2380
  %v2382 = vpop.f32.mrb[0].mxu0
  %v2383 = vadd.f32 0.0, %v2382
  %2384 = vmatprep.mubr.f32.mxu0 0.0
  %2385 = vmatmul.mubr.f32.gmra.mrb[0].mxu0 %v185
  %v2386 = vpop.f32.mrb[0].mxu0
  %v2387 = vadd.f32 0.0, %v2386
  %v2388 = vpop.f32.mrb[0].mxu0
  %v2389 = vadd.f32 0.0, %v2388
  %2390 = vmatprep.mubr.f32.mxu0 0.0
  %2391 = vmatmul.mubr.f32.gmra.mrb[0].mxu0 %v188
  %v2392 = vpop.f32.mrb[0].mxu0
  %v2393 = vadd.f32 0.0, %v2392
  %v2394 = vpop.f32.mrb[0].mxu0
  %v2395 = vadd.f32 0.0, %v2394
  %2396 = vmatprep.mubr.f32.mxu0 0.0
  %2397 = vmatmul.mubr.f32.gmra.mrb[0].mxu0 %v191
  %v2398 = vpop.f32.mrb[0].mxu0
  %v2399 = vadd.f32 0.0, %v2398
  %v2400 = vpop.f32.mrb[0].mxu0
  %v2401 = vadd.f32 0.0, %v2400
  %2402 = vmatprep.mubr.f32.mxu0 0.0
  %2403 = vmatmul.mubr.f32.gmra.mrb[0].mxu0 %v194
  %v2404 = vpop.f32.mrb[0].mxu0
  %v2405 = vadd.f32 0.0, %v2404
  %v2406 = vpop.f32.mrb[0].mxu0
  %v2407 = vadd.f32 0.0, %v2406
  %2408 = vmatprep.mubr.f32.mxu0 0.0
  %2409 = vmatmul.mubr.f32.gmra.mrb[0].mxu0 %v197
  %v2410 = vpop.f32.mrb[0].mxu0
  %v2411 = vadd.f32 0.0, %v2410
  %v2412 = vpop.f32.mrb[0].mxu0
  %v2413 = vadd.f32 0.0, %v2412
  %2414 = vmatprep.mubr.f32.mxu0 0.0
  %2415 = vmatmul.mubr.f32.gmra.mrb[0].mxu0 %v200
  %v2416 = vpop.f32.mrb[0].mxu0
  %v2417 = vadd.f32 0.0, %v2416
  %v2418 = vpop.f32.mrb[0].mxu0
  %v2419 = vadd.f32 0.0, %v2418
  %2420 = vmatprep.mubr.f32.mxu0 0.0
  %2421 = vmatmul.mubr.f32.gmra.mrb[0].mxu0 %v203
  %v2422 = vpop.f32.mrb[0].mxu0
  %v2423 = vadd.f32 0.0, %v2422
  %v2424 = vpop.f32.mrb[0].mxu0
  %v2425 = vadd.f32 0.0, %v2424
  %2426 = vmatprep.mubr.f32.mxu0 0.0
  %2427 = vmatmul.mubr.f32.gmra.mrb[0].mxu0 %v206
  %v2428 = vpop.f32.mrb[0].mxu0
  %v2429 = vadd.f32 0.0, %v2428
  %v2430 = vpop.f32.mrb[0].mxu0
  %v2431 = vadd.f32 0.0, %v2430
  %2432 = vdwg.mxu0
  %v2433 = vrot.slane %v2339, 1
  %v2434 = vrot.slane %v2341, 1
  %v2435 = vrot.slane %v2345, 1
  %v2436 = vrot.slane %v2347, 1
  %v2437 = vrot.slane %v2351, 1
  %v2438 = vrot.slane %v2353, 1
  %v2439 = vrot.slane %v2357, 1
  %v2440 = vrot.slane %v2359, 1
  %v2441 = vrot.slane %v2363, 1
  %v2442 = vrot.slane %v2365, 1
  %v2443 = vrot.slane %v2369, 1
  %v2444 = vrot.slane %v2371, 1
  %v2445 = vrot.slane %v2375, 1
  %v2446 = vrot.slane %v2377, 1
  %v2447 = vrot.slane %v2381, 1
  %v2448 = vrot.slane %v2383, 1
  %v2449 = vrot.slane %v2387, 1
  %v2450 = vrot.slane %v2389, 1
  %v2451 = vrot.slane %v2393, 1
  %v2452 = vrot.slane %v2395, 1
  %v2453 = vrot.slane %v2399, 1
  %v2454 = vrot.slane %v2401, 1
  %v2455 = vrot.slane %v2405, 1
  %v2456 = vrot.slane %v2407, 1
  %v2457 = vrot.slane %v2411, 1
  %v2458 = vrot.slane %v2413, 1
  %v2459 = vrot.slane %v2417, 1
  %v2460 = vrot.slane %v2419, 1
  %v2461 = vrot.slane %v2423, 1
  %v2462 = vrot.slane %v2425, 1
  %v2463 = vrot.slane %v2429, 1
  %v2464 = vrot.slane %v2431, 1
  %v2465 = vsel %vm403, %v2461, %v2463
  %v2466 = vsel %vm403, %v2462, %v2464
  %v2467 = vsel %vm403, %v2459, %v2461
  %v2468 = vsel %vm403, %v2460, %v2462
  %v2469 = vsel %vm403, %v2457, %v2459
  %v2470 = vsel %vm403, %v2458, %v2460
  %v2471 = vsel %vm403, %v2455, %v2457
  %v2472 = vsel %vm403, %v2456, %v2458
  %v2473 = vsel %vm403, %v2453, %v2455
  %v2474 = vsel %vm403, %v2454, %v2456
  %v2475 = vsel %vm403, %v2451, %v2453
  %v2476 = vsel %vm403, %v2452, %v2454
  %v2477 = vsel %vm403, %v2449, %v2451
  %v2478 = vsel %vm403, %v2450, %v2452
  %v2479 = vsel %vm403, %v2447, %v2449
  %v2480 = vsel %vm403, %v2448, %v2450
  %v2481 = vsel %vm403, %v2445, %v2447
  %v2482 = vsel %vm403, %v2446, %v2448
  %v2483 = vsel %vm403, %v2443, %v2445
  %v2484 = vsel %vm403, %v2444, %v2446
  %v2485 = vsel %vm403, %v2441, %v2443
  %v2486 = vsel %vm403, %v2442, %v2444
  %v2487 = vsel %vm403, %v2439, %v2441
  %v2488 = vsel %vm403, %v2440, %v2442
  %v2489 = vsel %vm403, %v2437, %v2439
  %v2490 = vsel %vm403, %v2438, %v2440
  %v2491 = vsel %vm403, %v2435, %v2437
  %v2492 = vsel %vm403, %v2436, %v2438
  %v2493 = vsel %vm403, %v2433, %v2435
  %v2494 = vsel %vm403, %v2434, %v2436
  %v2495 = vsel %vm403, %v2463, %v2433
  %v2496 = vsel %vm403, %v2464, %v2434
  %2497 = vmatprep.subr.mxu0 %v2256
  %2498 = vmatpush1.msra.mxu0 %v2255
  %2499 = vmatprep.subr.mxu0 %v2258
  %2500 = vmatpush1.msra.mxu0 %v2257
  %2501 = vmatprep.subr.mxu0 %v2260
  %2502 = vmatpush1.msra.mxu0 %v2259
  %2503 = vmatprep.subr.mxu0 %v2262
  %2504 = vmatpush1.msra.mxu0 %v2261
  %2505 = vmatprep.subr.mxu0 0.0
  %2506 = vmatpush1.msra.mxu0 0.0
  %2507 = vmatprep.subr.mxu0 0.0
  %2508 = vmatpush1.msra.mxu0 0.0
  %2509 = vmatprep.subr.mxu0 0.0
  %2510 = vmatpush1.msra.mxu0 0.0
  %2511 = vmatprep.subr.mxu0 0.0
  %2512 = vmatpush1.msra.mxu0 0.0
  %2513 = vmatprep.subr.mxu0 0.0
  %2514 = vmatpush1.msra.mxu0 0.0
  %2515 = vmatprep.subr.mxu0 0.0
  %2516 = vmatpush1.msra.mxu0 0.0
  %2517 = vmatprep.subr.mxu0 0.0
  %2518 = vmatpush1.msra.mxu0 0.0
  %2519 = vmatprep.subr.mxu0 0.0
  %2520 = vmatpush1.msra.mxu0 0.0
  %2521 = vmatprep.subr.mxu0 0.0
  %2522 = vmatpush1.msra.mxu0 0.0
  %2523 = vmatprep.subr.mxu0 0.0
  %2524 = vmatpush1.msra.mxu0 0.0
  %2525 = vmatprep.subr.mxu0 0.0
  %2526 = vmatpush1.msra.mxu0 0.0
  %2527 = vmatprep.subr.mxu0 0.0
  %2528 = vmatpush1.msra.mxu0 0.0
  %2529 = vmatprep.subr.mxu0 0.0
  %2530 = vmatpush1.msra.mxu0 0.0
  %2531 = vmatprep.subr.mxu0 0.0
  %2532 = vmatpush1.msra.mxu0 0.0
  %2533 = vmatprep.subr.mxu0 0.0
  %2534 = vmatpush1.msra.mxu0 0.0
  %2535 = vmatprep.subr.mxu0 0.0
  %2536 = vmatpush1.msra.mxu0 0.0
  %2537 = vmatprep.subr.mxu0 0.0
  %2538 = vmatpush1.msra.mxu0 0.0
  %2539 = vmatprep.subr.mxu0 0.0
  %2540 = vmatpush1.msra.mxu0 0.0
  %2541 = vmatprep.subr.mxu0 0.0
  %2542 = vmatpush1.msra.mxu0 0.0
  %2543 = vmatprep.subr.mxu0 0.0
  %2544 = vmatpush1.msra.mxu0 0.0
  %2545 = vmatprep.subr.mxu0 0.0
  %2546 = vmatpush1.msra.mxu0 0.0
  %2547 = vmatprep.subr.mxu0 0.0
  %2548 = vmatpush1.msra.mxu0 0.0
  %2549 = vmatprep.subr.mxu0 0.0
  %2550 = vmatpush1.msra.mxu0 0.0
  %2551 = vmatprep.subr.mxu0 0.0
  %2552 = vmatpush1.msra.mxu0 0.0
  %2553 = vmatprep.subr.mxu0 0.0
  %2554 = vmatpush1.msra.mxu0 0.0
  %2555 = vmatprep.subr.mxu0 0.0
  %2556 = vmatpush1.msra.mxu0 0.0
  %2557 = vmatprep.subr.mxu0 0.0
  %2558 = vmatpush1.msra.mxu0 0.0
  %2559 = vmatprep.subr.mxu0 0.0
  %2560 = vmatpush1.msra.mxu0 0.0
  %2561 = vmatprep.mubr.f32.mxu0 0.0
  %2562 = vmatmul.mubr.f32.gmra.mrb[0].mxu0 %v161
  %v2563 = vpop.f32.mrb[0].mxu0
  %v2564 = vadd.f32 %v2493, %v2563
  %v2565 = vpop.f32.mrb[0].mxu0
  %v2566 = vadd.f32 %v2494, %v2565
  %2567 = vmatprep.mubr.f32.mxu0 0.0
  %2568 = vmatmul.mubr.f32.gmra.mrb[0].mxu0 %v164
  %v2569 = vpop.f32.mrb[0].mxu0
  %v2570 = vadd.f32 %v2491, %v2569
  %v2571 = vpop.f32.mrb[0].mxu0
  %v2572 = vadd.f32 %v2492, %v2571
  %2573 = vmatprep.mubr.f32.mxu0 0.0
  %2574 = vmatmul.mubr.f32.gmra.mrb[0].mxu0 %v167
  %v2575 = vpop.f32.mrb[0].mxu0
  %v2576 = vadd.f32 %v2489, %v2575
  %v2577 = vpop.f32.mrb[0].mxu0
  %v2578 = vadd.f32 %v2490, %v2577
  %2579 = vmatprep.mubr.f32.mxu0 0.0
  %2580 = vmatmul.mubr.f32.gmra.mrb[0].mxu0 %v170
  %v2581 = vpop.f32.mrb[0].mxu0
  %v2582 = vadd.f32 %v2487, %v2581
  %v2583 = vpop.f32.mrb[0].mxu0
  %v2584 = vadd.f32 %v2488, %v2583
  %2585 = vmatprep.mubr.f32.mxu0 0.0
  %2586 = vmatmul.mubr.f32.gmra.mrb[0].mxu0 %v173
  %v2587 = vpop.f32.mrb[0].mxu0
  %v2588 = vadd.f32 %v2485, %v2587
  %v2589 = vpop.f32.mrb[0].mxu0
  %v2590 = vadd.f32 %v2486, %v2589
  %2591 = vmatprep.mubr.f32.mxu0 0.0
  %2592 = vmatmul.mubr.f32.gmra.mrb[0].mxu0 %v176
  %v2593 = vpop.f32.mrb[0].mxu0
  %v2594 = vadd.f32 %v2483, %v2593
  %v2595 = vpop.f32.mrb[0].mxu0
  %v2596 = vadd.f32 %v2484, %v2595
  %2597 = vmatprep.mubr.f32.mxu0 0.0
  %2598 = vmatmul.mubr.f32.gmra.mrb[0].mxu0 %v179
  %v2599 = vpop.f32.mrb[0].mxu0
  %v2600 = vadd.f32 %v2481, %v2599
  %v2601 = vpop.f32.mrb[0].mxu0
  %v2602 = vadd.f32 %v2482, %v2601
  %2603 = vmatprep.mubr.f32.mxu0 0.0
  %2604 = vmatmul.mubr.f32.gmra.mrb[0].mxu0 %v182
  %v2605 = vpop.f32.mrb[0].mxu0
  %v2606 = vadd.f32 %v2479, %v2605
  %v2607 = vpop.f32.mrb[0].mxu0
  %v2608 = vadd.f32 %v2480, %v2607
  %2609 = vmatprep.mubr.f32.mxu0 0.0
  %2610 = vmatmul.mubr.f32.gmra.mrb[0].mxu0 %v185
  %v2611 = vpop.f32.mrb[0].mxu0
  %v2612 = vadd.f32 %v2477, %v2611
  %v2613 = vpop.f32.mrb[0].mxu0
  %v2614 = vadd.f32 %v2478, %v2613
  %2615 = vmatprep.mubr.f32.mxu0 0.0
  %2616 = vmatmul.mubr.f32.gmra.mrb[0].mxu0 %v188
  %v2617 = vpop.f32.mrb[0].mxu0
  %v2618 = vadd.f32 %v2475, %v2617
  %v2619 = vpop.f32.mrb[0].mxu0
  %v2620 = vadd.f32 %v2476, %v2619
  %2621 = vmatprep.mubr.f32.mxu0 0.0
  %2622 = vmatmul.mubr.f32.gmra.mrb[0].mxu0 %v191
  %v2623 = vpop.f32.mrb[0].mxu0
  %v2624 = vadd.f32 %v2473, %v2623
  %v2625 = vpop.f32.mrb[0].mxu0
  %v2626 = vadd.f32 %v2474, %v2625
  %2627 = vmatprep.mubr.f32.mxu0 0.0
  %2628 = vmatmul.mubr.f32.gmra.mrb[0].mxu0 %v194
  %v2629 = vpop.f32.mrb[0].mxu0
  %v2630 = vadd.f32 %v2471, %v2629
  %v2631 = vpop.f32.mrb[0].mxu0
  %v2632 = vadd.f32 %v2472, %v2631
  %2633 = vmatprep.mubr.f32.mxu0 0.0
  %2634 = vmatmul.mubr.f32.gmra.mrb[0].mxu0 %v197
  %v2635 = vpop.f32.mrb[0].mxu0
  %v2636 = vadd.f32 %v2469, %v2635
  %v2637 = vpop.f32.mrb[0].mxu0
  %v2638 = vadd.f32 %v2470, %v2637
  %2639 = vmatprep.mubr.f32.mxu0 0.0
  %2640 = vmatmul.mubr.f32.gmra.mrb[0].mxu0 %v200
  %v2641 = vpop.f32.mrb[0].mxu0
  %v2642 = vadd.f32 %v2467, %v2641
  %v2643 = vpop.f32.mrb[0].mxu0
  %v2644 = vadd.f32 %v2468, %v2643
  %2645 = vmatprep.mubr.f32.mxu0 0.0
  %2646 = vmatmul.mubr.f32.gmra.mrb[0].mxu0 %v203
  %v2647 = vpop.f32.mrb[0].mxu0
  %v2648 = vadd.f32 %v2465, %v2647
  %v2649 = vpop.f32.mrb[0].mxu0
  %v2650 = vadd.f32 %v2466, %v2649
  %2651 = vmatprep.mubr.f32.mxu0 0.0
  %2652 = vmatmul.mubr.f32.gmra.mrb[0].mxu0 %v206
  %v2653 = vpop.f32.mrb[0].mxu0
  %v2654 = vadd.f32 %v2495, %v2653
  %v2655 = vpop.f32.mrb[0].mxu0
  %v2656 = vadd.f32 %v2496, %v2655
  %2657 = vdwg.mxu0
  %s2658 = scalar_lea.vmem %s8, 128
  %v2659 = vld [vmem:[%s2658] sm:$0xff]
  %v2660 = vld [vmem:[%s2658 + $0x8] sm:$0xff]
  %v2661 = vld [vmem:[%s2658 + $0x10] sm:$0xff]
  %v2662 = vld [vmem:[%s2658 + $0x18] sm:$0xff]
  %v2663 = vld [vmem:[%s2658 + $0x20] sm:$0xff]
  %v2664 = vld [vmem:[%s2658 + $0x28] sm:$0xff]
  %v2665 = vld [vmem:[%s2658 + $0x30] sm:$0xff]
  %v2666 = vld [vmem:[%s2658 + $0x38] sm:$0xff]
  %2667 = vmatprep.subr.mxu0 %v2660
  %2668 = vmatpush1.msra.mxu0 %v2659
  %2669 = vmatprep.subr.mxu0 %v2662
  %2670 = vmatpush1.msra.mxu0 %v2661
  %2671 = vmatprep.subr.mxu0 %v2664
  %2672 = vmatpush1.msra.mxu0 %v2663
  %2673 = vmatprep.subr.mxu0 %v2666
  %2674 = vmatpush1.msra.mxu0 %v2665
  %2675 = vmatprep.subr.mxu0 0.0
  %2676 = vmatpush1.msra.mxu0 0.0
  %2677 = vmatprep.subr.mxu0 0.0
  %2678 = vmatpush1.msra.mxu0 0.0
  %2679 = vmatprep.subr.mxu0 0.0
  %2680 = vmatpush1.msra.mxu0 0.0
  %2681 = vmatprep.subr.mxu0 0.0
  %2682 = vmatpush1.msra.mxu0 0.0
  %2683 = vmatprep.subr.mxu0 0.0
  %2684 = vmatpush1.msra.mxu0 0.0
  %2685 = vmatprep.subr.mxu0 0.0
  %2686 = vmatpush1.msra.mxu0 0.0
  %2687 = vmatprep.subr.mxu0 0.0
  %2688 = vmatpush1.msra.mxu0 0.0
  %2689 = vmatprep.subr.mxu0 0.0
  %2690 = vmatpush1.msra.mxu0 0.0
  %2691 = vmatprep.subr.mxu0 0.0
  %2692 = vmatpush1.msra.mxu0 0.0
  %2693 = vmatprep.subr.mxu0 0.0
  %2694 = vmatpush1.msra.mxu0 0.0
  %2695 = vmatprep.subr.mxu0 0.0
  %2696 = vmatpush1.msra.mxu0 0.0
  %2697 = vmatprep.subr.mxu0 0.0
  %2698 = vmatpush1.msra.mxu0 0.0
  %2699 = vmatprep.subr.mxu0 0.0
  %2700 = vmatpush1.msra.mxu0 0.0
  %2701 = vmatprep.subr.mxu0 0.0
  %2702 = vmatpush1.msra.mxu0 0.0
  %2703 = vmatprep.subr.mxu0 0.0
  %2704 = vmatpush1.msra.mxu0 0.0
  %2705 = vmatprep.subr.mxu0 0.0
  %2706 = vmatpush1.msra.mxu0 0.0
  %2707 = vmatprep.subr.mxu0 0.0
  %2708 = vmatpush1.msra.mxu0 0.0
  %2709 = vmatprep.subr.mxu0 0.0
  %2710 = vmatpush1.msra.mxu0 0.0
  %2711 = vmatprep.subr.mxu0 0.0
  %2712 = vmatpush1.msra.mxu0 0.0
  %2713 = vmatprep.subr.mxu0 0.0
  %2714 = vmatpush1.msra.mxu0 0.0
  %2715 = vmatprep.subr.mxu0 0.0
  %2716 = vmatpush1.msra.mxu0 0.0
  %2717 = vmatprep.subr.mxu0 0.0
  %2718 = vmatpush1.msra.mxu0 0.0
  %2719 = vmatprep.subr.mxu0 0.0
  %2720 = vmatpush1.msra.mxu0 0.0
  %2721 = vmatprep.subr.mxu0 0.0
  %2722 = vmatpush1.msra.mxu0 0.0
  %2723 = vmatprep.subr.mxu0 0.0
  %2724 = vmatpush1.msra.mxu0 0.0
  %2725 = vmatprep.subr.mxu0 0.0
  %2726 = vmatpush1.msra.mxu0 0.0
  %2727 = vmatprep.subr.mxu0 0.0
  %2728 = vmatpush1.msra.mxu0 0.0
  %2729 = vmatprep.subr.mxu0 0.0
  %2730 = vmatpush1.msra.mxu0 0.0
  %2731 = vmatprep.mubr.f32.mxu0 0.0
  %2732 = vmatmul.mubr.f32.gmra.mrb[0].mxu0 %v161
  %v2733 = vpop.f32.mrb[0].mxu0
  %v2734 = vadd.f32 0.0, %v2733
  %v2735 = vpop.f32.mrb[0].mxu0
  %v2736 = vadd.f32 0.0, %v2735
  %2737 = vmatprep.mubr.f32.mxu0 0.0
  %2738 = vmatmul.mubr.f32.gmra.mrb[0].mxu0 %v164
  %v2739 = vpop.f32.mrb[0].mxu0
  %v2740 = vadd.f32 0.0, %v2739
  %v2741 = vpop.f32.mrb[0].mxu0
  %v2742 = vadd.f32 0.0, %v2741
  %2743 = vmatprep.mubr.f32.mxu0 0.0
  %2744 = vmatmul.mubr.f32.gmra.mrb[0].mxu0 %v167
  %v2745 = vpop.f32.mrb[0].mxu0
  %v2746 = vadd.f32 0.0, %v2745
  %v2747 = vpop.f32.mrb[0].mxu0
  %v2748 = vadd.f32 0.0, %v2747
  %2749 = vmatprep.mubr.f32.mxu0 0.0
  %2750 = vmatmul.mubr.f32.gmra.mrb[0].mxu0 %v170
  %v2751 = vpop.f32.mrb[0].mxu0
  %v2752 = vadd.f32 0.0, %v2751
  %v2753 = vpop.f32.mrb[0].mxu0
  %v2754 = vadd.f32 0.0, %v2753
  %2755 = vmatprep.mubr.f32.mxu0 0.0
  %2756 = vmatmul.mubr.f32.gmra.mrb[0].mxu0 %v173
  %v2757 = vpop.f32.mrb[0].mxu0
  %v2758 = vadd.f32 0.0, %v2757
  %v2759 = vpop.f32.mrb[0].mxu0
  %v2760 = vadd.f32 0.0, %v2759
  %2761 = vmatprep.mubr.f32.mxu0 0.0
  %2762 = vmatmul.mubr.f32.gmra.mrb[0].mxu0 %v176
  %v2763 = vpop.f32.mrb[0].mxu0
  %v2764 = vadd.f32 0.0, %v2763
  %v2765 = vpop.f32.mrb[0].mxu0
  %v2766 = vadd.f32 0.0, %v2765
  %2767 = vmatprep.mubr.f32.mxu0 0.0
  %2768 = vmatmul.mubr.f32.gmra.mrb[0].mxu0 %v179
  %v2769 = vpop.f32.mrb[0].mxu0
  %v2770 = vadd.f32 0.0, %v2769
  %v2771 = vpop.f32.mrb[0].mxu0
  %v2772 = vadd.f32 0.0, %v2771
  %2773 = vmatprep.mubr.f32.mxu0 0.0
  %2774 = vmatmul.mubr.f32.gmra.mrb[0].mxu0 %v182
  %v2775 = vpop.f32.mrb[0].mxu0
  %v2776 = vadd.f32 0.0, %v2775
  %v2777 = vpop.f32.mrb[0].mxu0
  %v2778 = vadd.f32 0.0, %v2777
  %2779 = vmatprep.mubr.f32.mxu0 0.0
  %2780 = vmatmul.mubr.f32.gmra.mrb[0].mxu0 %v185
  %v2781 = vpop.f32.mrb[0].mxu0
  %v2782 = vadd.f32 0.0, %v2781
  %v2783 = vpop.f32.mrb[0].mxu0
  %v2784 = vadd.f32 0.0, %v2783
  %2785 = vmatprep.mubr.f32.mxu0 0.0
  %2786 = vmatmul.mubr.f32.gmra.mrb[0].mxu0 %v188
  %v2787 = vpop.f32.mrb[0].mxu0
  %v2788 = vadd.f32 0.0, %v2787
  %v2789 = vpop.f32.mrb[0].mxu0
  %v2790 = vadd.f32 0.0, %v2789
  %2791 = vmatprep.mubr.f32.mxu0 0.0
  %2792 = vmatmul.mubr.f32.gmra.mrb[0].mxu0 %v191
  %v2793 = vpop.f32.mrb[0].mxu0
  %v2794 = vadd.f32 0.0, %v2793
  %v2795 = vpop.f32.mrb[0].mxu0
  %v2796 = vadd.f32 0.0, %v2795
  %2797 = vmatprep.mubr.f32.mxu0 0.0
  %2798 = vmatmul.mubr.f32.gmra.mrb[0].mxu0 %v194
  %v2799 = vpop.f32.mrb[0].mxu0
  %v2800 = vadd.f32 0.0, %v2799
  %v2801 = vpop.f32.mrb[0].mxu0
  %v2802 = vadd.f32 0.0, %v2801
  %2803 = vmatprep.mubr.f32.mxu0 0.0
  %2804 = vmatmul.mubr.f32.gmra.mrb[0].mxu0 %v197
  %v2805 = vpop.f32.mrb[0].mxu0
  %v2806 = vadd.f32 0.0, %v2805
  %v2807 = vpop.f32.mrb[0].mxu0
  %v2808 = vadd.f32 0.0, %v2807
  %2809 = vmatprep.mubr.f32.mxu0 0.0
  %2810 = vmatmul.mubr.f32.gmra.mrb[0].mxu0 %v200
  %v2811 = vpop.f32.mrb[0].mxu0
  %v2812 = vadd.f32 0.0, %v2811
  %v2813 = vpop.f32.mrb[0].mxu0
  %v2814 = vadd.f32 0.0, %v2813
  %2815 = vmatprep.mubr.f32.mxu0 0.0
  %2816 = vmatmul.mubr.f32.gmra.mrb[0].mxu0 %v203
  %v2817 = vpop.f32.mrb[0].mxu0
  %v2818 = vadd.f32 0.0, %v2817
  %v2819 = vpop.f32.mrb[0].mxu0
  %v2820 = vadd.f32 0.0, %v2819
  %2821 = vmatprep.mubr.f32.mxu0 0.0
  %2822 = vmatmul.mubr.f32.gmra.mrb[0].mxu0 %v206
  %v2823 = vpop.f32.mrb[0].mxu0
  %v2824 = vadd.f32 0.0, %v2823
  %v2825 = vpop.f32.mrb[0].mxu0
  %v2826 = vadd.f32 0.0, %v2825
  %2827 = vdwg.mxu0
  %v2828 = vrot.slane %v2734, 2
  %v2829 = vrot.slane %v2736, 2
  %v2830 = vrot.slane %v2740, 2
  %v2831 = vrot.slane %v2742, 2
  %v2832 = vrot.slane %v2746, 2
  %v2833 = vrot.slane %v2748, 2
  %v2834 = vrot.slane %v2752, 2
  %v2835 = vrot.slane %v2754, 2
  %v2836 = vrot.slane %v2758, 2
  %v2837 = vrot.slane %v2760, 2
  %v2838 = vrot.slane %v2764, 2
  %v2839 = vrot.slane %v2766, 2
  %v2840 = vrot.slane %v2770, 2
  %v2841 = vrot.slane %v2772, 2
  %v2842 = vrot.slane %v2776, 2
  %v2843 = vrot.slane %v2778, 2
  %v2844 = vrot.slane %v2782, 2
  %v2845 = vrot.slane %v2784, 2
  %v2846 = vrot.slane %v2788, 2
  %v2847 = vrot.slane %v2790, 2
  %v2848 = vrot.slane %v2794, 2
  %v2849 = vrot.slane %v2796, 2
  %v2850 = vrot.slane %v2800, 2
  %v2851 = vrot.slane %v2802, 2
  %v2852 = vrot.slane %v2806, 2
  %v2853 = vrot.slane %v2808, 2
  %v2854 = vrot.slane %v2812, 2
  %v2855 = vrot.slane %v2814, 2
  %v2856 = vrot.slane %v2818, 2
  %v2857 = vrot.slane %v2820, 2
  %v2858 = vrot.slane %v2824, 2
  %v2859 = vrot.slane %v2826, 2
  %v2860 = vsel %vm799, %v2856, %v2858
  %v2861 = vsel %vm799, %v2857, %v2859
  %v2862 = vsel %vm799, %v2854, %v2856
  %v2863 = vsel %vm799, %v2855, %v2857
  %v2864 = vsel %vm799, %v2852, %v2854
  %v2865 = vsel %vm799, %v2853, %v2855
  %v2866 = vsel %vm799, %v2850, %v2852
  %v2867 = vsel %vm799, %v2851, %v2853
  %v2868 = vsel %vm799, %v2848, %v2850
  %v2869 = vsel %vm799, %v2849, %v2851
  %v2870 = vsel %vm799, %v2846, %v2848
  %v2871 = vsel %vm799, %v2847, %v2849
  %v2872 = vsel %vm799, %v2844, %v2846
  %v2873 = vsel %vm799, %v2845, %v2847
  %v2874 = vsel %vm799, %v2842, %v2844
  %v2875 = vsel %vm799, %v2843, %v2845
  %v2876 = vsel %vm799, %v2840, %v2842
  %v2877 = vsel %vm799, %v2841, %v2843
  %v2878 = vsel %vm799, %v2838, %v2840
  %v2879 = vsel %vm799, %v2839, %v2841
  %v2880 = vsel %vm799, %v2836, %v2838
  %v2881 = vsel %vm799, %v2837, %v2839
  %v2882 = vsel %vm799, %v2834, %v2836
  %v2883 = vsel %vm799, %v2835, %v2837
  %v2884 = vsel %vm799, %v2832, %v2834
  %v2885 = vsel %vm799, %v2833, %v2835
  %v2886 = vsel %vm799, %v2830, %v2832
  %v2887 = vsel %vm799, %v2831, %v2833
  %v2888 = vsel %vm799, %v2828, %v2830
  %v2889 = vsel %vm799, %v2829, %v2831
  %v2890 = vsel %vm799, %v2858, %v2828
  %v2891 = vsel %vm799, %v2859, %v2829
  %v2892 = vadd.f32 %v2564, %v2888
  %v2893 = vadd.f32 %v2566, %v2889
  %v2894 = vadd.f32 %v2570, %v2886
  %v2895 = vadd.f32 %v2572, %v2887
  %v2896 = vadd.f32 %v2576, %v2884
  %v2897 = vadd.f32 %v2578, %v2885
  %v2898 = vadd.f32 %v2582, %v2882
  %v2899 = vadd.f32 %v2584, %v2883
  %v2900 = vadd.f32 %v2588, %v2880
  %v2901 = vadd.f32 %v2590, %v2881
  %v2902 = vadd.f32 %v2594, %v2878
  %v2903 = vadd.f32 %v2596, %v2879
  %v2904 = vadd.f32 %v2600, %v2876
  %v2905 = vadd.f32 %v2602, %v2877
  %v2906 = vadd.f32 %v2606, %v2874
  %v2907 = vadd.f32 %v2608, %v2875
  %v2908 = vadd.f32 %v2612, %v2872
  %v2909 = vadd.f32 %v2614, %v2873
  %v2910 = vadd.f32 %v2618, %v2870
  %v2911 = vadd.f32 %v2620, %v2871
  %v2912 = vadd.f32 %v2624, %v2868
  %v2913 = vadd.f32 %v2626, %v2869
  %v2914 = vadd.f32 %v2630, %v2866
  %v2915 = vadd.f32 %v2632, %v2867
  %v2916 = vadd.f32 %v2636, %v2864
  %v2917 = vadd.f32 %v2638, %v2865
  %v2918 = vadd.f32 %v2642, %v2862
  %v2919 = vadd.f32 %v2644, %v2863
  %v2920 = vadd.f32 %v2648, %v2860
  %v2921 = vadd.f32 %v2650, %v2861
  %v2922 = vadd.f32 %v2654, %v2890
  %v2923 = vadd.f32 %v2656, %v2891
  %s2924 = scalar_lea.vmem %s8, 192
  %v2925 = vld [vmem:[%s2924] sm:$0xff]
  %v2926 = vld [vmem:[%s2924 + $0x8] sm:$0xff]
  %v2927 = vld [vmem:[%s2924 + $0x10] sm:$0xff]
  %v2928 = vld [vmem:[%s2924 + $0x18] sm:$0xff]
  %v2929 = vld [vmem:[%s2924 + $0x20] sm:$0xff]
  %v2930 = vld [vmem:[%s2924 + $0x28] sm:$0xff]
  %v2931 = vld [vmem:[%s2924 + $0x30] sm:$0xff]
  %v2932 = vld [vmem:[%s2924 + $0x38] sm:$0xff]
  %2933 = vmatprep.subr.mxu0 %v2926
  %2934 = vmatpush1.msra.mxu0 %v2925
  %2935 = vmatprep.subr.mxu0 %v2928
  %2936 = vmatpush1.msra.mxu0 %v2927
  %2937 = vmatprep.subr.mxu0 %v2930
  %2938 = vmatpush1.msra.mxu0 %v2929
  %2939 = vmatprep.subr.mxu0 %v2932
  %2940 = vmatpush1.msra.mxu0 %v2931
  %2941 = vmatprep.subr.mxu0 0.0
  %2942 = vmatpush1.msra.mxu0 0.0
  %2943 = vmatprep.subr.mxu0 0.0
  %2944 = vmatpush1.msra.mxu0 0.0
  %2945 = vmatprep.subr.mxu0 0.0
  %2946 = vmatpush1.msra.mxu0 0.0
  %2947 = vmatprep.subr.mxu0 0.0
  %2948 = vmatpush1.msra.mxu0 0.0
  %2949 = vmatprep.subr.mxu0 0.0
  %2950 = vmatpush1.msra.mxu0 0.0
  %2951 = vmatprep.subr.mxu0 0.0
  %2952 = vmatpush1.msra.mxu0 0.0
  %2953 = vmatprep.subr.mxu0 0.0
  %2954 = vmatpush1.msra.mxu0 0.0
  %2955 = vmatprep.subr.mxu0 0.0
  %2956 = vmatpush1.msra.mxu0 0.0
  %2957 = vmatprep.subr.mxu0 0.0
  %2958 = vmatpush1.msra.mxu0 0.0
  %2959 = vmatprep.subr.mxu0 0.0
  %2960 = vmatpush1.msra.mxu0 0.0
  %2961 = vmatprep.subr.mxu0 0.0
  %2962 = vmatpush1.msra.mxu0 0.0
  %2963 = vmatprep.subr.mxu0 0.0
  %2964 = vmatpush1.msra.mxu0 0.0
  %2965 = vmatprep.subr.mxu0 0.0
  %2966 = vmatpush1.msra.mxu0 0.0
  %2967 = vmatprep.subr.mxu0 0.0
  %2968 = vmatpush1.msra.mxu0 0.0
  %2969 = vmatprep.subr.mxu0 0.0
  %2970 = vmatpush1.msra.mxu0 0.0
  %2971 = vmatprep.subr.mxu0 0.0
  %2972 = vmatpush1.msra.mxu0 0.0
  %2973 = vmatprep.subr.mxu0 0.0
  %2974 = vmatpush1.msra.mxu0 0.0
  %2975 = vmatprep.subr.mxu0 0.0
  %2976 = vmatpush1.msra.mxu0 0.0
  %2977 = vmatprep.subr.mxu0 0.0
  %2978 = vmatpush1.msra.mxu0 0.0
  %2979 = vmatprep.subr.mxu0 0.0
  %2980 = vmatpush1.msra.mxu0 0.0
  %2981 = vmatprep.subr.mxu0 0.0
  %2982 = vmatpush1.msra.mxu0 0.0
  %2983 = vmatprep.subr.mxu0 0.0
  %2984 = vmatpush1.msra.mxu0 0.0
  %2985 = vmatprep.subr.mxu0 0.0
  %2986 = vmatpush1.msra.mxu0 0.0
  %2987 = vmatprep.subr.mxu0 0.0
  %2988 = vmatpush1.msra.mxu0 0.0
  %2989 = vmatprep.subr.mxu0 0.0
  %2990 = vmatpush1.msra.mxu0 0.0
  %2991 = vmatprep.subr.mxu0 0.0
  %2992 = vmatpush1.msra.mxu0 0.0
  %2993 = vmatprep.subr.mxu0 0.0
  %2994 = vmatpush1.msra.mxu0 0.0
  %2995 = vmatprep.subr.mxu0 0.0
  %2996 = vmatpush1.msra.mxu0 0.0
  %2997 = vmatprep.mubr.f32.mxu0 0.0
  %2998 = vmatmul.mubr.f32.gmra.mrb[0].mxu0 %v161
  %v2999 = vpop.f32.mrb[0].mxu0
  %v3000 = vadd.f32 0.0, %v2999
  %v3001 = vpop.f32.mrb[0].mxu0
  %v3002 = vadd.f32 0.0, %v3001
  %3003 = vmatprep.mubr.f32.mxu0 0.0
  %3004 = vmatmul.mubr.f32.gmra.mrb[0].mxu0 %v164
  %v3005 = vpop.f32.mrb[0].mxu0
  %v3006 = vadd.f32 0.0, %v3005
  %v3007 = vpop.f32.mrb[0].mxu0
  %v3008 = vadd.f32 0.0, %v3007
  %3009 = vmatprep.mubr.f32.mxu0 0.0
  %3010 = vmatmul.mubr.f32.gmra.mrb[0].mxu0 %v167
  %v3011 = vpop.f32.mrb[0].mxu0
  %v3012 = vadd.f32 0.0, %v3011
  %v3013 = vpop.f32.mrb[0].mxu0
  %v3014 = vadd.f32 0.0, %v3013
  %3015 = vmatprep.mubr.f32.mxu0 0.0
  %3016 = vmatmul.mubr.f32.gmra.mrb[0].mxu0 %v170
  %v3017 = vpop.f32.mrb[0].mxu0
  %v3018 = vadd.f32 0.0, %v3017
  %v3019 = vpop.f32.mrb[0].mxu0
  %v3020 = vadd.f32 0.0, %v3019
  %3021 = vmatprep.mubr.f32.mxu0 0.0
  %3022 = vmatmul.mubr.f32.gmra.mrb[0].mxu0 %v173
  %v3023 = vpop.f32.mrb[0].mxu0
  %v3024 = vadd.f32 0.0, %v3023
  %v3025 = vpop.f32.mrb[0].mxu0
  %v3026 = vadd.f32 0.0, %v3025
  %3027 = vmatprep.mubr.f32.mxu0 0.0
  %3028 = vmatmul.mubr.f32.gmra.mrb[0].mxu0 %v176
  %v3029 = vpop.f32.mrb[0].mxu0
  %v3030 = vadd.f32 0.0, %v3029
  %v3031 = vpop.f32.mrb[0].mxu0
  %v3032 = vadd.f32 0.0, %v3031
  %3033 = vmatprep.mubr.f32.mxu0 0.0
  %3034 = vmatmul.mubr.f32.gmra.mrb[0].mxu0 %v179
  %v3035 = vpop.f32.mrb[0].mxu0
  %v3036 = vadd.f32 0.0, %v3035
  %v3037 = vpop.f32.mrb[0].mxu0
  %v3038 = vadd.f32 0.0, %v3037
  %3039 = vmatprep.mubr.f32.mxu0 0.0
  %3040 = vmatmul.mubr.f32.gmra.mrb[0].mxu0 %v182
  %v3041 = vpop.f32.mrb[0].mxu0
  %v3042 = vadd.f32 0.0, %v3041
  %v3043 = vpop.f32.mrb[0].mxu0
  %v3044 = vadd.f32 0.0, %v3043
  %3045 = vmatprep.mubr.f32.mxu0 0.0
  %3046 = vmatmul.mubr.f32.gmra.mrb[0].mxu0 %v185
  %v3047 = vpop.f32.mrb[0].mxu0
  %v3048 = vadd.f32 0.0, %v3047
  %v3049 = vpop.f32.mrb[0].mxu0
  %v3050 = vadd.f32 0.0, %v3049
  %3051 = vmatprep.mubr.f32.mxu0 0.0
  %3052 = vmatmul.mubr.f32.gmra.mrb[0].mxu0 %v188
  %v3053 = vpop.f32.mrb[0].mxu0
  %v3054 = vadd.f32 0.0, %v3053
  %v3055 = vpop.f32.mrb[0].mxu0
  %v3056 = vadd.f32 0.0, %v3055
  %3057 = vmatprep.mubr.f32.mxu0 0.0
  %3058 = vmatmul.mubr.f32.gmra.mrb[0].mxu0 %v191
  %v3059 = vpop.f32.mrb[0].mxu0
  %v3060 = vadd.f32 0.0, %v3059
  %v3061 = vpop.f32.mrb[0].mxu0
  %v3062 = vadd.f32 0.0, %v3061
  %3063 = vmatprep.mubr.f32.mxu0 0.0
  %3064 = vmatmul.mubr.f32.gmra.mrb[0].mxu0 %v194
  %v3065 = vpop.f32.mrb[0].mxu0
  %v3066 = vadd.f32 0.0, %v3065
  %v3067 = vpop.f32.mrb[0].mxu0
  %v3068 = vadd.f32 0.0, %v3067
  %3069 = vmatprep.mubr.f32.mxu0 0.0
  %3070 = vmatmul.mubr.f32.gmra.mrb[0].mxu0 %v197
  %v3071 = vpop.f32.mrb[0].mxu0
  %v3072 = vadd.f32 0.0, %v3071
  %v3073 = vpop.f32.mrb[0].mxu0
  %v3074 = vadd.f32 0.0, %v3073
  %3075 = vmatprep.mubr.f32.mxu0 0.0
  %3076 = vmatmul.mubr.f32.gmra.mrb[0].mxu0 %v200
  %v3077 = vpop.f32.mrb[0].mxu0
  %v3078 = vadd.f32 0.0, %v3077
  %v3079 = vpop.f32.mrb[0].mxu0
  %v3080 = vadd.f32 0.0, %v3079
  %3081 = vmatprep.mubr.f32.mxu0 0.0
  %3082 = vmatmul.mubr.f32.gmra.mrb[0].mxu0 %v203
  %v3083 = vpop.f32.mrb[0].mxu0
  %v3084 = vadd.f32 0.0, %v3083
  %v3085 = vpop.f32.mrb[0].mxu0
  %v3086 = vadd.f32 0.0, %v3085
  %3087 = vmatprep.mubr.f32.mxu0 0.0
  %3088 = vmatmul.mubr.f32.gmra.mrb[0].mxu0 %v206
  %v3089 = vpop.f32.mrb[0].mxu0
  %v3090 = vadd.f32 0.0, %v3089
  %v3091 = vpop.f32.mrb[0].mxu0
  %v3092 = vadd.f32 0.0, %v3091
  %3093 = vdwg.mxu0
  %v3094 = vrot.slane %v3000, 3
  %v3095 = vrot.slane %v3002, 3
  %v3096 = vrot.slane %v3006, 3
  %v3097 = vrot.slane %v3008, 3
  %v3098 = vrot.slane %v3012, 3
  %v3099 = vrot.slane %v3014, 3
  %v3100 = vrot.slane %v3018, 3
  %v3101 = vrot.slane %v3020, 3
  %v3102 = vrot.slane %v3024, 3
  %v3103 = vrot.slane %v3026, 3
  %v3104 = vrot.slane %v3030, 3
  %v3105 = vrot.slane %v3032, 3
  %v3106 = vrot.slane %v3036, 3
  %v3107 = vrot.slane %v3038, 3
  %v3108 = vrot.slane %v3042, 3
  %v3109 = vrot.slane %v3044, 3
  %v3110 = vrot.slane %v3048, 3
  %v3111 = vrot.slane %v3050, 3
  %v3112 = vrot.slane %v3054, 3
  %v3113 = vrot.slane %v3056, 3
  %v3114 = vrot.slane %v3060, 3
  %v3115 = vrot.slane %v3062, 3
  %v3116 = vrot.slane %v3066, 3
  %v3117 = vrot.slane %v3068, 3
  %v3118 = vrot.slane %v3072, 3
  %v3119 = vrot.slane %v3074, 3
  %v3120 = vrot.slane %v3078, 3
  %v3121 = vrot.slane %v3080, 3
  %v3122 = vrot.slane %v3084, 3
  %v3123 = vrot.slane %v3086, 3
  %v3124 = vrot.slane %v3090, 3
  %v3125 = vrot.slane %v3092, 3
  %v3126 = vsel %vm2008, %v3122, %v3124
  %v3127 = vsel %vm2008, %v3123, %v3125
  %v3128 = vsel %vm2008, %v3120, %v3122
  %v3129 = vsel %vm2008, %v3121, %v3123
  %v3130 = vsel %vm2008, %v3118, %v3120
  %v3131 = vsel %vm2008, %v3119, %v3121
  %v3132 = vsel %vm2008, %v3116, %v3118
  %v3133 = vsel %vm2008, %v3117, %v3119
  %v3134 = vsel %vm2008, %v3114, %v3116
  %v3135 = vsel %vm2008, %v3115, %v3117
  %v3136 = vsel %vm2008, %v3112, %v3114
  %v3137 = vsel %vm2008, %v3113, %v3115
  %v3138 = vsel %vm2008, %v3110, %v3112
  %v3139 = vsel %vm2008, %v3111, %v3113
  %v3140 = vsel %vm2008, %v3108, %v3110
  %v3141 = vsel %vm2008, %v3109, %v3111
  %v3142 = vsel %vm2008, %v3106, %v3108
  %v3143 = vsel %vm2008, %v3107, %v3109
  %v3144 = vsel %vm2008, %v3104, %v3106
  %v3145 = vsel %vm2008, %v3105, %v3107
  %v3146 = vsel %vm2008, %v3102, %v3104
  %v3147 = vsel %vm2008, %v3103, %v3105
  %v3148 = vsel %vm2008, %v3100, %v3102
  %v3149 = vsel %vm2008, %v3101, %v3103
  %v3150 = vsel %vm2008, %v3098, %v3100
  %v3151 = vsel %vm2008, %v3099, %v3101
  %v3152 = vsel %vm2008, %v3096, %v3098
  %v3153 = vsel %vm2008, %v3097, %v3099
  %v3154 = vsel %vm2008, %v3094, %v3096
  %v3155 = vsel %vm2008, %v3095, %v3097
  %v3156 = vsel %vm2008, %v3124, %v3094
  %v3157 = vsel %vm2008, %v3125, %v3095
  %v3158 = vadd.f32 %v2892, %v3154
  %v3159 = vadd.f32 %v2893, %v3155
  %v3160 = vadd.f32 %v2894, %v3152
  %v3161 = vadd.f32 %v2895, %v3153
  %v3162 = vadd.f32 %v2896, %v3150
  %v3163 = vadd.f32 %v2897, %v3151
  %v3164 = vadd.f32 %v2898, %v3148
  %v3165 = vadd.f32 %v2899, %v3149
  %v3166 = vadd.f32 %v2900, %v3146
  %v3167 = vadd.f32 %v2901, %v3147
  %v3168 = vadd.f32 %v2902, %v3144
  %v3169 = vadd.f32 %v2903, %v3145
  %v3170 = vadd.f32 %v2904, %v3142
  %v3171 = vadd.f32 %v2905, %v3143
  %v3172 = vadd.f32 %v2906, %v3140
  %v3173 = vadd.f32 %v2907, %v3141
  %v3174 = vadd.f32 %v2908, %v3138
  %v3175 = vadd.f32 %v2909, %v3139
  %v3176 = vadd.f32 %v2910, %v3136
  %v3177 = vadd.f32 %v2911, %v3137
  %v3178 = vadd.f32 %v2912, %v3134
  %v3179 = vadd.f32 %v2913, %v3135
  %v3180 = vadd.f32 %v2914, %v3132
  %v3181 = vadd.f32 %v2915, %v3133
  %v3182 = vadd.f32 %v2916, %v3130
  %v3183 = vadd.f32 %v2917, %v3131
  %v3184 = vadd.f32 %v2918, %v3128
  %v3185 = vadd.f32 %v2919, %v3129
  %v3186 = vadd.f32 %v2920, %v3126
  %v3187 = vadd.f32 %v2921, %v3127
  %v3188 = vadd.f32 %v2922, %v3156
  %v3189 = vadd.f32 %v2923, %v3157
  %s3190 = scalar_lea.vmem %s8, 256
  %v3191 = vld [vmem:[%s3190] sm:$0xff]
  %v3192 = vld [vmem:[%s3190 + $0x8] sm:$0xff]
  %v3193 = vld [vmem:[%s3190 + $0x10] sm:$0xff]
  %v3194 = vld [vmem:[%s3190 + $0x18] sm:$0xff]
  %v3195 = vld [vmem:[%s3190 + $0x20] sm:$0xff]
  %v3196 = vld [vmem:[%s3190 + $0x28] sm:$0xff]
  %v3197 = vld [vmem:[%s3190 + $0x30] sm:$0xff]
  %v3198 = vld [vmem:[%s3190 + $0x38] sm:$0xff]
  %3199 = vmatprep.subr.mxu0 %v3192
  %3200 = vmatpush1.msra.mxu0 %v3191
  %3201 = vmatprep.subr.mxu0 %v3194
  %3202 = vmatpush1.msra.mxu0 %v3193
  %3203 = vmatprep.subr.mxu0 %v3196
  %3204 = vmatpush1.msra.mxu0 %v3195
  %3205 = vmatprep.subr.mxu0 %v3198
  %3206 = vmatpush1.msra.mxu0 %v3197
  %3207 = vmatprep.subr.mxu0 0.0
  %3208 = vmatpush1.msra.mxu0 0.0
  %3209 = vmatprep.subr.mxu0 0.0
  %3210 = vmatpush1.msra.mxu0 0.0
  %3211 = vmatprep.subr.mxu0 0.0
  %3212 = vmatpush1.msra.mxu0 0.0
  %3213 = vmatprep.subr.mxu0 0.0
  %3214 = vmatpush1.msra.mxu0 0.0
  %3215 = vmatprep.subr.mxu0 0.0
  %3216 = vmatpush1.msra.mxu0 0.0
  %3217 = vmatprep.subr.mxu0 0.0
  %3218 = vmatpush1.msra.mxu0 0.0
  %3219 = vmatprep.subr.mxu0 0.0
  %3220 = vmatpush1.msra.mxu0 0.0
  %3221 = vmatprep.subr.mxu0 0.0
  %3222 = vmatpush1.msra.mxu0 0.0
  %3223 = vmatprep.subr.mxu0 0.0
  %3224 = vmatpush1.msra.mxu0 0.0
  %3225 = vmatprep.subr.mxu0 0.0
  %3226 = vmatpush1.msra.mxu0 0.0
  %3227 = vmatprep.subr.mxu0 0.0
  %3228 = vmatpush1.msra.mxu0 0.0
  %3229 = vmatprep.subr.mxu0 0.0
  %3230 = vmatpush1.msra.mxu0 0.0
  %3231 = vmatprep.subr.mxu0 0.0
  %3232 = vmatpush1.msra.mxu0 0.0
  %3233 = vmatprep.subr.mxu0 0.0
  %3234 = vmatpush1.msra.mxu0 0.0
  %3235 = vmatprep.subr.mxu0 0.0
  %3236 = vmatpush1.msra.mxu0 0.0
  %3237 = vmatprep.subr.mxu0 0.0
  %3238 = vmatpush1.msra.mxu0 0.0
  %3239 = vmatprep.subr.mxu0 0.0
  %3240 = vmatpush1.msra.mxu0 0.0
  %3241 = vmatprep.subr.mxu0 0.0
  %3242 = vmatpush1.msra.mxu0 0.0
  %3243 = vmatprep.subr.mxu0 0.0
  %3244 = vmatpush1.msra.mxu0 0.0
  %3245 = vmatprep.subr.mxu0 0.0
  %3246 = vmatpush1.msra.mxu0 0.0
  %3247 = vmatprep.subr.mxu0 0.0
  %3248 = vmatpush1.msra.mxu0 0.0
  %3249 = vmatprep.subr.mxu0 0.0
  %3250 = vmatpush1.msra.mxu0 0.0
  %3251 = vmatprep.subr.mxu0 0.0
  %3252 = vmatpush1.msra.mxu0 0.0
  %3253 = vmatprep.subr.mxu0 0.0
  %3254 = vmatpush1.msra.mxu0 0.0
  %3255 = vmatprep.subr.mxu0 0.0
  %3256 = vmatpush1.msra.mxu0 0.0
  %3257 = vmatprep.subr.mxu0 0.0
  %3258 = vmatpush1.msra.mxu0 0.0
  %3259 = vmatprep.subr.mxu0 0.0
  %3260 = vmatpush1.msra.mxu0 0.0
  %3261 = vmatprep.subr.mxu0 0.0
  %3262 = vmatpush1.msra.mxu0 0.0
  %3263 = vmatprep.mubr.f32.mxu0 0.0
  %3264 = vmatmul.mubr.f32.gmra.mrb[0].mxu0 %v161
  %v3265 = vpop.f32.mrb[0].mxu0
  %v3266 = vadd.f32 0.0, %v3265
  %v3267 = vpop.f32.mrb[0].mxu0
  %v3268 = vadd.f32 0.0, %v3267
  %3269 = vmatprep.mubr.f32.mxu0 0.0
  %3270 = vmatmul.mubr.f32.gmra.mrb[0].mxu0 %v164
  %v3271 = vpop.f32.mrb[0].mxu0
  %v3272 = vadd.f32 0.0, %v3271
  %v3273 = vpop.f32.mrb[0].mxu0
  %v3274 = vadd.f32 0.0, %v3273
  %3275 = vmatprep.mubr.f32.mxu0 0.0
  %3276 = vmatmul.mubr.f32.gmra.mrb[0].mxu0 %v167
  %v3277 = vpop.f32.mrb[0].mxu0
  %v3278 = vadd.f32 0.0, %v3277
  %v3279 = vpop.f32.mrb[0].mxu0
  %v3280 = vadd.f32 0.0, %v3279
  %3281 = vmatprep.mubr.f32.mxu0 0.0
  %3282 = vmatmul.mubr.f32.gmra.mrb[0].mxu0 %v170
  %v3283 = vpop.f32.mrb[0].mxu0
  %v3284 = vadd.f32 0.0, %v3283
  %v3285 = vpop.f32.mrb[0].mxu0
  %v3286 = vadd.f32 0.0, %v3285
  %3287 = vmatprep.mubr.f32.mxu0 0.0
  %3288 = vmatmul.mubr.f32.gmra.mrb[0].mxu0 %v173
  %v3289 = vpop.f32.mrb[0].mxu0
  %v3290 = vadd.f32 0.0, %v3289
  %v3291 = vpop.f32.mrb[0].mxu0
  %v3292 = vadd.f32 0.0, %v3291
  %3293 = vmatprep.mubr.f32.mxu0 0.0
  %3294 = vmatmul.mubr.f32.gmra.mrb[0].mxu0 %v176
  %v3295 = vpop.f32.mrb[0].mxu0
  %v3296 = vadd.f32 0.0, %v3295
  %v3297 = vpop.f32.mrb[0].mxu0
  %v3298 = vadd.f32 0.0, %v3297
  %3299 = vmatprep.mubr.f32.mxu0 0.0
  %3300 = vmatmul.mubr.f32.gmra.mrb[0].mxu0 %v179
  %v3301 = vpop.f32.mrb[0].mxu0
  %v3302 = vadd.f32 0.0, %v3301
  %v3303 = vpop.f32.mrb[0].mxu0
  %v3304 = vadd.f32 0.0, %v3303
  %3305 = vmatprep.mubr.f32.mxu0 0.0
  %3306 = vmatmul.mubr.f32.gmra.mrb[0].mxu0 %v182
  %v3307 = vpop.f32.mrb[0].mxu0
  %v3308 = vadd.f32 0.0, %v3307
  %v3309 = vpop.f32.mrb[0].mxu0
  %v3310 = vadd.f32 0.0, %v3309
  %3311 = vmatprep.mubr.f32.mxu0 0.0
  %3312 = vmatmul.mubr.f32.gmra.mrb[0].mxu0 %v185
  %v3313 = vpop.f32.mrb[0].mxu0
  %v3314 = vadd.f32 0.0, %v3313
  %v3315 = vpop.f32.mrb[0].mxu0
  %v3316 = vadd.f32 0.0, %v3315
  %3317 = vmatprep.mubr.f32.mxu0 0.0
  %3318 = vmatmul.mubr.f32.gmra.mrb[0].mxu0 %v188
  %v3319 = vpop.f32.mrb[0].mxu0
  %v3320 = vadd.f32 0.0, %v3319
  %v3321 = vpop.f32.mrb[0].mxu0
  %v3322 = vadd.f32 0.0, %v3321
  %3323 = vmatprep.mubr.f32.mxu0 0.0
  %3324 = vmatmul.mubr.f32.gmra.mrb[0].mxu0 %v191
  %v3325 = vpop.f32.mrb[0].mxu0
  %v3326 = vadd.f32 0.0, %v3325
  %v3327 = vpop.f32.mrb[0].mxu0
  %v3328 = vadd.f32 0.0, %v3327
  %3329 = vmatprep.mubr.f32.mxu0 0.0
  %3330 = vmatmul.mubr.f32.gmra.mrb[0].mxu0 %v194
  %v3331 = vpop.f32.mrb[0].mxu0
  %v3332 = vadd.f32 0.0, %v3331
  %v3333 = vpop.f32.mrb[0].mxu0
  %v3334 = vadd.f32 0.0, %v3333
  %3335 = vmatprep.mubr.f32.mxu0 0.0
  %3336 = vmatmul.mubr.f32.gmra.mrb[0].mxu0 %v197
  %v3337 = vpop.f32.mrb[0].mxu0
  %v3338 = vadd.f32 0.0, %v3337
  %v3339 = vpop.f32.mrb[0].mxu0
  %v3340 = vadd.f32 0.0, %v3339
  %3341 = vmatprep.mubr.f32.mxu0 0.0
  %3342 = vmatmul.mubr.f32.gmra.mrb[0].mxu0 %v200
  %v3343 = vpop.f32.mrb[0].mxu0
  %v3344 = vadd.f32 0.0, %v3343
  %v3345 = vpop.f32.mrb[0].mxu0
  %v3346 = vadd.f32 0.0, %v3345
  %3347 = vmatprep.mubr.f32.mxu0 0.0
  %3348 = vmatmul.mubr.f32.gmra.mrb[0].mxu0 %v203
  %v3349 = vpop.f32.mrb[0].mxu0
  %v3350 = vadd.f32 0.0, %v3349
  %v3351 = vpop.f32.mrb[0].mxu0
  %v3352 = vadd.f32 0.0, %v3351
  %3353 = vmatprep.mubr.f32.mxu0 0.0
  %3354 = vmatmul.mubr.f32.gmra.mrb[0].mxu0 %v206
  %v3355 = vpop.f32.mrb[0].mxu0
  %v3356 = vadd.f32 0.0, %v3355
  %v3357 = vpop.f32.mrb[0].mxu0
  %v3358 = vadd.f32 0.0, %v3357
  %3359 = vdwg.mxu0
  %v3360 = vrot.slane %v3266, 4
  %v3361 = vrot.slane %v3268, 4
  %v3362 = vrot.slane %v3272, 4
  %v3363 = vrot.slane %v3274, 4
  %v3364 = vrot.slane %v3278, 4
  %v3365 = vrot.slane %v3280, 4
  %v3366 = vrot.slane %v3284, 4
  %v3367 = vrot.slane %v3286, 4
  %v3368 = vrot.slane %v3290, 4
  %v3369 = vrot.slane %v3292, 4
  %v3370 = vrot.slane %v3296, 4
  %v3371 = vrot.slane %v3298, 4
  %v3372 = vrot.slane %v3302, 4
  %v3373 = vrot.slane %v3304, 4
  %v3374 = vrot.slane %v3308, 4
  %v3375 = vrot.slane %v3310, 4
  %v3376 = vrot.slane %v3314, 4
  %v3377 = vrot.slane %v3316, 4
  %v3378 = vrot.slane %v3320, 4
  %v3379 = vrot.slane %v3322, 4
  %v3380 = vrot.slane %v3326, 4
  %v3381 = vrot.slane %v3328, 4
  %v3382 = vrot.slane %v3332, 4
  %v3383 = vrot.slane %v3334, 4
  %v3384 = vrot.slane %v3338, 4
  %v3385 = vrot.slane %v3340, 4
  %v3386 = vrot.slane %v3344, 4
  %v3387 = vrot.slane %v3346, 4
  %v3388 = vrot.slane %v3350, 4
  %v3389 = vrot.slane %v3352, 4
  %v3390 = vrot.slane %v3356, 4
  %v3391 = vrot.slane %v3358, 4
  %vm3392 = vcmp.lt.s32.totalorder %v402, 4
  %v3393 = vsel %vm3392, %v3388, %v3390
  %v3394 = vsel %vm3392, %v3389, %v3391
  %v3395 = vsel %vm3392, %v3386, %v3388
  %v3396 = vsel %vm3392, %v3387, %v3389
  %v3397 = vsel %vm3392, %v3384, %v3386
  %v3398 = vsel %vm3392, %v3385, %v3387
  %v3399 = vsel %vm3392, %v3382, %v3384
  %v3400 = vsel %vm3392, %v3383, %v3385
  %v3401 = vsel %vm3392, %v3380, %v3382
  %v3402 = vsel %vm3392, %v3381, %v3383
  %v3403 = vsel %vm3392, %v3378, %v3380
  %v3404 = vsel %vm3392, %v3379, %v3381
  %v3405 = vsel %vm3392, %v3376, %v3378
  %v3406 = vsel %vm3392, %v3377, %v3379
  %v3407 = vsel %vm3392, %v3374, %v3376
  %v3408 = vsel %vm3392, %v3375, %v3377
  %v3409 = vsel %vm3392, %v3372, %v3374
  %v3410 = vsel %vm3392, %v3373, %v3375
  %v3411 = vsel %vm3392, %v3370, %v3372
  %v3412 = vsel %vm3392, %v3371, %v3373
  %v3413 = vsel %vm3392, %v3368, %v3370
  %v3414 = vsel %vm3392, %v3369, %v3371
  %v3415 = vsel %vm3392, %v3366, %v3368
  %v3416 = vsel %vm3392, %v3367, %v3369
  %v3417 = vsel %vm3392, %v3364, %v3366
  %v3418 = vsel %vm3392, %v3365, %v3367
  %v3419 = vsel %vm3392, %v3362, %v3364
  %v3420 = vsel %vm3392, %v3363, %v3365
  %v3421 = vsel %vm3392, %v3360, %v3362
  %v3422 = vsel %vm3392, %v3361, %v3363
  %v3423 = vsel %vm3392, %v3390, %v3360
  %v3424 = vsel %vm3392, %v3391, %v3361
  %v3425 = vadd.f32 %v3158, %v3421
  %v3426 = vadd.f32 %v3159, %v3422
  %v3427 = vadd.f32 %v3160, %v3419
  %v3428 = vadd.f32 %v3161, %v3420
  %v3429 = vadd.f32 %v3162, %v3417
  %v3430 = vadd.f32 %v3163, %v3418
  %v3431 = vadd.f32 %v3164, %v3415
  %v3432 = vadd.f32 %v3165, %v3416
  %v3433 = vadd.f32 %v3166, %v3413
  %v3434 = vadd.f32 %v3167, %v3414
  %v3435 = vadd.f32 %v3168, %v3411
  %v3436 = vadd.f32 %v3169, %v3412
  %v3437 = vadd.f32 %v3170, %v3409
  %v3438 = vadd.f32 %v3171, %v3410
  %v3439 = vadd.f32 %v3172, %v3407
  %v3440 = vadd.f32 %v3173, %v3408
  %v3441 = vadd.f32 %v3174, %v3405
  %v3442 = vadd.f32 %v3175, %v3406
  %v3443 = vadd.f32 %v3176, %v3403
  %v3444 = vadd.f32 %v3177, %v3404
  %v3445 = vadd.f32 %v3178, %v3401
  %v3446 = vadd.f32 %v3179, %v3402
  %v3447 = vadd.f32 %v3180, %v3399
  %v3448 = vadd.f32 %v3181, %v3400
  %v3449 = vadd.f32 %v3182, %v3397
  %v3450 = vadd.f32 %v3183, %v3398
  %v3451 = vadd.f32 %v3184, %v3395
  %v3452 = vadd.f32 %v3185, %v3396
  %v3453 = vadd.f32 %v3186, %v3393
  %v3454 = vadd.f32 %v3187, %v3394
  %v3455 = vadd.f32 %v3188, %v3423
  %v3456 = vadd.f32 %v3189, %v3424
  %v3457 = vld [vmem:[%s9] sm:$0x3]
  %v3459 = vlaneseq
  %v3460 = vshrl.u32 %v3459, 7
  %v3461 = vsub.s32 0, %v3460
  %v3462 = vrot.slane %v3457, %v3461
  %v3463 = vlaneseq
  %v3464 = vshrl.u32 %v3463, 7
  %v3465 = vsub.s32 1, %v3464
  %v3466 = vrot.slane %v3457, %v3465
  %v3469 = vadd.f32 %v3425, %v3462
  %v3470 = vadd.f32 %v3426, %v3466
  %v3471 = vadd.f32 %v3427, %v3462
  %v3472 = vadd.f32 %v3428, %v3466
  %v3473 = vadd.f32 %v3429, %v3462
  %v3474 = vadd.f32 %v3430, %v3466
  %v3475 = vadd.f32 %v3431, %v3462
  %v3476 = vadd.f32 %v3432, %v3466
  %v3477 = vadd.f32 %v3433, %v3462
  %v3478 = vadd.f32 %v3434, %v3466
  %v3479 = vadd.f32 %v3435, %v3462
  %v3480 = vadd.f32 %v3436, %v3466
  %v3481 = vadd.f32 %v3437, %v3462
  %v3482 = vadd.f32 %v3438, %v3466
  %v3483 = vadd.f32 %v3439, %v3462
  %v3484 = vadd.f32 %v3440, %v3466
  %v3485 = vadd.f32 %v3441, %v3462
  %v3486 = vadd.f32 %v3442, %v3466
  %v3487 = vadd.f32 %v3443, %v3462
  %v3488 = vadd.f32 %v3444, %v3466
  %v3489 = vadd.f32 %v3445, %v3462
  %v3490 = vadd.f32 %v3446, %v3466
  %v3491 = vadd.f32 %v3447, %v3462
  %v3492 = vadd.f32 %v3448, %v3466
  %v3493 = vadd.f32 %v3449, %v3462
  %v3494 = vadd.f32 %v3450, %v3466
  %v3495 = vadd.f32 %v3451, %v3462
  %v3496 = vadd.f32 %v3452, %v3466
  %v3497 = vadd.f32 %v3453, %v3462
  %v3498 = vadd.f32 %v3454, %v3466
  %v3499 = vadd.f32 %v3455, %v3462
  %v3500 = vadd.f32 %v3456, %v3466
  %v3501 = vtanh.pop %v3469
  %v3502 = vtanh.pop %v3471
  %v3503 = vtanh.pop %v3473
  %v3504 = vtanh.pop %v3475
  %v3505 = vtanh.pop %v3477
  %v3506 = vtanh.pop %v3479
  %v3507 = vtanh.pop %v3481
  %v3508 = vtanh.pop %v3483
  %v3509 = vtanh.pop %v3485
  %v3510 = vtanh.pop %v3487
  %v3511 = vtanh.pop %v3489
  %v3512 = vtanh.pop %v3491
  %v3513 = vtanh.pop %v3493
  %v3514 = vtanh.pop %v3495
  %v3515 = vtanh.pop %v3497
  %v3516 = vtanh.pop %v3499
  %v3517 = vadd.f32 %v3470, %v977
  %v3518 = vadd.f32 %v3472, %v977
  %v3519 = vadd.f32 %v3474, %v981
  %v3520 = vadd.f32 %v3476, %v981
  %v3521 = vadd.f32 %v3478, %v985
  %v3522 = vadd.f32 %v3480, %v985
  %v3523 = vadd.f32 %v3482, %v989
  %v3524 = vadd.f32 %v3484, %v989
  %v3525 = vadd.f32 %v3486, %v993
  %v3526 = vadd.f32 %v3488, %v993
  %v3527 = vadd.f32 %v3490, %v997
  %v3528 = vadd.f32 %v3492, %v997
  %v3529 = vadd.f32 %v3494, %v1001
  %v3530 = vadd.f32 %v3496, %v1001
  %v3531 = vadd.f32 %v3498, %v1005
  %v3532 = vadd.f32 %v3500, %v1005
  %v3533 = vmax.f32 %v3517, 0.0
  %v3534 = vmax.f32 %v3518, 0.0
  %v3535 = vmax.f32 %v3519, 0.0
  %v3536 = vmax.f32 %v3520, 0.0
  %v3537 = vmax.f32 %v3521, 0.0
  %v3538 = vmax.f32 %v3522, 0.0
  %v3539 = vmax.f32 %v3523, 0.0
  %v3540 = vmax.f32 %v3524, 0.0
  %v3541 = vmax.f32 %v3525, 0.0
  %v3542 = vmax.f32 %v3526, 0.0
  %v3543 = vmax.f32 %v3527, 0.0
  %v3544 = vmax.f32 %v3528, 0.0
  %v3545 = vmax.f32 %v3529, 0.0
  %v3546 = vmax.f32 %v3530, 0.0
  %v3547 = vmax.f32 %v3531, 0.0
  %v3548 = vmax.f32 %v3532, 0.0
  %v3549 = vmul.f32 %v3501, %v3533
  %v3550 = vmul.f32 %v3502, %v3534
  %v3551 = vmul.f32 %v3503, %v3535
  %v3552 = vmul.f32 %v3504, %v3536
  %v3553 = vmul.f32 %v3505, %v3537
  %v3554 = vmul.f32 %v3506, %v3538
  %v3555 = vmul.f32 %v3507, %v3539
  %v3556 = vmul.f32 %v3508, %v3540
  %v3557 = vmul.f32 %v3509, %v3541
  %v3558 = vmul.f32 %v3510, %v3542
  %v3559 = vmul.f32 %v3511, %v3543
  %v3560 = vmul.f32 %v3512, %v3544
  %v3561 = vmul.f32 %v3513, %v3545
  %v3562 = vmul.f32 %v3514, %v3546
  %v3563 = vmul.f32 %v3515, %v3547
  %v3564 = vmul.f32 %v3516, %v3548
  %vm3565 = vcmp.lt.s32.totalorder %v402, 12
  %vm3566 = vcmp.lt.s32.totalorder %v1062, 12
  %v3567 = vsel %vm3565, %v3549, -1e+30
  %v3568 = vsel %vm3566, %v3550, -1e+30
  %v3569 = vsel %vm3565, %v3551, -1e+30
  %v3570 = vsel %vm3566, %v3552, -1e+30
  %v3571 = vsel %vm3565, %v3553, -1e+30
  %v3572 = vsel %vm3566, %v3554, -1e+30
  %v3573 = vsel %vm3565, %v3555, -1e+30
  %v3574 = vsel %vm3566, %v3556, -1e+30
  %v3575 = vsel %vm3565, %v3557, -1e+30
  %v3576 = vsel %vm3566, %v3558, -1e+30
  %v3577 = vsel %vm3565, %v3559, -1e+30
  %v3578 = vsel %vm3566, %v3560, -1e+30
  %v3579 = vsel %vm3565, %v3561, -1e+30
  %v3580 = vsel %vm3566, %v3562, -1e+30
  %v3581 = vsel %vm3565, %v3563, -1e+30
  %v3582 = vsel %vm3566, %v3564, -1e+30
  %v3583 = vmax.f32 %v3567, %v3568
  %v3584 = vrot.slane %v3583, 4
  %v3585 = vmax.f32 %v3583, %v3584
  %v3586 = vrot.slane %v3585, 2
  %v3587 = vmax.f32 %v3585, %v3586
  %v3588 = vrot.slane %v3587, 1
  %v3589 = vmax.f32 %v3587, %v3588
  %v3590 = vmax.f32 %v3569, %v3570
  %v3591 = vrot.slane %v3590, 4
  %v3592 = vmax.f32 %v3590, %v3591
  %v3593 = vrot.slane %v3592, 2
  %v3594 = vmax.f32 %v3592, %v3593
  %v3595 = vrot.slane %v3594, 1
  %v3596 = vmax.f32 %v3594, %v3595
  %v3597 = vmax.f32 %v3571, %v3572
  %v3598 = vrot.slane %v3597, 4
  %v3599 = vmax.f32 %v3597, %v3598
  %v3600 = vrot.slane %v3599, 2
  %v3601 = vmax.f32 %v3599, %v3600
  %v3602 = vrot.slane %v3601, 1
  %v3603 = vmax.f32 %v3601, %v3602
  %v3604 = vmax.f32 %v3573, %v3574
  %v3605 = vrot.slane %v3604, 4
  %v3606 = vmax.f32 %v3604, %v3605
  %v3607 = vrot.slane %v3606, 2
  %v3608 = vmax.f32 %v3606, %v3607
  %v3609 = vrot.slane %v3608, 1
  %v3610 = vmax.f32 %v3608, %v3609
  %v3611 = vmax.f32 %v3575, %v3576
  %v3612 = vrot.slane %v3611, 4
  %v3613 = vmax.f32 %v3611, %v3612
  %v3614 = vrot.slane %v3613, 2
  %v3615 = vmax.f32 %v3613, %v3614
  %v3616 = vrot.slane %v3615, 1
  %v3617 = vmax.f32 %v3615, %v3616
  %v3618 = vmax.f32 %v3577, %v3578
  %v3619 = vrot.slane %v3618, 4
  %v3620 = vmax.f32 %v3618, %v3619
  %v3621 = vrot.slane %v3620, 2
  %v3622 = vmax.f32 %v3620, %v3621
  %v3623 = vrot.slane %v3622, 1
  %v3624 = vmax.f32 %v3622, %v3623
  %v3625 = vmax.f32 %v3579, %v3580
  %v3626 = vrot.slane %v3625, 4
  %v3627 = vmax.f32 %v3625, %v3626
  %v3628 = vrot.slane %v3627, 2
  %v3629 = vmax.f32 %v3627, %v3628
  %v3630 = vrot.slane %v3629, 1
  %v3631 = vmax.f32 %v3629, %v3630
  %v3632 = vmax.f32 %v3581, %v3582
  %v3633 = vrot.slane %v3632, 4
  %v3634 = vmax.f32 %v3632, %v3633
  %v3635 = vrot.slane %v3634, 2
  %v3636 = vmax.f32 %v3634, %v3635
  %v3637 = vrot.slane %v3636, 1
  %v3638 = vmax.f32 %v3636, %v3637
  %vm3647 = vcmask 1041409
  %v3648 = vsel %vm3647, %v1094, %v1087
  %vm3649 = vcmask 1042434
  %v3650 = vsel %vm3649, %v1101, %v3648
  %vm3651 = vcmask 1043459
  %v3652 = vsel %vm3651, %v1108, %v3650
  %vm3653 = vcmask 1044484
  %v3654 = vsel %vm3653, %v1115, %v3652
  %vm3655 = vcmask 1045509
  %v3656 = vsel %vm3655, %v1122, %v3654
  %vm3657 = vcmask 1046534
  %v3658 = vsel %vm3657, %v1129, %v3656
  %vm3659 = vcmask 1047559
  %v3660 = vsel %vm3659, %v1136, %v3658
  %v3670 = vsel %vm3647, %v2212, %v2205
  %v3671 = vsel %vm3649, %v2219, %v3670
  %v3672 = vsel %vm3651, %v2226, %v3671
  %v3673 = vsel %vm3653, %v2233, %v3672
  %v3674 = vsel %vm3655, %v2240, %v3673
  %v3675 = vsel %vm3657, %v2247, %v3674
  %v3676 = vsel %vm3659, %v2254, %v3675
  %v3686 = vsel %vm3647, %v3596, %v3589
  %v3687 = vsel %vm3649, %v3603, %v3686
  %v3688 = vsel %vm3651, %v3610, %v3687
  %v3689 = vsel %vm3653, %v3617, %v3688
  %v3690 = vsel %vm3655, %v3624, %v3689
  %v3691 = vsel %vm3657, %v3631, %v3690
  %v3692 = vsel %vm3659, %v3638, %v3691
  %v3694 = vld [vmem:[%s10] sm:$0xff]
  %v3695 = vld [vmem:[%s10 + $0x8] sm:$0xff]
  %v3696 = vld [vmem:[%s10 + $0x10] sm:$0xff]
  %v3697 = vld [vmem:[%s10 + $0x18] sm:$0xff]
  %v3698 = vld [vmem:[%s10 + $0x20] sm:$0xff]
  %v3699 = vld [vmem:[%s10 + $0x28] sm:$0xff]
  %v3700 = vld [vmem:[%s10 + $0x30] sm:$0xff]
  %v3701 = vld [vmem:[%s10 + $0x38] sm:$0xff]
  %v3702 = vld [vmem:[%s10 + $0x40] sm:$0xff]
  %v3703 = vld [vmem:[%s10 + $0x48] sm:$0xff]
  %v3704 = vld [vmem:[%s10 + $0x50] sm:$0xff]
  %v3705 = vld [vmem:[%s10 + $0x58] sm:$0xff]
  %v3706 = vld [vmem:[%s10 + $0x60] sm:$0xff]
  %v3707 = vld [vmem:[%s10 + $0x68] sm:$0xff]
  %v3708 = vld [vmem:[%s10 + $0x70] sm:$0xff]
  %v3709 = vld [vmem:[%s10 + $0x78] sm:$0xff]
  %v3710 = vld [vmem:[%s10 + $0x80] sm:$0xff]
  %v3711 = vld [vmem:[%s10 + $0x88] sm:$0xff]
  %v3712 = vld [vmem:[%s10 + $0x90] sm:$0xff]
  %v3713 = vld [vmem:[%s10 + $0x98] sm:$0xff]
  %v3714 = vld [vmem:[%s10 + $0xa0] sm:$0xff]
  %v3715 = vld [vmem:[%s10 + $0xa8] sm:$0xff]
  %v3716 = vld [vmem:[%s10 + $0xb0] sm:$0xff]
  %v3717 = vld [vmem:[%s10 + $0xb8] sm:$0xff]
  %v3718 = vld [vmem:[%s10 + $0xc0] sm:$0xff]
  %v3719 = vld [vmem:[%s10 + $0xc8] sm:$0xff]
  %v3720 = vld [vmem:[%s10 + $0xd0] sm:$0xff]
  %v3721 = vld [vmem:[%s10 + $0xd8] sm:$0xff]
  %v3722 = vld [vmem:[%s10 + $0xe0] sm:$0xff]
  %v3723 = vld [vmem:[%s10 + $0xe8] sm:$0xff]
  %v3724 = vld [vmem:[%s10 + $0xf0] sm:$0xff]
  %v3725 = vld [vmem:[%s10 + $0xf8] sm:$0xff]
  %v3726 = vld [vmem:[%s10 + $0x100] sm:$0xff]
  %v3727 = vld [vmem:[%s10 + $0x108] sm:$0xff]
  %v3728 = vld [vmem:[%s10 + $0x110] sm:$0xff]
  %v3729 = vld [vmem:[%s10 + $0x118] sm:$0xff]
  %v3730 = vld [vmem:[%s10 + $0x120] sm:$0xff]
  %v3731 = vld [vmem:[%s10 + $0x128] sm:$0xff]
  %v3732 = vld [vmem:[%s10 + $0x130] sm:$0xff]
  %v3733 = vld [vmem:[%s10 + $0x138] sm:$0xff]
  %v3734 = vld [vmem:[%s10 + $0x140] sm:$0xff]
  %v3735 = vld [vmem:[%s10 + $0x148] sm:$0xff]
  %v3736 = vld [vmem:[%s10 + $0x150] sm:$0xff]
  %v3737 = vld [vmem:[%s10 + $0x158] sm:$0xff]
  %v3738 = vld [vmem:[%s10 + $0x160] sm:$0xff]
  %v3739 = vld [vmem:[%s10 + $0x168] sm:$0xff]
  %v3740 = vld [vmem:[%s10 + $0x170] sm:$0xff]
  %v3741 = vld [vmem:[%s10 + $0x178] sm:$0xff]
  %v3742 = vld [vmem:[%s11] sm:$0x1]
  %v3744 = vlaneseq
  %v3745 = vshrl.u32 %v3744, 7
  %v3746 = vsub.s32 0, %v3745
  %v3747 = vrot.slane %v3742, %v3746
  %3749 = vmatprep.subr.mxu0 0.0
  %3750 = vmatpush1.msra.mxu0 %v3694
  %3751 = vmatprep.subr.mxu0 0.0
  %3752 = vmatpush1.msra.mxu0 %v3695
  %3753 = vmatprep.subr.mxu0 0.0
  %3754 = vmatpush1.msra.mxu0 %v3696
  %3755 = vmatprep.subr.mxu0 0.0
  %3756 = vmatpush1.msra.mxu0 %v3697
  %3757 = vmatprep.subr.mxu0 0.0
  %3758 = vmatpush1.msra.mxu0 %v3698
  %3759 = vmatprep.subr.mxu0 0.0
  %3760 = vmatpush1.msra.mxu0 %v3699
  %3761 = vmatprep.subr.mxu0 0.0
  %3762 = vmatpush1.msra.mxu0 %v3700
  %3763 = vmatprep.subr.mxu0 0.0
  %3764 = vmatpush1.msra.mxu0 %v3701
  %3765 = vmatprep.subr.mxu0 0.0
  %3766 = vmatpush1.msra.mxu0 %v3702
  %3767 = vmatprep.subr.mxu0 0.0
  %3768 = vmatpush1.msra.mxu0 %v3703
  %3769 = vmatprep.subr.mxu0 0.0
  %3770 = vmatpush1.msra.mxu0 %v3704
  %3771 = vmatprep.subr.mxu0 0.0
  %3772 = vmatpush1.msra.mxu0 %v3705
  %3773 = vmatprep.subr.mxu0 0.0
  %3774 = vmatpush1.msra.mxu0 %v3706
  %3775 = vmatprep.subr.mxu0 0.0
  %3776 = vmatpush1.msra.mxu0 %v3707
  %3777 = vmatprep.subr.mxu0 0.0
  %3778 = vmatpush1.msra.mxu0 %v3708
  %3779 = vmatprep.subr.mxu0 0.0
  %3780 = vmatpush1.msra.mxu0 %v3709
  %3781 = vmatprep.subr.mxu0 0.0
  %3782 = vmatpush1.msra.mxu0 %v3710
  %3783 = vmatprep.subr.mxu0 0.0
  %3784 = vmatpush1.msra.mxu0 %v3711
  %3785 = vmatprep.subr.mxu0 0.0
  %3786 = vmatpush1.msra.mxu0 %v3712
  %3787 = vmatprep.subr.mxu0 0.0
  %3788 = vmatpush1.msra.mxu0 %v3713
  %3789 = vmatprep.subr.mxu0 0.0
  %3790 = vmatpush1.msra.mxu0 %v3714
  %3791 = vmatprep.subr.mxu0 0.0
  %3792 = vmatpush1.msra.mxu0 %v3715
  %3793 = vmatprep.subr.mxu0 0.0
  %3794 = vmatpush1.msra.mxu0 %v3716
  %3795 = vmatprep.subr.mxu0 0.0
  %3796 = vmatpush1.msra.mxu0 %v3717
  %3797 = vmatprep.subr.mxu0 0.0
  %3798 = vmatpush1.msra.mxu0 %v3718
  %3799 = vmatprep.subr.mxu0 0.0
  %3800 = vmatpush1.msra.mxu0 %v3719
  %3801 = vmatprep.subr.mxu0 0.0
  %3802 = vmatpush1.msra.mxu0 %v3720
  %3803 = vmatprep.subr.mxu0 0.0
  %3804 = vmatpush1.msra.mxu0 %v3721
  %3805 = vmatprep.subr.mxu0 0.0
  %3806 = vmatpush1.msra.mxu0 %v3722
  %3807 = vmatprep.subr.mxu0 0.0
  %3808 = vmatpush1.msra.mxu0 %v3723
  %3809 = vmatprep.subr.mxu0 0.0
  %3810 = vmatpush1.msra.mxu0 %v3724
  %3811 = vmatprep.subr.mxu0 0.0
  %3812 = vmatpush1.msra.mxu0 %v3725
  %3813 = vmatprep.mubr.f32.mxu0 %v3676
  %3814 = vmatmul.mubr.f32.gmra.mrb[0].mxu0 %v3660
  %v3815 = vpop.f32.mrb[0].mxu0
  %v3816 = vadd.f32 %v3747, %v3815
  %v3817 = vpop.f32.mrb[0].mxu0
  %3818 = vdwg.mxu0
  %3819 = vmatprep.subr.mxu0 0.0
  %3820 = vmatpush1.msra.mxu0 %v3726
  %3821 = vmatprep.subr.mxu0 0.0
  %3822 = vmatpush1.msra.mxu0 %v3727
  %3823 = vmatprep.subr.mxu0 0.0
  %3824 = vmatpush1.msra.mxu0 %v3728
  %3825 = vmatprep.subr.mxu0 0.0
  %3826 = vmatpush1.msra.mxu0 %v3729
  %3827 = vmatprep.subr.mxu0 0.0
  %3828 = vmatpush1.msra.mxu0 %v3730
  %3829 = vmatprep.subr.mxu0 0.0
  %3830 = vmatpush1.msra.mxu0 %v3731
  %3831 = vmatprep.subr.mxu0 0.0
  %3832 = vmatpush1.msra.mxu0 %v3732
  %3833 = vmatprep.subr.mxu0 0.0
  %3834 = vmatpush1.msra.mxu0 %v3733
  %3835 = vmatprep.subr.mxu0 0.0
  %3836 = vmatpush1.msra.mxu0 %v3734
  %3837 = vmatprep.subr.mxu0 0.0
  %3838 = vmatpush1.msra.mxu0 %v3735
  %3839 = vmatprep.subr.mxu0 0.0
  %3840 = vmatpush1.msra.mxu0 %v3736
  %3841 = vmatprep.subr.mxu0 0.0
  %3842 = vmatpush1.msra.mxu0 %v3737
  %3843 = vmatprep.subr.mxu0 0.0
  %3844 = vmatpush1.msra.mxu0 %v3738
  %3845 = vmatprep.subr.mxu0 0.0
  %3846 = vmatpush1.msra.mxu0 %v3739
  %3847 = vmatprep.subr.mxu0 0.0
  %3848 = vmatpush1.msra.mxu0 %v3740
  %3849 = vmatprep.subr.mxu0 0.0
  %3850 = vmatpush1.msra.mxu0 %v3741
  %3851 = vmatprep.subr.mxu0 0.0
  %3852 = vmatpush1.msra.mxu0 0.0
  %3853 = vmatprep.subr.mxu0 0.0
  %3854 = vmatpush1.msra.mxu0 0.0
  %3855 = vmatprep.subr.mxu0 0.0
  %3856 = vmatpush1.msra.mxu0 0.0
  %3857 = vmatprep.subr.mxu0 0.0
  %3858 = vmatpush1.msra.mxu0 0.0
  %3859 = vmatprep.subr.mxu0 0.0
  %3860 = vmatpush1.msra.mxu0 0.0
  %3861 = vmatprep.subr.mxu0 0.0
  %3862 = vmatpush1.msra.mxu0 0.0
  %3863 = vmatprep.subr.mxu0 0.0
  %3864 = vmatpush1.msra.mxu0 0.0
  %3865 = vmatprep.subr.mxu0 0.0
  %3866 = vmatpush1.msra.mxu0 0.0
  %3867 = vmatprep.subr.mxu0 0.0
  %3868 = vmatpush1.msra.mxu0 0.0
  %3869 = vmatprep.subr.mxu0 0.0
  %3870 = vmatpush1.msra.mxu0 0.0
  %3871 = vmatprep.subr.mxu0 0.0
  %3872 = vmatpush1.msra.mxu0 0.0
  %3873 = vmatprep.subr.mxu0 0.0
  %3874 = vmatpush1.msra.mxu0 0.0
  %3875 = vmatprep.subr.mxu0 0.0
  %3876 = vmatpush1.msra.mxu0 0.0
  %3877 = vmatprep.subr.mxu0 0.0
  %3878 = vmatpush1.msra.mxu0 0.0
  %3879 = vmatprep.subr.mxu0 0.0
  %3880 = vmatpush1.msra.mxu0 0.0
  %3881 = vmatprep.subr.mxu0 0.0
  %3882 = vmatpush1.msra.mxu0 0.0
  %3883 = vmatprep.mubr.f32.mxu0 0.0
  %3884 = vmatmul.mubr.f32.gmra.mrb[0].mxu0 %v3692
  %v3885 = vpop.f32.mrb[0].mxu0
  %v3886 = vadd.f32 %v3816, %v3885
  %v3887 = vpop.f32.mrb[0].mxu0
  %3888 = vdwg.mxu0
  %3889 = vst [vmem:[%s12] sm:$0xff] %v3886
  // Predicated region
  $region50: #{forward.1} parent=0 // pred_check
    _
  $region51: #{forward.1} parent=0 // pred_check_branch
    %3891 = sbr.rel (0) target = $region53
  $region52: #{forward.1} parent=0 // pred_region
    _
  $region53: #{forward.1} parent=0 // pred_fallthru
    _
  // Predicated region
  $region54: #{forward.1} parent=0 // pred_check
    _
  $region55: #{forward.1} parent=0 // pred_check_branch
    %3893 = sbr.rel (0) target = $region57
  $region56: #{forward.1} parent=0 // pred_region
    _
  $region57: #{forward.1} parent=0 // pred_fallthru
    _

</llo_original>
